<compile_context>
chip_gen: v6e
topology: v6e:2x2x1
jax: 0.10.0
libtpu: 0.0.40
codegen_flags: <defaults>
</compile_context>

<pallas_src>
import math
import functools

import jax
import jax.numpy as jnp
from jax.experimental import pallas as pl
from jax.experimental.pallas import tpu as pltpu


# ------------------------------ configuration -------------------------------

MATMUL_DTYPE = jnp.bfloat16        # MXU operand dtype; accumulation is f32
LN_EPS = 1e-5                      # matches nn.LayerNorm default
VMEM_LIMIT = 32 * 1024 * 1024      # safe on v5e/v6e (128 MiB) and v7x (64 MiB)
ROW_TILE_CAP = 512                 # max rows per grid step for row-tiled kernels


def _cparams(sem):
    return pltpu.CompilerParams(dimension_semantics=sem,
                                vmem_limit_bytes=VMEM_LIMIT)


def _row_tile(m, cap=ROW_TILE_CAP):
    """Largest row-tile <= cap that divides m and is a multiple of 8 (or m)."""
    if m <= cap:
        return m
    t = cap - (cap % 8)
    while t >= 8:
        if m % t == 0:
            return t
        t -= 8
    return m


# --------------------------- in-kernel math helpers --------------------------

def _mm(a, b):
    # bf16 MXU operands, f32 accumulation.
    return jnp.dot(a.astype(MATMUL_DTYPE), b.astype(MATMUL_DTYPE),
                   preferred_element_type=jnp.float32)


def _erf(x):
    # Abramowitz & Stegun 7.1.26; |abs err| < 1.5e-7 (i.e. exact at f32).
    # Uses only exp / mul / add so it lowers in-kernel (exp lands on the EUP).
    a1, a2, a3, a4, a5 = (0.254829592, -0.284496736, 1.421413741,
                          -1.453152027, 1.061405429)
    pc = 0.3275911
    z = jnp.abs(x)
    t = 1.0 / (1.0 + pc * z)
    poly = ((((a5 * t + a4) * t + a3) * t + a2) * t + a1) * t
    y = 1.0 - poly * jnp.exp(-z * z)
    return jnp.where(x >= 0, y, -y)


def _gelu(x):
    # exact (erf-based) GELU, matching PyTorch's default nn.GELU / F.gelu.
    return 0.5 * x * (1.0 + _erf(x * (1.0 / math.sqrt(2.0))))


def _ln(x, g, b, eps=LN_EPS):
    mean = jnp.mean(x, axis=-1, keepdims=True)
    var = jnp.mean(jnp.square(x - mean), axis=-1, keepdims=True)
    return (x - mean) * jax.lax.rsqrt(var + eps) * g + b


# ------------------------------- Pallas kernels ------------------------------

def _dense_kernel(x_ref, w_ref, b_ref, o_ref, *, activation):
    y = _mm(x_ref[...], w_ref[...]) + b_ref[...]
    if activation == "gelu":
        y = _gelu(y)
    o_ref[...] = y


def dense(x2d, w, b, activation=None):
    M, K = x2d.shape
    N = w.shape[1]
    tm = _row_tile(M)
    cost = pl.CostEstimate(
        flops=2 * M * K * N,
        transcendentals=(M * N) if activation else 0,
        bytes_accessed=4 * (M * K + K * N + M * N + N))
    return pl.pallas_call(
        functools.partial(_dense_kernel, activation=activation),
        out_shape=jax.ShapeDtypeStruct((M, N), jnp.float32),
        grid=(M // tm,),
        in_specs=[
            pl.BlockSpec((tm, K), lambda i: (i, 0)),    # streamed activation rows
            pl.BlockSpec((K, N), lambda i: (0, 0)),     # weight: VMEM-resident
            pl.BlockSpec((1, N), lambda i: (0, 0)),     # bias: VMEM-resident
        ],
        out_specs=pl.BlockSpec((tm, N), lambda i: (i, 0)),
        compiler_params=_cparams(("parallel",)),
        cost_estimate=cost,
    )(x2d, w, b.reshape(1, N))


def _norm_dense_kernel(x_ref, g_ref, bta_ref, w_ref, b_ref, o_ref):
    # fused feature_norm (LayerNorm over padded features) + feature_embed
    xn = _ln(x_ref[...], g_ref[...], bta_ref[...])
    o_ref[...] = _mm(xn, w_ref[...]) + b_ref[...]


def norm_dense(x2d, gamma, beta, w, b):
    M, K = x2d.shape
    N = w.shape[1]
    tm = _row_tile(M)
    cost = pl.CostEstimate(
        flops=2 * M * K * N + 6 * M * K, transcendentals=0,
        bytes_accessed=4 * (M * K + K * N + M * N + 2 * K + N))
    return pl.pallas_call(
        _norm_dense_kernel,
        out_shape=jax.ShapeDtypeStruct((M, N), jnp.float32),
        grid=(M // tm,),
        in_specs=[
            pl.BlockSpec((tm, K), lambda i: (i, 0)),
            pl.BlockSpec((1, K), lambda i: (0, 0)),
            pl.BlockSpec((1, K), lambda i: (0, 0)),
            pl.BlockSpec((K, N), lambda i: (0, 0)),
            pl.BlockSpec((1, N), lambda i: (0, 0)),
        ],
        out_specs=pl.BlockSpec((tm, N), lambda i: (i, 0)),
        compiler_params=_cparams(("parallel",)),
        cost_estimate=cost,
    )(x2d, gamma.reshape(1, K), beta.reshape(1, K), w, b.reshape(1, N))


def _proj_add_norm_kernel(a_ref, x_ref, w_ref, b_ref, g_ref, bt_ref, o_ref):
    # out = LayerNorm(x + attn @ Wo + bo)    (post-norm attention block)
    y = x_ref[...] + _mm(a_ref[...], w_ref[...]) + b_ref[...]
    o_ref[...] = _ln(y, g_ref[...], bt_ref[...])


def proj_add_norm(a2d, x2d, w, b, gamma, beta):
    M, D = x2d.shape
    tm = _row_tile(M)
    cost = pl.CostEstimate(
        flops=2 * M * D * D + 8 * M * D, transcendentals=0,
        bytes_accessed=4 * (3 * M * D + D * D + 3 * D))
    return pl.pallas_call(
        _proj_add_norm_kernel,
        out_shape=jax.ShapeDtypeStruct((M, D), jnp.float32),
        grid=(M // tm,),
        in_specs=[
            pl.BlockSpec((tm, D), lambda i: (i, 0)),
            pl.BlockSpec((tm, D), lambda i: (i, 0)),
            pl.BlockSpec((D, D), lambda i: (0, 0)),
            pl.BlockSpec((1, D), lambda i: (0, 0)),
            pl.BlockSpec((1, D), lambda i: (0, 0)),
            pl.BlockSpec((1, D), lambda i: (0, 0)),
        ],
        out_specs=pl.BlockSpec((tm, D), lambda i: (i, 0)),
        compiler_params=_cparams(("parallel",)),
        cost_estimate=cost,
    )(a2d, x2d, w, b.reshape(1, D), gamma.reshape(1, D), beta.reshape(1, D))


def _ffn_add_norm_kernel(x_ref, w1_ref, b1_ref, w2_ref, b2_ref, g_ref, bt_ref,
                         o_ref):
    # out = LayerNorm(x + W2 @ gelu(W1 @ x + b1) + b2)  (fused FFN block)
    x = x_ref[...]
    h = _gelu(_mm(x, w1_ref[...]) + b1_ref[...])
    y = x + _mm(h, w2_ref[...]) + b2_ref[...]
    o_ref[...] = _ln(y, g_ref[...], bt_ref[...])


def ffn_add_norm(x2d, w1, b1, w2, b2, gamma, beta):
    M, D = x2d.shape
    F = w1.shape[1]
    tm = _row_tile(M)
    cost = pl.CostEstimate(
        flops=4 * M * D * F + 8 * M * D, transcendentals=M * F,
        bytes_accessed=4 * (2 * M * D + 2 * D * F + F + 3 * D))
    return pl.pallas_call(
        _ffn_add_norm_kernel,
        out_shape=jax.ShapeDtypeStruct((M, D), jnp.float32),
        grid=(M // tm,),
        in_specs=[
            pl.BlockSpec((tm, D), lambda i: (i, 0)),
            pl.BlockSpec((D, F), lambda i: (0, 0)),
            pl.BlockSpec((1, F), lambda i: (0, 0)),
            pl.BlockSpec((F, D), lambda i: (0, 0)),
            pl.BlockSpec((1, D), lambda i: (0, 0)),
            pl.BlockSpec((1, D), lambda i: (0, 0)),
            pl.BlockSpec((1, D), lambda i: (0, 0)),
        ],
        out_specs=pl.BlockSpec((tm, D), lambda i: (i, 0)),
        compiler_params=_cparams(("parallel",)),
        cost_estimate=cost,
    )(x2d, w1, b1.reshape(1, F), w2, b2.reshape(1, D),
      gamma.reshape(1, D), beta.reshape(1, D))


def _attend_heads(q2d, k2d, v2d, num_heads, scale):
    """q2d [Lq, D], k2d/v2d [Lk, D] with heads packed on the lane axis.

    Returns per-head outputs [Lq, Dh].  Head addressing is static lane slicing
    (pure VMEM, no HBM transposes); scale folded into Q; softmax stats in f32;
    divide via approx reciprocal (EUP slot)."""
    D = q2d.shape[-1]
    Dh = D // num_heads
    qs = q2d * scale
    outs = []
    for h in range(num_heads):
        lo, hi = h * Dh, (h + 1) * Dh
        qh = qs[:, lo:hi].astype(MATMUL_DTYPE)
        kh = k2d[:, lo:hi].astype(MATMUL_DTYPE)
        vh = v2d[:, lo:hi].astype(MATMUL_DTYPE)
        # q @ k^T via contraction dims (no explicit transpose materialization)
        s = jax.lax.dot_general(qh, kh, (((1,), (1,)), ((), ())),
                                preferred_element_type=jnp.float32)  # [Lq, Lk]
        s = s - jnp.max(s, axis=-1, keepdims=True)
        p = jnp.exp(s)
        p = p * pl.reciprocal(jnp.sum(p, axis=-1, keepdims=True), approx=True)
        outs.append(jnp.dot(p.astype(MATMUL_DTYPE), vh,
                            preferred_element_type=jnp.float32))      # [Lq, Dh]
    return outs


def _self_attn_kernel(qkv_ref, o_ref, *, num_heads, scale, hidden):
    qkv = qkv_ref[0]                      # [L, 3D] fused QKV projection output
    q = qkv[:, :hidden]
    k = qkv[:, hidden:2 * hidden]
    v = qkv[:, 2 * hidden:]
    outs = _attend_heads(q, k, v, num_heads, scale)
    Dh = hidden // num_heads
    for h in range(num_heads):
        o_ref[0, :, h * Dh:(h + 1) * Dh] = outs[h]


def self_attention(qkv, num_heads):
    # qkv: [B, L, 3D]; all heads of one batch element handled per grid step.
    B, L, D3 = qkv.shape
    D = D3 // 3
    scale = 1.0 / math.sqrt(D // num_heads)
    return pl.pallas_call(
        functools.partial(_self_attn_kernel, num_heads=num_heads, scale=scale,
                          hidden=D),
        out_shape=jax.ShapeDtypeStruct((B, L, D), jnp.float32),
        grid=(B,),
        in_specs=[pl.BlockSpec((1, L, D3), lambda b: (b, 0, 0))],
        out_specs=pl.BlockSpec((1, L, D), lambda b: (b, 0, 0)),
        compiler_params=_cparams(("parallel",)),
    )(qkv)


def _cross_attn_kernel(q_ref, kv_ref, o_ref, *, num_heads, scale, hidden):
    q = q_ref[0]                          # [Lq, D]
    kv = kv_ref[0]                        # [Lk, 2D] fused K|V projection output
    k = kv[:, :hidden]
    v = kv[:, hidden:]
    outs = _attend_heads(q, k, v, num_heads, scale)
    Dh = hidden // num_heads
    for h in range(num_heads):
        o_ref[0, :, h * Dh:(h + 1) * Dh] = outs[h]


def cross_attention_heads(q3d, kv3d, num_heads):
    B, Lq, D = q3d.shape
    Lk = kv3d.shape[1]
    scale = 1.0 / math.sqrt(D // num_heads)
    return pl.pallas_call(
        functools.partial(_cross_attn_kernel, num_heads=num_heads, scale=scale,
                          hidden=D),
        out_shape=jax.ShapeDtypeStruct((B, Lq, D), jnp.float32),
        grid=(B,),
        in_specs=[pl.BlockSpec((1, Lq, D), lambda b: (b, 0, 0)),
                  pl.BlockSpec((1, Lk, 2 * D), lambda b: (b, 0, 0))],
        out_specs=pl.BlockSpec((1, Lq, D), lambda b: (b, 0, 0)),
        compiler_params=_cparams(("parallel",)),
    )(q3d, kv3d)


def _head_kernel(a_ref, ow_ref, ob_ref, g_ref, bt_ref,
                 w1_ref, b1_ref, w2_ref, b2_ref, w3_ref, b3_ref, o_ref):
    # cross-attn out_proj + output_head (LN -> Lin -> GELU -> Lin -> GELU -> Lin)
    y = _mm(a_ref[...], ow_ref[...]) + ob_ref[...]
    y = _ln(y, g_ref[...], bt_ref[...])
    h = _gelu(_mm(y, w1_ref[...]) + b1_ref[...])
    h = _gelu(_mm(h, w2_ref[...]) + b2_ref[...])
    o_ref[...] = _mm(h, w3_ref[...]) + b3_ref[...]


def output_head(a2d, o_w, o_b, oh):
    M, D = a2d.shape
    H2 = oh['w2'].shape[1]
    C = oh['w3'].shape[1]
    tm = _row_tile(M)
    cost = pl.CostEstimate(
        flops=2 * M * (2 * D * D + D * H2 + H2 * C) + 8 * M * D,
        transcendentals=M * (D + H2),
        bytes_accessed=4 * (M * D + M * C + 2 * D * D + D * H2 + H2 * C))
    return pl.pallas_call(
        _head_kernel,
        out_shape=jax.ShapeDtypeStruct((M, C), jnp.float32),
        grid=(M // tm,),
        in_specs=[
            pl.BlockSpec((tm, D), lambda i: (i, 0)),
            pl.BlockSpec((D, D), lambda i: (0, 0)),
            pl.BlockSpec((1, D), lambda i: (0, 0)),
            pl.BlockSpec((1, D), lambda i: (0, 0)),
            pl.BlockSpec((1, D), lambda i: (0, 0)),
            pl.BlockSpec((D, D), lambda i: (0, 0)),
            pl.BlockSpec((1, D), lambda i: (0, 0)),
            pl.BlockSpec((D, H2), lambda i: (0, 0)),
            pl.BlockSpec((1, H2), lambda i: (0, 0)),
            pl.BlockSpec((H2, C), lambda i: (0, 0)),
            pl.BlockSpec((1, C), lambda i: (0, 0)),
        ],
        out_specs=pl.BlockSpec((tm, C), lambda i: (i, 0)),
        compiler_params=_cparams(("parallel",)),
        cost_estimate=cost,
    )(a2d, o_w, o_b.reshape(1, D), oh['ln_g'].reshape(1, D),
      oh['ln_b'].reshape(1, D), oh['w1'], oh['b1'].reshape(1, D),
      oh['w2'], oh['b2'].reshape(1, H2), oh['w3'], oh['b3'].reshape(1, C))


# --------------------------------- model glue --------------------------------

def encoder_layer(x, p, num_heads):
    # PyTorch TransformerEncoderLayer, post-norm (norm_first=False), GELU FFN.
    B, L, D = x.shape
    x2d = x.reshape(B * L, D)
    qkv = dense(x2d, p['in_w'], p['in_b'])                    # fused QKV proj
    attn = self_attention(qkv.reshape(B, L, 3 * D), num_heads)
    x2d = proj_add_norm(attn.reshape(B * L, D), x2d, p['out_w'], p['out_b'],
                        p['ln1_g'], p['ln1_b'])               # out_proj + add&norm
    x2d = ffn_add_norm(x2d, p['ff1_w'], p['ff1_b'], p['ff2_w'], p['ff2_b'],
                       p['ln2_g'], p['ln2_b'])                # fused FFN + add&norm
    return x2d.reshape(B, L, D)


def tabpfn_forward(params, context_x, context_y, test_x, num_heads):
    B, Lc, _ = context_x.shape
    Lt = test_x.shape[1]
    max_in, H = params['feature_embed_w'].shape

    def pad_features(x):
        cur = x.shape[-1]
        if cur < max_in:
            pad = jnp.zeros(x.shape[:-1] + (max_in - cur,), x.dtype)
            x = jnp.concatenate([x, pad], axis=-1)
        return x

    cx = pad_features(context_x)   # padding before the norm matches PyTorch spec
    tx = pad_features(test_x)

    # fused feature_norm + feature_embed
    cx_emb = norm_dense(cx.reshape(B * Lc, max_in), params['fn_g'],
                        params['fn_b'], params['feature_embed_w'],
                        params['feature_embed_b']).reshape(B, Lc, H)
    tx_emb = norm_dense(tx.reshape(B * Lt, max_in), params['fn_g'],
                        params['fn_b'], params['feature_embed_w'],
                        params['feature_embed_b']).reshape(B, Lt, H)

    cy_emb = jnp.take(params['label_embed'], context_y, axis=0)   # [B, Lc, H]

    c_emb = (cx_emb + cy_emb + params['pos_embed'][:Lc][None]
             + params['type_embed'][0][None, None])
    t_emb = (tx_emb + params['pos_embed'][Lc:Lc + Lt][None]
             + params['type_embed'][1][None, None])

    x = jnp.concatenate([c_emb, t_emb], axis=1)
    for p in params['layers']:
        x = encoder_layer(x, p, num_heads)

    test_enc = x[:, Lc:Lc + Lt]
    ctx_enc = x[:, :Lc]

    ca = params['cross_attn']
    q = dense(test_enc.reshape(B * Lt, H), ca['q_w'], ca['q_b']).reshape(B, Lt, H)
    kv = dense(ctx_enc.reshape(B * Lc, H), ca['kv_w'],
               ca['kv_b']).reshape(B, Lc, 2 * H)              # fused K|V proj
    attended = cross_attention_heads(q, kv, num_heads)        # heads merged

    # cross-attn out_proj fused into the output head kernel
    logits = output_head(attended.reshape(B * Lt, H), ca['o_w'], ca['o_b'],
                         params['out_head'])
    return logits.reshape(B, Lt, -1)


# --------------------------- Parameter initialization ------------------------

def init_params(key, max_input_dim, hidden_dim, num_layers, num_heads,
                max_len, max_classes):
    ffn = hidden_dim * 4
    keys = iter(jax.random.split(key, 256))

    def xavier(fan_in, fan_out):
        bound = math.sqrt(6.0 / (fan_in + fan_out))
        return jax.random.uniform(next(keys), (fan_in, fan_out),
                                  jnp.float32, -bound, bound)

    zeros = lambda *s: jnp.zeros(s, jnp.float32)
    ones = lambda *s: jnp.ones(s, jnp.float32)

    params = dict(
        feature_embed_w=xavier(max_input_dim, hidden_dim),
        feature_embed_b=zeros(hidden_dim),
        label_embed=0.02 * jax.random.normal(
            next(keys), (max_classes, hidden_dim), jnp.float32),
        pos_embed=jax.random.normal(next(keys), (max_len, hidden_dim),
                                    jnp.float32),
        type_embed=jax.random.normal(next(keys), (2, hidden_dim), jnp.float32),
        fn_g=ones(max_input_dim), fn_b=zeros(max_input_dim),
    )
    layers = []
    for _ in range(num_layers):
        layers.append(dict(
            in_w=xavier(hidden_dim, 3 * hidden_dim),   # fused [Wq | Wk | Wv]
            in_b=zeros(3 * hidden_dim),
            out_w=xavier(hidden_dim, hidden_dim), out_b=zeros(hidden_dim),
            ln1_g=ones(hidden_dim), ln1_b=zeros(hidden_dim),
            ff1_w=xavier(hidden_dim, ffn), ff1_b=zeros(ffn),
            ff2_w=xavier(ffn, hidden_dim), ff2_b=zeros(hidden_dim),
            ln2_g=ones(hidden_dim), ln2_b=zeros(hidden_dim),
        ))
    params['layers'] = layers
    # K and V projections stored pre-concatenated -> one fused [D, 2D] matmul.
    params['cross_attn'] = dict(
        q_w=xavier(hidden_dim, hidden_dim), q_b=zeros(hidden_dim),
        kv_w=jnp.concatenate([xavier(hidden_dim, hidden_dim),
                              xavier(hidden_dim, hidden_dim)], axis=1),
        kv_b=zeros(2 * hidden_dim),
        o_w=xavier(hidden_dim, hidden_dim), o_b=zeros(hidden_dim),
    )
    params['out_head'] = dict(
        ln_g=ones(hidden_dim), ln_b=zeros(hidden_dim),
        w1=xavier(hidden_dim, hidden_dim), b1=zeros(hidden_dim),
        w2=xavier(hidden_dim, hidden_dim // 2), b2=zeros(hidden_dim // 2),
        w3=xavier(hidden_dim // 2, max_classes), b3=zeros(max_classes),
    )
    return params


# ------------------------------------ Main -----------------------------------

if __name__ == "__main__":
    key = jax.random.PRNGKey(0)
    kp, kcx, kcy, ktx = jax.random.split(key, 4)

    # small synthetic config consistent with the module's forward
    max_input_dim, hidden_dim, num_layers, num_heads = 8, 32, 2, 4
    max_len, max_classes = 64, 5
    batch, context_len, test_len, feat_dim = 2, 8, 4, 4

    params = init_params(kp, max_input_dim, hidden_dim, num_layers, num_heads,
                         max_len, max_classes)
    context_x = jax.random.normal(kcx, (batch, context_len, feat_dim),
                                  jnp.float32)
    context_y = jax.random.randint(kcy, (batch, context_len), 0, max_classes)
    test_x = jax.random.normal(ktx, (batch, test_len, feat_dim), jnp.float32)

    fwd = jax.jit(functools.partial(tabpfn_forward, num_heads=num_heads))
    logits = fwd(params, context_x, context_y, test_x)
    jax.block_until_ready(logits)
    assert logits.shape == (batch, test_len, max_classes)
    assert bool(jnp.all(jnp.isfinite(logits)))
    print("KERNEL_OK")
</pallas_src>

<mosaic_0001>
module attributes {stable_mosaic.version = 11 : i64} {
  func.func @_norm_dense_kernel(%arg0: i32, %arg1: memref<16x8xf32, #tpu.memory_space<vmem>>, %arg2: memref<1x8xf32, #tpu.memory_space<vmem>>, %arg3: memref<1x8xf32, #tpu.memory_space<vmem>>, %arg4: memref<8x32xf32, #tpu.memory_space<vmem>>, %arg5: memref<1x32xf32, #tpu.memory_space<vmem>>, %arg6: memref<16x32xf32, #tpu.memory_space<vmem>>) attributes {dimension_semantics = [#tpu.dimension_semantics<parallel>], iteration_bounds = array<i64: 1>, scalar_prefetch = 0 : i64, scratch_operands = 0 : i64, tpu.core_type = #tpu.core_type<tc>, window_params = [{transform_indices = @transform_0, window_bounds = array<i64: 16, 8>}, {pipeline_mode = #tpu.pipeline_mode<synchronous>, transform_indices = @transform_1, window_bounds = array<i64: 1, 8>}, {pipeline_mode = #tpu.pipeline_mode<synchronous>, transform_indices = @transform_2, window_bounds = array<i64: 1, 8>}, {pipeline_mode = #tpu.pipeline_mode<synchronous>, transform_indices = @transform_3, window_bounds = array<i64: 8, 32>}, {pipeline_mode = #tpu.pipeline_mode<synchronous>, transform_indices = @transform_4, window_bounds = array<i64: 1, 32>}, {transform_indices = @transform_5, window_bounds = array<i64: 16, 32>}]} {
    %c0 = arith.constant 0 : index
    %c0_0 = arith.constant 0 : index
    %0 = vector.load %arg1[%c0, %c0_0] : memref<16x8xf32, #tpu.memory_space<vmem>>, vector<16x8xf32>
    %c0_1 = arith.constant 0 : index
    %c0_2 = arith.constant 0 : index
    %1 = vector.load %arg2[%c0_1, %c0_2] : memref<1x8xf32, #tpu.memory_space<vmem>>, vector<1x8xf32>
    %c0_3 = arith.constant 0 : index
    %c0_4 = arith.constant 0 : index
    %2 = vector.load %arg3[%c0_3, %c0_4] : memref<1x8xf32, #tpu.memory_space<vmem>>, vector<1x8xf32>
    %cst = arith.constant dense<0.000000e+00> : vector<16xf32>
    %3 = vector.multi_reduction <add>, %0, %cst [1] : vector<16x8xf32> to vector<16xf32>
    %4 = vector.shape_cast %3 : vector<16xf32> to vector<16x1xf32>
    %cst_5 = arith.constant 8.000000e+00 : f32
    %5 = vector.broadcast %cst_5 : f32 to vector<16x1xf32>
    %6 = arith.divf %4, %5 : vector<16x1xf32>
    %7 = vector.broadcast %6 : vector<16x1xf32> to vector<16x8xf32>
    %8 = arith.subf %0, %7 : vector<16x8xf32>
    %9 = arith.mulf %8, %8 : vector<16x8xf32>
    %cst_6 = arith.constant dense<0.000000e+00> : vector<16xf32>
    %10 = vector.multi_reduction <add>, %9, %cst_6 [1] : vector<16x8xf32> to vector<16xf32>
    %11 = vector.shape_cast %10 : vector<16xf32> to vector<16x1xf32>
    %cst_7 = arith.constant 8.000000e+00 : f32
    %12 = vector.broadcast %cst_7 : f32 to vector<16x1xf32>
    %13 = arith.divf %11, %12 : vector<16x1xf32>
    %14 = vector.broadcast %6 : vector<16x1xf32> to vector<16x8xf32>
    %15 = arith.subf %0, %14 : vector<16x8xf32>
    %cst_8 = arith.constant 9.99999974E-6 : f32
    %16 = vector.broadcast %cst_8 : f32 to vector<16x1xf32>
    %17 = arith.addf %13, %16 : vector<16x1xf32>
    %18 = math.rsqrt %17 : vector<16x1xf32>
    %19 = vector.broadcast %18 : vector<16x1xf32> to vector<16x8xf32>
    %20 = arith.mulf %15, %19 : vector<16x8xf32>
    %21 = vector.broadcast %1 : vector<1x8xf32> to vector<16x8xf32>
    %22 = arith.mulf %20, %21 : vector<16x8xf32>
    %23 = vector.broadcast %2 : vector<1x8xf32> to vector<16x8xf32>
    %24 = arith.addf %22, %23 : vector<16x8xf32>
    %c0_9 = arith.constant 0 : index
    %c0_10 = arith.constant 0 : index
    %25 = vector.load %arg4[%c0_9, %c0_10] : memref<8x32xf32, #tpu.memory_space<vmem>>, vector<8x32xf32>
    %26 = arith.truncf %24 : vector<16x8xf32> to vector<16x8xbf16>
    %27 = arith.truncf %25 : vector<8x32xf32> to vector<8x32xbf16>
    %cst_11 = arith.constant dense<0.000000e+00> : vector<16x32xf32>
    %28 = tpu.matmul %26, %27, %cst_11 {dimension_numbers = #tpu.dot_dimension_numbers<[1], [0], [0], [1], [0, 0, 1, 1], [], []>} : vector<16x8xbf16>, vector<8x32xbf16>, vector<16x32xf32> -> vector<16x32xf32>
    %c0_12 = arith.constant 0 : index
    %c0_13 = arith.constant 0 : index
    %29 = vector.load %arg5[%c0_12, %c0_13] : memref<1x32xf32, #tpu.memory_space<vmem>>, vector<1x32xf32>
    %30 = vector.broadcast %29 : vector<1x32xf32> to vector<16x32xf32>
    %31 = arith.addf %28, %30 : vector<16x32xf32>
    %c0_14 = arith.constant 0 : index
    %c0_15 = arith.constant 0 : index
    %32 = vector.load %arg6[%c0_14, %c0_15] : memref<16x32xf32, #tpu.memory_space<vmem>>, vector<16x32xf32>
    tpu.vector_store %arg6[%c0_14, %c0_15], %31 {strides = array<i32>} : memref<16x32xf32, #tpu.memory_space<vmem>>, vector<16x32xf32>,
    return
  }
  func.func @transform_0(%arg0: i32) -> (i32, i32) {
    %c0_i32 = arith.constant 0 : i32
    %c0_i32_0 = arith.constant 0 : i32
    return %arg0, %c0_i32 : i32, i32
  }
  func.func @transform_1(%arg0: i32) -> (i32, i32) {
    %c0_i32 = arith.constant 0 : i32
    %c0_i32_0 = arith.constant 0 : i32
    %c0_i32_1 = arith.constant 0 : i32
    return %c0_i32, %c0_i32_0 : i32, i32
  }
  func.func @transform_2(%arg0: i32) -> (i32, i32) {
    %c0_i32 = arith.constant 0 : i32
    %c0_i32_0 = arith.constant 0 : i32
    %c0_i32_1 = arith.constant 0 : i32
    return %c0_i32, %c0_i32_0 : i32, i32
  }
  func.func @transform_3(%arg0: i32) -> (i32, i32) {
    %c0_i32 = arith.constant 0 : i32
    %c0_i32_0 = arith.constant 0 : i32
    %c0_i32_1 = arith.constant 0 : i32
    return %c0_i32, %c0_i32_0 : i32, i32
  }
  func.func @transform_4(%arg0: i32) -> (i32, i32) {
    %c0_i32 = arith.constant 0 : i32
    %c0_i32_0 = arith.constant 0 : i32
    %c0_i32_1 = arith.constant 0 : i32
    return %c0_i32, %c0_i32_0 : i32, i32
  }
  func.func @transform_5(%arg0: i32) -> (i32, i32) {
    %c0_i32 = arith.constant 0 : i32
    %c0_i32_0 = arith.constant 0 : i32
    return %arg0, %c0_i32 : i32, i32
  }
}

module attributes {stable_mosaic.version = 11 : i64} {
  func.func @_dense_kernel(%arg0: i32, %arg1: memref<24x32xf32, #tpu.memory_space<vmem>>, %arg2: memref<32x96xf32, #tpu.memory_space<vmem>>, %arg3: memref<1x96xf32, #tpu.memory_space<vmem>>, %arg4: memref<24x96xf32, #tpu.memory_space<vmem>>) attributes {dimension_semantics = [#tpu.dimension_semantics<parallel>], iteration_bounds = array<i64: 1>, scalar_prefetch = 0 : i64, scratch_operands = 0 : i64, tpu.core_type = #tpu.core_type<tc>, window_params = [{transform_indices = @transform_0, window_bounds = array<i64: 24, 32>}, {pipeline_mode = #tpu.pipeline_mode<synchronous>, transform_indices = @transform_1, window_bounds = array<i64: 32, 96>}, {pipeline_mode = #tpu.pipeline_mode<synchronous>, transform_indices = @transform_2, window_bounds = array<i64: 1, 96>}, {transform_indices = @transform_3, window_bounds = array<i64: 24, 96>}]} {
    %c0 = arith.constant 0 : index
    %c0_0 = arith.constant 0 : index
    %0 = vector.load %arg1[%c0, %c0_0] : memref<24x32xf32, #tpu.memory_space<vmem>>, vector<24x32xf32>
    %c0_1 = arith.constant 0 : index
    %c0_2 = arith.constant 0 : index
    %1 = vector.load %arg2[%c0_1, %c0_2] : memref<32x96xf32, #tpu.memory_space<vmem>>, vector<32x96xf32>
    %2 = arith.truncf %0 : vector<24x32xf32> to vector<24x32xbf16>
    %3 = arith.truncf %1 : vector<32x96xf32> to vector<32x96xbf16>
    %cst = arith.constant dense<0.000000e+00> : vector<24x96xf32>
    %4 = tpu.matmul %2, %3, %cst {dimension_numbers = #tpu.dot_dimension_numbers<[1], [0], [0], [1], [0, 0, 1, 1], [], []>} : vector<24x32xbf16>, vector<32x96xbf16>, vector<24x96xf32> -> vector<24x96xf32>
    %c0_3 = arith.constant 0 : index
    %c0_4 = arith.constant 0 : index
    %5 = vector.load %arg3[%c0_3, %c0_4] : memref<1x96xf32, #tpu.memory_space<vmem>>, vector<1x96xf32>
    %6 = vector.broadcast %5 : vector<1x96xf32> to vector<24x96xf32>
    %7 = arith.addf %4, %6 : vector<24x96xf32>
    %c0_5 = arith.constant 0 : index
    %c0_6 = arith.constant 0 : index
    %8 = vector.load %arg4[%c0_5, %c0_6] : memref<24x96xf32, #tpu.memory_space<vmem>>, vector<24x96xf32>
    tpu.vector_store %arg4[%c0_5, %c0_6], %7 {strides = array<i32>} : memref<24x96xf32, #tpu.memory_space<vmem>>, vector<24x96xf32>,
    return
  }
  func.func @transform_0(%arg0: i32) -> (i32, i32) {
    %c0_i32 = arith.constant 0 : i32
    %c0_i32_0 = arith.constant 0 : i32
    return %arg0, %c0_i32 : i32, i32
  }
  func.func @transform_1(%arg0: i32) -> (i32, i32) {
    %c0_i32 = arith.constant 0 : i32
    %c0_i32_0 = arith.constant 0 : i32
    %c0_i32_1 = arith.constant 0 : i32
    return %c0_i32, %c0_i32_0 : i32, i32
  }
  func.func @transform_2(%arg0: i32) -> (i32, i32) {
    %c0_i32 = arith.constant 0 : i32
    %c0_i32_0 = arith.constant 0 : i32
    %c0_i32_1 = arith.constant 0 : i32
    return %c0_i32, %c0_i32_0 : i32, i32
  }
  func.func @transform_3(%arg0: i32) -> (i32, i32) {
    %c0_i32 = arith.constant 0 : i32
    %c0_i32_0 = arith.constant 0 : i32
    return %arg0, %c0_i32 : i32, i32
  }
}

module attributes {stable_mosaic.version = 11 : i64} {
  func.func @_norm_dense_kernel(%arg0: i32, %arg1: memref<8x8xf32, #tpu.memory_space<vmem>>, %arg2: memref<1x8xf32, #tpu.memory_space<vmem>>, %arg3: memref<1x8xf32, #tpu.memory_space<vmem>>, %arg4: memref<8x32xf32, #tpu.memory_space<vmem>>, %arg5: memref<1x32xf32, #tpu.memory_space<vmem>>, %arg6: memref<8x32xf32, #tpu.memory_space<vmem>>) attributes {dimension_semantics = [#tpu.dimension_semantics<parallel>], iteration_bounds = array<i64: 1>, scalar_prefetch = 0 : i64, scratch_operands = 0 : i64, tpu.core_type = #tpu.core_type<tc>, window_params = [{transform_indices = @transform_0, window_bounds = array<i64: 8, 8>}, {pipeline_mode = #tpu.pipeline_mode<synchronous>, transform_indices = @transform_1, window_bounds = array<i64: 1, 8>}, {pipeline_mode = #tpu.pipeline_mode<synchronous>, transform_indices = @transform_2, window_bounds = array<i64: 1, 8>}, {pipeline_mode = #tpu.pipeline_mode<synchronous>, transform_indices = @transform_3, window_bounds = array<i64: 8, 32>}, {pipeline_mode = #tpu.pipeline_mode<synchronous>, transform_indices = @transform_4, window_bounds = array<i64: 1, 32>}, {transform_indices = @transform_5, window_bounds = array<i64: 8, 32>}]} {
    %c0 = arith.constant 0 : index
    %c0_0 = arith.constant 0 : index
    %0 = vector.load %arg1[%c0, %c0_0] : memref<8x8xf32, #tpu.memory_space<vmem>>, vector<8x8xf32>
    %c0_1 = arith.constant 0 : index
    %c0_2 = arith.constant 0 : index
    %1 = vector.load %arg2[%c0_1, %c0_2] : memref<1x8xf32, #tpu.memory_space<vmem>>, vector<1x8xf32>
    %c0_3 = arith.constant 0 : index
    %c0_4 = arith.constant 0 : index
    %2 = vector.load %arg3[%c0_3, %c0_4] : memref<1x8xf32, #tpu.memory_space<vmem>>, vector<1x8xf32>
    %cst = arith.constant dense<0.000000e+00> : vector<8xf32>
    %3 = vector.multi_reduction <add>, %0, %cst [1] : vector<8x8xf32> to vector<8xf32>
    %4 = vector.shape_cast %3 : vector<8xf32> to vector<8x1xf32>
    %cst_5 = arith.constant 8.000000e+00 : f32
    %5 = vector.broadcast %cst_5 : f32 to vector<8x1xf32>
    %6 = arith.divf %4, %5 : vector<8x1xf32>
    %7 = vector.broadcast %6 : vector<8x1xf32> to vector<8x8xf32>
    %8 = arith.subf %0, %7 : vector<8x8xf32>
    %9 = arith.mulf %8, %8 : vector<8x8xf32>
    %cst_6 = arith.constant dense<0.000000e+00> : vector<8xf32>
    %10 = vector.multi_reduction <add>, %9, %cst_6 [1] : vector<8x8xf32> to vector<8xf32>
    %11 = vector.shape_cast %10 : vector<8xf32> to vector<8x1xf32>
    %cst_7 = arith.constant 8.000000e+00 : f32
    %12 = vector.broadcast %cst_7 : f32 to vector<8x1xf32>
    %13 = arith.divf %11, %12 : vector<8x1xf32>
    %14 = vector.broadcast %6 : vector<8x1xf32> to vector<8x8xf32>
    %15 = arith.subf %0, %14 : vector<8x8xf32>
    %cst_8 = arith.constant 9.99999974E-6 : f32
    %16 = vector.broadcast %cst_8 : f32 to vector<8x1xf32>
    %17 = arith.addf %13, %16 : vector<8x1xf32>
    %18 = math.rsqrt %17 : vector<8x1xf32>
    %19 = vector.broadcast %18 : vector<8x1xf32> to vector<8x8xf32>
    %20 = arith.mulf %15, %19 : vector<8x8xf32>
    %21 = vector.broadcast %1 : vector<1x8xf32> to vector<8x8xf32>
    %22 = arith.mulf %20, %21 : vector<8x8xf32>
    %23 = vector.broadcast %2 : vector<1x8xf32> to vector<8x8xf32>
    %24 = arith.addf %22, %23 : vector<8x8xf32>
    %c0_9 = arith.constant 0 : index
    %c0_10 = arith.constant 0 : index
    %25 = vector.load %arg4[%c0_9, %c0_10] : memref<8x32xf32, #tpu.memory_space<vmem>>, vector<8x32xf32>
    %26 = arith.truncf %24 : vector<8x8xf32> to vector<8x8xbf16>
    %27 = arith.truncf %25 : vector<8x32xf32> to vector<8x32xbf16>
    %cst_11 = arith.constant dense<0.000000e+00> : vector<8x32xf32>
    %28 = tpu.matmul %26, %27, %cst_11 {dimension_numbers = #tpu.dot_dimension_numbers<[1], [0], [0], [1], [0, 0, 1, 1], [], []>} : vector<8x8xbf16>, vector<8x32xbf16>, vector<8x32xf32> -> vector<8x32xf32>
    %c0_12 = arith.constant 0 : index
    %c0_13 = arith.constant 0 : index
    %29 = vector.load %arg5[%c0_12, %c0_13] : memref<1x32xf32, #tpu.memory_space<vmem>>, vector<1x32xf32>
    %30 = vector.broadcast %29 : vector<1x32xf32> to vector<8x32xf32>
    %31 = arith.addf %28, %30 : vector<8x32xf32>
    %c0_14 = arith.constant 0 : index
    %c0_15 = arith.constant 0 : index
    %32 = vector.load %arg6[%c0_14, %c0_15] : memref<8x32xf32, #tpu.memory_space<vmem>>, vector<8x32xf32>
    tpu.vector_store %arg6[%c0_14, %c0_15], %31 {strides = array<i32>} : memref<8x32xf32, #tpu.memory_space<vmem>>, vector<8x32xf32>,
    return
  }
  func.func @transform_0(%arg0: i32) -> (i32, i32) {
    %c0_i32 = arith.constant 0 : i32
    %c0_i32_0 = arith.constant 0 : i32
    return %arg0, %c0_i32 : i32, i32
  }
  func.func @transform_1(%arg0: i32) -> (i32, i32) {
    %c0_i32 = arith.constant 0 : i32
    %c0_i32_0 = arith.constant 0 : i32
    %c0_i32_1 = arith.constant 0 : i32
    return %c0_i32, %c0_i32_0 : i32, i32
  }
  func.func @transform_2(%arg0: i32) -> (i32, i32) {
    %c0_i32 = arith.constant 0 : i32
    %c0_i32_0 = arith.constant 0 : i32
    %c0_i32_1 = arith.constant 0 : i32
    return %c0_i32, %c0_i32_0 : i32, i32
  }
  func.func @transform_3(%arg0: i32) -> (i32, i32) {
    %c0_i32 = arith.constant 0 : i32
    %c0_i32_0 = arith.constant 0 : i32
    %c0_i32_1 = arith.constant 0 : i32
    return %c0_i32, %c0_i32_0 : i32, i32
  }
  func.func @transform_4(%arg0: i32) -> (i32, i32) {
    %c0_i32 = arith.constant 0 : i32
    %c0_i32_0 = arith.constant 0 : i32
    %c0_i32_1 = arith.constant 0 : i32
    return %c0_i32, %c0_i32_0 : i32, i32
  }
  func.func @transform_5(%arg0: i32) -> (i32, i32) {
    %c0_i32 = arith.constant 0 : i32
    %c0_i32_0 = arith.constant 0 : i32
    return %arg0, %c0_i32 : i32, i32
  }
}

module attributes {stable_mosaic.version = 11 : i64} {
  func.func @_self_attn_kernel(%arg0: i32, %arg1: memref<1x12x96xf32, #tpu.memory_space<vmem>>, %arg2: memref<1x12x32xf32, #tpu.memory_space<vmem>>) attributes {dimension_semantics = [#tpu.dimension_semantics<parallel>], iteration_bounds = array<i64: 2>, scalar_prefetch = 0 : i64, scratch_operands = 0 : i64, tpu.core_type = #tpu.core_type<tc>, window_params = [{transform_indices = @transform_0, window_bounds = array<i64: 1, 12, 96>}, {transform_indices = @transform_1, window_bounds = array<i64: 1, 12, 32>}]} {
    %c0 = arith.constant 0 : index
    %c0_0 = arith.constant 0 : index
    %c0_1 = arith.constant 0 : index
    %0 = vector.load %arg1[%c0, %c0_0, %c0_1] : memref<1x12x96xf32, #tpu.memory_space<vmem>>, vector<1x12x96xf32>
    %1 = vector.shape_cast %0 : vector<1x12x96xf32> to vector<12x96xf32>
    %2 = vector.extract_strided_slice %1 {offsets = [0, 0], sizes = [12, 32], strides = [1, 1]} : vector<12x96xf32> to vector<12x32xf32>
    %3 = vector.extract_strided_slice %1 {offsets = [0, 32], sizes = [12, 32], strides = [1, 1]} : vector<12x96xf32> to vector<12x32xf32>
    %4 = vector.extract_strided_slice %1 {offsets = [0, 64], sizes = [12, 32], strides = [1, 1]} : vector<12x96xf32> to vector<12x32xf32>
    %cst = arith.constant 0.353553385 : f32
    %5 = vector.broadcast %cst : f32 to vector<12x32xf32>
    %6 = arith.mulf %2, %5 : vector<12x32xf32>
    %7 = vector.extract_strided_slice %6 {offsets = [0, 0], sizes = [12, 8], strides = [1, 1]} : vector<12x32xf32> to vector<12x8xf32>
    %8 = arith.truncf %7 : vector<12x8xf32> to vector<12x8xbf16>
    %9 = vector.extract_strided_slice %3 {offsets = [0, 0], sizes = [12, 8], strides = [1, 1]} : vector<12x32xf32> to vector<12x8xf32>
    %10 = arith.truncf %9 : vector<12x8xf32> to vector<12x8xbf16>
    %11 = vector.extract_strided_slice %4 {offsets = [0, 0], sizes = [12, 8], strides = [1, 1]} : vector<12x32xf32> to vector<12x8xf32>
    %12 = arith.truncf %11 : vector<12x8xf32> to vector<12x8xbf16>
    %cst_2 = arith.constant dense<0.000000e+00> : vector<12x12xf32>
    %13 = tpu.matmul %8, %10, %cst_2 {dimension_numbers = #tpu.dot_dimension_numbers<[1], [1], [0], [0], [0, 0, 1, 0], [], []>} : vector<12x8xbf16>, vector<12x8xbf16>, vector<12x12xf32> -> vector<12x12xf32>
    %cst_3 = arith.constant dense<0xFF800000> : vector<12xf32>
    %14 = vector.multi_reduction <maximumf>, %13, %cst_3 [1] : vector<12x12xf32> to vector<12xf32>
    %15 = vector.shape_cast %14 : vector<12xf32> to vector<12x1xf32>
    %16 = vector.broadcast %15 : vector<12x1xf32> to vector<12x12xf32>
    %17 = arith.subf %13, %16 : vector<12x12xf32>
    %18 = math.exp %17 : vector<12x12xf32>
    %cst_4 = arith.constant dense<0.000000e+00> : vector<12xf32>
    %19 = vector.multi_reduction <add>, %18, %cst_4 [1] : vector<12x12xf32> to vector<12xf32>
    %20 = vector.shape_cast %19 : vector<12xf32> to vector<12x1xf32>
    %21 = tpu.reciprocal %20 {approx = true} : vector<12x1xf32> -> vector<12x1xf32>
    %22 = vector.broadcast %21 : vector<12x1xf32> to vector<12x12xf32>
    %23 = arith.mulf %18, %22 : vector<12x12xf32>
    %24 = arith.truncf %23 : vector<12x12xf32> to vector<12x12xbf16>
    %cst_5 = arith.constant dense<0.000000e+00> : vector<12x8xf32>
    %25 = tpu.matmul %24, %12, %cst_5 {dimension_numbers = #tpu.dot_dimension_numbers<[1], [0], [0], [1], [0, 0, 1, 1], [], []>} : vector<12x12xbf16>, vector<12x8xbf16>, vector<12x8xf32> -> vector<12x8xf32>
    %26 = vector.extract_strided_slice %6 {offsets = [0, 8], sizes = [12, 8], strides = [1, 1]} : vector<12x32xf32> to vector<12x8xf32>
    %27 = arith.truncf %26 : vector<12x8xf32> to vector<12x8xbf16>
    %28 = vector.extract_strided_slice %3 {offsets = [0, 8], sizes = [12, 8], strides = [1, 1]} : vector<12x32xf32> to vector<12x8xf32>
    %29 = arith.truncf %28 : vector<12x8xf32> to vector<12x8xbf16>
    %30 = vector.extract_strided_slice %4 {offsets = [0, 8], sizes = [12, 8], strides = [1, 1]} : vector<12x32xf32> to vector<12x8xf32>
    %31 = arith.truncf %30 : vector<12x8xf32> to vector<12x8xbf16>
    %cst_6 = arith.constant dense<0.000000e+00> : vector<12x12xf32>
    %32 = tpu.matmul %27, %29, %cst_6 {dimension_numbers = #tpu.dot_dimension_numbers<[1], [1], [0], [0], [0, 0, 1, 0], [], []>} : vector<12x8xbf16>, vector<12x8xbf16>, vector<12x12xf32> -> vector<12x12xf32>
    %cst_7 = arith.constant dense<0xFF800000> : vector<12xf32>
    %33 = vector.multi_reduction <maximumf>, %32, %cst_7 [1] : vector<12x12xf32> to vector<12xf32>
    %34 = vector.shape_cast %33 : vector<12xf32> to vector<12x1xf32>
    %35 = vector.broadcast %34 : vector<12x1xf32> to vector<12x12xf32>
    %36 = arith.subf %32, %35 : vector<12x12xf32>
    %37 = math.exp %36 : vector<12x12xf32>
    %cst_8 = arith.constant dense<0.000000e+00> : vector<12xf32>
    %38 = vector.multi_reduction <add>, %37, %cst_8 [1] : vector<12x12xf32> to vector<12xf32>
    %39 = vector.shape_cast %38 : vector<12xf32> to vector<12x1xf32>
    %40 = tpu.reciprocal %39 {approx = true} : vector<12x1xf32> -> vector<12x1xf32>
    %41 = vector.broadcast %40 : vector<12x1xf32> to vector<12x12xf32>
    %42 = arith.mulf %37, %41 : vector<12x12xf32>
    %43 = arith.truncf %42 : vector<12x12xf32> to vector<12x12xbf16>
    %cst_9 = arith.constant dense<0.000000e+00> : vector<12x8xf32>
    %44 = tpu.matmul %43, %31, %cst_9 {dimension_numbers = #tpu.dot_dimension_numbers<[1], [0], [0], [1], [0, 0, 1, 1], [], []>} : vector<12x12xbf16>, vector<12x8xbf16>, vector<12x8xf32> -> vector<12x8xf32>
    %45 = vector.extract_strided_slice %6 {offsets = [0, 16], sizes = [12, 8], strides = [1, 1]} : vector<12x32xf32> to vector<12x8xf32>
    %46 = arith.truncf %45 : vector<12x8xf32> to vector<12x8xbf16>
    %47 = vector.extract_strided_slice %3 {offsets = [0, 16], sizes = [12, 8], strides = [1, 1]} : vector<12x32xf32> to vector<12x8xf32>
    %48 = arith.truncf %47 : vector<12x8xf32> to vector<12x8xbf16>
    %49 = vector.extract_strided_slice %4 {offsets = [0, 16], sizes = [12, 8], strides = [1, 1]} : vector<12x32xf32> to vector<12x8xf32>
    %50 = arith.truncf %49 : vector<12x8xf32> to vector<12x8xbf16>
    %cst_10 = arith.constant dense<0.000000e+00> : vector<12x12xf32>
    %51 = tpu.matmul %46, %48, %cst_10 {dimension_numbers = #tpu.dot_dimension_numbers<[1], [1], [0], [0], [0, 0, 1, 0], [], []>} : vector<12x8xbf16>, vector<12x8xbf16>, vector<12x12xf32> -> vector<12x12xf32>
    %cst_11 = arith.constant dense<0xFF800000> : vector<12xf32>
    %52 = vector.multi_reduction <maximumf>, %51, %cst_11 [1] : vector<12x12xf32> to vector<12xf32>
    %53 = vector.shape_cast %52 : vector<12xf32> to vector<12x1xf32>
    %54 = vector.broadcast %53 : vector<12x1xf32> to vector<12x12xf32>
    %55 = arith.subf %51, %54 : vector<12x12xf32>
    %56 = math.exp %55 : vector<12x12xf32>
    %cst_12 = arith.constant dense<0.000000e+00> : vector<12xf32>
    %57 = vector.multi_reduction <add>, %56, %cst_12 [1] : vector<12x12xf32> to vector<12xf32>
    %58 = vector.shape_cast %57 : vector<12xf32> to vector<12x1xf32>
    %59 = tpu.reciprocal %58 {approx = true} : vector<12x1xf32> -> vector<12x1xf32>
    %60 = vector.broadcast %59 : vector<12x1xf32> to vector<12x12xf32>
    %61 = arith.mulf %56, %60 : vector<12x12xf32>
    %62 = arith.truncf %61 : vector<12x12xf32> to vector<12x12xbf16>
    %cst_13 = arith.constant dense<0.000000e+00> : vector<12x8xf32>
    %63 = tpu.matmul %62, %50, %cst_13 {dimension_numbers = #tpu.dot_dimension_numbers<[1], [0], [0], [1], [0, 0, 1, 1], [], []>} : vector<12x12xbf16>, vector<12x8xbf16>, vector<12x8xf32> -> vector<12x8xf32>
    %64 = vector.extract_strided_slice %6 {offsets = [0, 24], sizes = [12, 8], strides = [1, 1]} : vector<12x32xf32> to vector<12x8xf32>
    %65 = arith.truncf %64 : vector<12x8xf32> to vector<12x8xbf16>
    %66 = vector.extract_strided_slice %3 {offsets = [0, 24], sizes = [12, 8], strides = [1, 1]} : vector<12x32xf32> to vector<12x8xf32>
    %67 = arith.truncf %66 : vector<12x8xf32> to vector<12x8xbf16>
    %68 = vector.extract_strided_slice %4 {offsets = [0, 24], sizes = [12, 8], strides = [1, 1]} : vector<12x32xf32> to vector<12x8xf32>
    %69 = arith.truncf %68 : vector<12x8xf32> to vector<12x8xbf16>
    %cst_14 = arith.constant dense<0.000000e+00> : vector<12x12xf32>
    %70 = tpu.matmul %65, %67, %cst_14 {dimension_numbers = #tpu.dot_dimension_numbers<[1], [1], [0], [0], [0, 0, 1, 0], [], []>} : vector<12x8xbf16>, vector<12x8xbf16>, vector<12x12xf32> -> vector<12x12xf32>
    %cst_15 = arith.constant dense<0xFF800000> : vector<12xf32>
    %71 = vector.multi_reduction <maximumf>, %70, %cst_15 [1] : vector<12x12xf32> to vector<12xf32>
    %72 = vector.shape_cast %71 : vector<12xf32> to vector<12x1xf32>
    %73 = vector.broadcast %72 : vector<12x1xf32> to vector<12x12xf32>
    %74 = arith.subf %70, %73 : vector<12x12xf32>
    %75 = math.exp %74 : vector<12x12xf32>
    %cst_16 = arith.constant dense<0.000000e+00> : vector<12xf32>
    %76 = vector.multi_reduction <add>, %75, %cst_16 [1] : vector<12x12xf32> to vector<12xf32>
    %77 = vector.shape_cast %76 : vector<12xf32> to vector<12x1xf32>
    %78 = tpu.reciprocal %77 {approx = true} : vector<12x1xf32> -> vector<12x1xf32>
    %79 = vector.broadcast %78 : vector<12x1xf32> to vector<12x12xf32>
    %80 = arith.mulf %75, %79 : vector<12x12xf32>
    %81 = arith.truncf %80 : vector<12x12xf32> to vector<12x12xbf16>
    %cst_17 = arith.constant dense<0.000000e+00> : vector<12x8xf32>
    %82 = tpu.matmul %81, %69, %cst_17 {dimension_numbers = #tpu.dot_dimension_numbers<[1], [0], [0], [1], [0, 0, 1, 1], [], []>} : vector<12x12xbf16>, vector<12x8xbf16>, vector<12x8xf32> -> vector<12x8xf32>
    %c0_18 = arith.constant 0 : index
    %c0_19 = arith.constant 0 : index
    %c0_20 = arith.constant 0 : index
    %83 = vector.load %arg2[%c0_18, %c0_19, %c0_20] : memref<1x12x32xf32, #tpu.memory_space<vmem>>, vector<1x12x8xf32>
    %84 = vector.shape_cast %83 : vector<1x12x8xf32> to vector<12x8xf32>
    %85 = vector.shape_cast %25 : vector<12x8xf32> to vector<1x12x8xf32>
    tpu.vector_store %arg2[%c0_18, %c0_19, %c0_20], %85 {strides = array<i32>} : memref<1x12x32xf32, #tpu.memory_space<vmem>>, vector<1x12x8xf32>,
    %c0_21 = arith.constant 0 : index
    %c0_22 = arith.constant 0 : index
    %c8 = arith.constant 8 : index
    %86 = vector.load %arg2[%c0_21, %c0_22, %c8] : memref<1x12x32xf32, #tpu.memory_space<vmem>>, vector<1x12x8xf32>
    %87 = vector.shape_cast %86 : vector<1x12x8xf32> to vector<12x8xf32>
    %88 = vector.shape_cast %44 : vector<12x8xf32> to vector<1x12x8xf32>
    tpu.vector_store %arg2[%c0_21, %c0_22, %c8], %88 {strides = array<i32>} : memref<1x12x32xf32, #tpu.memory_space<vmem>>, vector<1x12x8xf32>,
    %c0_23 = arith.constant 0 : index
    %c0_24 = arith.constant 0 : index
    %c16 = arith.constant 16 : index
    %89 = vector.load %arg2[%c0_23, %c0_24, %c16] : memref<1x12x32xf32, #tpu.memory_space<vmem>>, vector<1x12x8xf32>
    %90 = vector.shape_cast %89 : vector<1x12x8xf32> to vector<12x8xf32>
    %91 = vector.shape_cast %63 : vector<12x8xf32> to vector<1x12x8xf32>
    tpu.vector_store %arg2[%c0_23, %c0_24, %c16], %91 {strides = array<i32>} : memref<1x12x32xf32, #tpu.memory_space<vmem>>, vector<1x12x8xf32>,
    %c0_25 = arith.constant 0 : index
    %c0_26 = arith.constant 0 : index
    %c24 = arith.constant 24 : index
    %92 = vector.load %arg2[%c0_25, %c0_26, %c24] : memref<1x12x32xf32, #tpu.memory_space<vmem>>, vector<1x12x8xf32>
    %93 = vector.shape_cast %92 : vector<1x12x8xf32> to vector<12x8xf32>
    %94 = vector.shape_cast %82 : vector<12x8xf32> to vector<1x12x8xf32>
    tpu.vector_store %arg2[%c0_25, %c0_26, %c24], %94 {strides = array<i32>} : memref<1x12x32xf32, #tpu.memory_space<vmem>>, vector<1x12x8xf32>,
    return
  }
  func.func @transform_0(%arg0: i32) -> (i32, i32, i32) {
    %c0_i32 = arith.constant 0 : i32
    %c0_i32_0 = arith.constant 0 : i32
    %c0_i32_1 = arith.constant 0 : i32
    return %arg0, %c0_i32, %c0_i32_0 : i32, i32, i32
  }
  func.func @transform_1(%arg0: i32) -> (i32, i32, i32) {
    %c0_i32 = arith.constant 0 : i32
    %c0_i32_0 = arith.constant 0 : i32
    %c0_i32_1 = arith.constant 0 : i32
    return %arg0, %c0_i32, %c0_i32_0 : i32, i32, i32
  }
}

module attributes {stable_mosaic.version = 11 : i64} {
  func.func @_proj_add_norm_kernel(%arg0: i32, %arg1: memref<24x32xf32, #tpu.memory_space<vmem>>, %arg2: memref<24x32xf32, #tpu.memory_space<vmem>>, %arg3: memref<32x32xf32, #tpu.memory_space<vmem>>, %arg4: memref<1x32xf32, #tpu.memory_space<vmem>>, %arg5: memref<1x32xf32, #tpu.memory_space<vmem>>, %arg6: memref<1x32xf32, #tpu.memory_space<vmem>>, %arg7: memref<24x32xf32, #tpu.memory_space<vmem>>) attributes {dimension_semantics = [#tpu.dimension_semantics<parallel>], iteration_bounds = array<i64: 1>, scalar_prefetch = 0 : i64, scratch_operands = 0 : i64, tpu.core_type = #tpu.core_type<tc>, window_params = [{transform_indices = @transform_0, window_bounds = array<i64: 24, 32>}, {transform_indices = @transform_1, window_bounds = array<i64: 24, 32>}, {pipeline_mode = #tpu.pipeline_mode<synchronous>, transform_indices = @transform_2, window_bounds = array<i64: 32, 32>}, {pipeline_mode = #tpu.pipeline_mode<synchronous>, transform_indices = @transform_3, window_bounds = array<i64: 1, 32>}, {pipeline_mode = #tpu.pipeline_mode<synchronous>, transform_indices = @transform_4, window_bounds = array<i64: 1, 32>}, {pipeline_mode = #tpu.pipeline_mode<synchronous>, transform_indices = @transform_5, window_bounds = array<i64: 1, 32>}, {transform_indices = @transform_6, window_bounds = array<i64: 24, 32>}]} {
    %c0 = arith.constant 0 : index
    %c0_0 = arith.constant 0 : index
    %0 = vector.load %arg2[%c0, %c0_0] : memref<24x32xf32, #tpu.memory_space<vmem>>, vector<24x32xf32>
    %c0_1 = arith.constant 0 : index
    %c0_2 = arith.constant 0 : index
    %1 = vector.load %arg1[%c0_1, %c0_2] : memref<24x32xf32, #tpu.memory_space<vmem>>, vector<24x32xf32>
    %c0_3 = arith.constant 0 : index
    %c0_4 = arith.constant 0 : index
    %2 = vector.load %arg3[%c0_3, %c0_4] : memref<32x32xf32, #tpu.memory_space<vmem>>, vector<32x32xf32>
    %3 = arith.truncf %1 : vector<24x32xf32> to vector<24x32xbf16>
    %4 = arith.truncf %2 : vector<32x32xf32> to vector<32x32xbf16>
    %cst = arith.constant dense<0.000000e+00> : vector<24x32xf32>
    %5 = tpu.matmul %3, %4, %cst {dimension_numbers = #tpu.dot_dimension_numbers<[1], [0], [0], [1], [0, 0, 1, 1], [], []>} : vector<24x32xbf16>, vector<32x32xbf16>, vector<24x32xf32> -> vector<24x32xf32>
    %6 = arith.addf %0, %5 : vector<24x32xf32>
    %c0_5 = arith.constant 0 : index
    %c0_6 = arith.constant 0 : index
    %7 = vector.load %arg4[%c0_5, %c0_6] : memref<1x32xf32, #tpu.memory_space<vmem>>, vector<1x32xf32>
    %8 = vector.broadcast %7 : vector<1x32xf32> to vector<24x32xf32>
    %9 = arith.addf %6, %8 : vector<24x32xf32>
    %c0_7 = arith.constant 0 : index
    %c0_8 = arith.constant 0 : index
    %10 = vector.load %arg5[%c0_7, %c0_8] : memref<1x32xf32, #tpu.memory_space<vmem>>, vector<1x32xf32>
    %c0_9 = arith.constant 0 : index
    %c0_10 = arith.constant 0 : index
    %11 = vector.load %arg6[%c0_9, %c0_10] : memref<1x32xf32, #tpu.memory_space<vmem>>, vector<1x32xf32>
    %cst_11 = arith.constant dense<0.000000e+00> : vector<24xf32>
    %12 = vector.multi_reduction <add>, %9, %cst_11 [1] : vector<24x32xf32> to vector<24xf32>
    %13 = vector.shape_cast %12 : vector<24xf32> to vector<24x1xf32>
    %cst_12 = arith.constant 3.200000e+01 : f32
    %14 = vector.broadcast %cst_12 : f32 to vector<24x1xf32>
    %15 = arith.divf %13, %14 : vector<24x1xf32>
    %16 = vector.broadcast %15 : vector<24x1xf32> to vector<24x32xf32>
    %17 = arith.subf %9, %16 : vector<24x32xf32>
    %18 = arith.mulf %17, %17 : vector<24x32xf32>
    %cst_13 = arith.constant dense<0.000000e+00> : vector<24xf32>
    %19 = vector.multi_reduction <add>, %18, %cst_13 [1] : vector<24x32xf32> to vector<24xf32>
    %20 = vector.shape_cast %19 : vector<24xf32> to vector<24x1xf32>
    %cst_14 = arith.constant 3.200000e+01 : f32
    %21 = vector.broadcast %cst_14 : f32 to vector<24x1xf32>
    %22 = arith.divf %20, %21 : vector<24x1xf32>
    %23 = vector.broadcast %15 : vector<24x1xf32> to vector<24x32xf32>
    %24 = arith.subf %9, %23 : vector<24x32xf32>
    %cst_15 = arith.constant 9.99999974E-6 : f32
    %25 = vector.broadcast %cst_15 : f32 to vector<24x1xf32>
    %26 = arith.addf %22, %25 : vector<24x1xf32>
    %27 = math.rsqrt %26 : vector<24x1xf32>
    %28 = vector.broadcast %27 : vector<24x1xf32> to vector<24x32xf32>
    %29 = arith.mulf %24, %28 : vector<24x32xf32>
    %30 = vector.broadcast %10 : vector<1x32xf32> to vector<24x32xf32>
    %31 = arith.mulf %29, %30 : vector<24x32xf32>
    %32 = vector.broadcast %11 : vector<1x32xf32> to vector<24x32xf32>
    %33 = arith.addf %31, %32 : vector<24x32xf32>
    %c0_16 = arith.constant 0 : index
    %c0_17 = arith.constant 0 : index
    %34 = vector.load %arg7[%c0_16, %c0_17] : memref<24x32xf32, #tpu.memory_space<vmem>>, vector<24x32xf32>
    tpu.vector_store %arg7[%c0_16, %c0_17], %33 {strides = array<i32>} : memref<24x32xf32, #tpu.memory_space<vmem>>, vector<24x32xf32>,
    return
  }
  func.func @transform_0(%arg0: i32) -> (i32, i32) {
    %c0_i32 = arith.constant 0 : i32
    %c0_i32_0 = arith.constant 0 : i32
    return %arg0, %c0_i32 : i32, i32
  }
  func.func @transform_1(%arg0: i32) -> (i32, i32) {
    %c0_i32 = arith.constant 0 : i32
    %c0_i32_0 = arith.constant 0 : i32
    return %arg0, %c0_i32 : i32, i32
  }
  func.func @transform_2(%arg0: i32) -> (i32, i32) {
    %c0_i32 = arith.constant 0 : i32
    %c0_i32_0 = arith.constant 0 : i32
    %c0_i32_1 = arith.constant 0 : i32
    return %c0_i32, %c0_i32_0 : i32, i32
  }
  func.func @transform_3(%arg0: i32) -> (i32, i32) {
    %c0_i32 = arith.constant 0 : i32
    %c0_i32_0 = arith.constant 0 : i32
    %c0_i32_1 = arith.constant 0 : i32
    return %c0_i32, %c0_i32_0 : i32, i32
  }
  func.func @transform_4(%arg0: i32) -> (i32, i32) {
    %c0_i32 = arith.constant 0 : i32
    %c0_i32_0 = arith.constant 0 : i32
    %c0_i32_1 = arith.constant 0 : i32
    return %c0_i32, %c0_i32_0 : i32, i32
  }
  func.func @transform_5(%arg0: i32) -> (i32, i32) {
    %c0_i32 = arith.constant 0 : i32
    %c0_i32_0 = arith.constant 0 : i32
    %c0_i32_1 = arith.constant 0 : i32
    return %c0_i32, %c0_i32_0 : i32, i32
  }
  func.func @transform_6(%arg0: i32) -> (i32, i32) {
    %c0_i32 = arith.constant 0 : i32
    %c0_i32_0 = arith.constant 0 : i32
    return %arg0, %c0_i32 : i32, i32
  }
}

module attributes {stable_mosaic.version = 11 : i64} {
  func.func @_ffn_add_norm_kernel(%arg0: i32, %arg1: memref<24x32xf32, #tpu.memory_space<vmem>>, %arg2: memref<32x128xf32, #tpu.memory_space<vmem>>, %arg3: memref<1x128xf32, #tpu.memory_space<vmem>>, %arg4: memref<128x32xf32, #tpu.memory_space<vmem>>, %arg5: memref<1x32xf32, #tpu.memory_space<vmem>>, %arg6: memref<1x32xf32, #tpu.memory_space<vmem>>, %arg7: memref<1x32xf32, #tpu.memory_space<vmem>>, %arg8: memref<24x32xf32, #tpu.memory_space<vmem>>) attributes {dimension_semantics = [#tpu.dimension_semantics<parallel>], iteration_bounds = array<i64: 1>, scalar_prefetch = 0 : i64, scratch_operands = 0 : i64, tpu.core_type = #tpu.core_type<tc>, window_params = [{transform_indices = @transform_0, window_bounds = array<i64: 24, 32>}, {pipeline_mode = #tpu.pipeline_mode<synchronous>, transform_indices = @transform_1, window_bounds = array<i64: 32, 128>}, {pipeline_mode = #tpu.pipeline_mode<synchronous>, transform_indices = @transform_2, window_bounds = array<i64: 1, 128>}, {pipeline_mode = #tpu.pipeline_mode<synchronous>, transform_indices = @transform_3, window_bounds = array<i64: 128, 32>}, {pipeline_mode = #tpu.pipeline_mode<synchronous>, transform_indices = @transform_4, window_bounds = array<i64: 1, 32>}, {pipeline_mode = #tpu.pipeline_mode<synchronous>, transform_indices = @transform_5, window_bounds = array<i64: 1, 32>}, {pipeline_mode = #tpu.pipeline_mode<synchronous>, transform_indices = @transform_6, window_bounds = array<i64: 1, 32>}, {transform_indices = @transform_7, window_bounds = array<i64: 24, 32>}]} {
    %c0 = arith.constant 0 : index
    %c0_0 = arith.constant 0 : index
    %0 = vector.load %arg1[%c0, %c0_0] : memref<24x32xf32, #tpu.memory_space<vmem>>, vector<24x32xf32>
    %c0_1 = arith.constant 0 : index
    %c0_2 = arith.constant 0 : index
    %1 = vector.load %arg2[%c0_1, %c0_2] : memref<32x128xf32, #tpu.memory_space<vmem>>, vector<32x128xf32>
    %2 = arith.truncf %0 : vector<24x32xf32> to vector<24x32xbf16>
    %3 = arith.truncf %1 : vector<32x128xf32> to vector<32x128xbf16>
    %cst = arith.constant dense<0.000000e+00> : vector<24x128xf32>
    %4 = tpu.matmul %2, %3, %cst {dimension_numbers = #tpu.dot_dimension_numbers<[1], [0], [0], [1], [0, 0, 1, 1], [], []>} : vector<24x32xbf16>, vector<32x128xbf16>, vector<24x128xf32> -> vector<24x128xf32>
    %c0_3 = arith.constant 0 : index
    %c0_4 = arith.constant 0 : index
    %5 = vector.load %arg3[%c0_3, %c0_4] : memref<1x128xf32, #tpu.memory_space<vmem>>, vector<1x128xf32>
    %6 = vector.broadcast %5 : vector<1x128xf32> to vector<24x128xf32>
    %7 = arith.addf %4, %6 : vector<24x128xf32>
    %cst_5 = arith.constant 5.000000e-01 : f32
    %8 = vector.broadcast %cst_5 : f32 to vector<24x128xf32>
    %9 = arith.mulf %8, %7 : vector<24x128xf32>
    %cst_6 = arith.constant 0.707106769 : f32
    %10 = vector.broadcast %cst_6 : f32 to vector<24x128xf32>
    %11 = arith.mulf %7, %10 : vector<24x128xf32>
    %12 = math.absf %11 : vector<24x128xf32>
    %cst_7 = arith.constant 0.327591091 : f32
    %13 = vector.broadcast %cst_7 : f32 to vector<24x128xf32>
    %14 = arith.mulf %13, %12 : vector<24x128xf32>
    %cst_8 = arith.constant 1.000000e+00 : f32
    %15 = vector.broadcast %cst_8 : f32 to vector<24x128xf32>
    %16 = arith.addf %15, %14 : vector<24x128xf32>
    %cst_9 = arith.constant 1.000000e+00 : f32
    %17 = vector.broadcast %cst_9 : f32 to vector<24x128xf32>
    %18 = arith.divf %17, %16 : vector<24x128xf32>
    %cst_10 = arith.constant 1.06140542 : f32
    %19 = vector.broadcast %cst_10 : f32 to vector<24x128xf32>
    %20 = arith.mulf %19, %18 : vector<24x128xf32>
    %cst_11 = arith.constant -1.45315206 : f32
    %21 = vector.broadcast %cst_11 : f32 to vector<24x128xf32>
    %22 = arith.addf %20, %21 : vector<24x128xf32>
    %23 = arith.mulf %22, %18 : vector<24x128xf32>
    %cst_12 = arith.constant 1.42141378 : f32
    %24 = vector.broadcast %cst_12 : f32 to vector<24x128xf32>
    %25 = arith.addf %23, %24 : vector<24x128xf32>
    %26 = arith.mulf %25, %18 : vector<24x128xf32>
    %cst_13 = arith.constant -0.284496725 : f32
    %27 = vector.broadcast %cst_13 : f32 to vector<24x128xf32>
    %28 = arith.addf %26, %27 : vector<24x128xf32>
    %29 = arith.mulf %28, %18 : vector<24x128xf32>
    %cst_14 = arith.constant 0.254829586 : f32
    %30 = vector.broadcast %cst_14 : f32 to vector<24x128xf32>
    %31 = arith.addf %29, %30 : vector<24x128xf32>
    %32 = arith.mulf %31, %18 : vector<24x128xf32>
    %cst_15 = arith.constant 0.000000e+00 : f32
    %33 = vector.broadcast %cst_15 : f32 to vector<24x128xf32>
    %34 = arith.subf %33, %12 : vector<24x128xf32>
    %35 = arith.mulf %34, %12 : vector<24x128xf32>
    %36 = math.exp %35 : vector<24x128xf32>
    %37 = arith.mulf %32, %36 : vector<24x128xf32>
    %cst_16 = arith.constant 1.000000e+00 : f32
    %38 = vector.broadcast %cst_16 : f32 to vector<24x128xf32>
    %39 = arith.subf %38, %37 : vector<24x128xf32>
    %cst_17 = arith.constant 0.000000e+00 : f32
    %40 = vector.broadcast %cst_17 : f32 to vector<24x128xf32>
    %41 = arith.cmpf oge, %11, %40 : vector<24x128xf32>
    %cst_18 = arith.constant 0.000000e+00 : f32
    %42 = vector.broadcast %cst_18 : f32 to vector<24x128xf32>
    %43 = arith.subf %42, %39 : vector<24x128xf32>
    %44 = arith.select %41, %39, %43 : vector<24x128xi1>, vector<24x128xf32>
    %cst_19 = arith.constant 1.000000e+00 : f32
    %45 = vector.broadcast %cst_19 : f32 to vector<24x128xf32>
    %46 = arith.addf %45, %44 : vector<24x128xf32>
    %47 = arith.mulf %9, %46 : vector<24x128xf32>
    %c0_20 = arith.constant 0 : index
    %c0_21 = arith.constant 0 : index
    %48 = vector.load %arg4[%c0_20, %c0_21] : memref<128x32xf32, #tpu.memory_space<vmem>>, vector<128x32xf32>
    %49 = arith.truncf %47 : vector<24x128xf32> to vector<24x128xbf16>
    %50 = arith.truncf %48 : vector<128x32xf32> to vector<128x32xbf16>
    %cst_22 = arith.constant dense<0.000000e+00> : vector<24x32xf32>
    %51 = tpu.matmul %49, %50, %cst_22 {dimension_numbers = #tpu.dot_dimension_numbers<[1], [0], [0], [1], [0, 0, 1, 1], [], []>} : vector<24x128xbf16>, vector<128x32xbf16>, vector<24x32xf32> -> vector<24x32xf32>
    %52 = arith.addf %0, %51 : vector<24x32xf32>
    %c0_23 = arith.constant 0 : index
    %c0_24 = arith.constant 0 : index
    %53 = vector.load %arg5[%c0_23, %c0_24] : memref<1x32xf32, #tpu.memory_space<vmem>>, vector<1x32xf32>
    %54 = vector.broadcast %53 : vector<1x32xf32> to vector<24x32xf32>
    %55 = arith.addf %52, %54 : vector<24x32xf32>
    %c0_25 = arith.constant 0 : index
    %c0_26 = arith.constant 0 : index
    %56 = vector.load %arg6[%c0_25, %c0_26] : memref<1x32xf32, #tpu.memory_space<vmem>>, vector<1x32xf32>
    %c0_27 = arith.constant 0 : index
    %c0_28 = arith.constant 0 : index
    %57 = vector.load %arg7[%c0_27, %c0_28] : memref<1x32xf32, #tpu.memory_space<vmem>>, vector<1x32xf32>
    %cst_29 = arith.constant dense<0.000000e+00> : vector<24xf32>
    %58 = vector.multi_reduction <add>, %55, %cst_29 [1] : vector<24x32xf32> to vector<24xf32>
    %59 = vector.shape_cast %58 : vector<24xf32> to vector<24x1xf32>
    %cst_30 = arith.constant 3.200000e+01 : f32
    %60 = vector.broadcast %cst_30 : f32 to vector<24x1xf32>
    %61 = arith.divf %59, %60 : vector<24x1xf32>
    %62 = vector.broadcast %61 : vector<24x1xf32> to vector<24x32xf32>
    %63 = arith.subf %55, %62 : vector<24x32xf32>
    %64 = arith.mulf %63, %63 : vector<24x32xf32>
    %cst_31 = arith.constant dense<0.000000e+00> : vector<24xf32>
    %65 = vector.multi_reduction <add>, %64, %cst_31 [1] : vector<24x32xf32> to vector<24xf32>
    %66 = vector.shape_cast %65 : vector<24xf32> to vector<24x1xf32>
    %cst_32 = arith.constant 3.200000e+01 : f32
    %67 = vector.broadcast %cst_32 : f32 to vector<24x1xf32>
    %68 = arith.divf %66, %67 : vector<24x1xf32>
    %69 = vector.broadcast %61 : vector<24x1xf32> to vector<24x32xf32>
    %70 = arith.subf %55, %69 : vector<24x32xf32>
    %cst_33 = arith.constant 9.99999974E-6 : f32
    %71 = vector.broadcast %cst_33 : f32 to vector<24x1xf32>
    %72 = arith.addf %68, %71 : vector<24x1xf32>
    %73 = math.rsqrt %72 : vector<24x1xf32>
    %74 = vector.broadcast %73 : vector<24x1xf32> to vector<24x32xf32>
    %75 = arith.mulf %70, %74 : vector<24x32xf32>
    %76 = vector.broadcast %56 : vector<1x32xf32> to vector<24x32xf32>
    %77 = arith.mulf %75, %76 : vector<24x32xf32>
    %78 = vector.broadcast %57 : vector<1x32xf32> to vector<24x32xf32>
    %79 = arith.addf %77, %78 : vector<24x32xf32>
    %c0_34 = arith.constant 0 : index
    %c0_35 = arith.constant 0 : index
    %80 = vector.load %arg8[%c0_34, %c0_35] : memref<24x32xf32, #tpu.memory_space<vmem>>, vector<24x32xf32>
    tpu.vector_store %arg8[%c0_34, %c0_35], %79 {strides = array<i32>} : memref<24x32xf32, #tpu.memory_space<vmem>>, vector<24x32xf32>,
    return
  }
  func.func @transform_0(%arg0: i32) -> (i32, i32) {
    %c0_i32 = arith.constant 0 : i32
    %c0_i32_0 = arith.constant 0 : i32
    return %arg0, %c0_i32 : i32, i32
  }
  func.func @transform_1(%arg0: i32) -> (i32, i32) {
    %c0_i32 = arith.constant 0 : i32
    %c0_i32_0 = arith.constant 0 : i32
    %c0_i32_1 = arith.constant 0 : i32
    return %c0_i32, %c0_i32_0 : i32, i32
  }
  func.func @transform_2(%arg0: i32) -> (i32, i32) {
    %c0_i32 = arith.constant 0 : i32
    %c0_i32_0 = arith.constant 0 : i32
    %c0_i32_1 = arith.constant 0 : i32
    return %c0_i32, %c0_i32_0 : i32, i32
  }
  func.func @transform_3(%arg0: i32) -> (i32, i32) {
    %c0_i32 = arith.constant 0 : i32
    %c0_i32_0 = arith.constant 0 : i32
    %c0_i32_1 = arith.constant 0 : i32
    return %c0_i32, %c0_i32_0 : i32, i32
  }
  func.func @transform_4(%arg0: i32) -> (i32, i32) {
    %c0_i32 = arith.constant 0 : i32
    %c0_i32_0 = arith.constant 0 : i32
    %c0_i32_1 = arith.constant 0 : i32
    return %c0_i32, %c0_i32_0 : i32, i32
  }
  func.func @transform_5(%arg0: i32) -> (i32, i32) {
    %c0_i32 = arith.constant 0 : i32
    %c0_i32_0 = arith.constant 0 : i32
    %c0_i32_1 = arith.constant 0 : i32
    return %c0_i32, %c0_i32_0 : i32, i32
  }
  func.func @transform_6(%arg0: i32) -> (i32, i32) {
    %c0_i32 = arith.constant 0 : i32
    %c0_i32_0 = arith.constant 0 : i32
    %c0_i32_1 = arith.constant 0 : i32
    return %c0_i32, %c0_i32_0 : i32, i32
  }
  func.func @transform_7(%arg0: i32) -> (i32, i32) {
    %c0_i32 = arith.constant 0 : i32
    %c0_i32_0 = arith.constant 0 : i32
    return %arg0, %c0_i32 : i32, i32
  }
}

module attributes {stable_mosaic.version = 11 : i64} {
  func.func @_dense_kernel(%arg0: i32, %arg1: memref<16x32xf32, #tpu.memory_space<vmem>>, %arg2: memref<32x64xf32, #tpu.memory_space<vmem>>, %arg3: memref<1x64xf32, #tpu.memory_space<vmem>>, %arg4: memref<16x64xf32, #tpu.memory_space<vmem>>) attributes {dimension_semantics = [#tpu.dimension_semantics<parallel>], iteration_bounds = array<i64: 1>, scalar_prefetch = 0 : i64, scratch_operands = 0 : i64, tpu.core_type = #tpu.core_type<tc>, window_params = [{transform_indices = @transform_0, window_bounds = array<i64: 16, 32>}, {pipeline_mode = #tpu.pipeline_mode<synchronous>, transform_indices = @transform_1, window_bounds = array<i64: 32, 64>}, {pipeline_mode = #tpu.pipeline_mode<synchronous>, transform_indices = @transform_2, window_bounds = array<i64: 1, 64>}, {transform_indices = @transform_3, window_bounds = array<i64: 16, 64>}]} {
    %c0 = arith.constant 0 : index
    %c0_0 = arith.constant 0 : index
    %0 = vector.load %arg1[%c0, %c0_0] : memref<16x32xf32, #tpu.memory_space<vmem>>, vector<16x32xf32>
    %c0_1 = arith.constant 0 : index
    %c0_2 = arith.constant 0 : index
    %1 = vector.load %arg2[%c0_1, %c0_2] : memref<32x64xf32, #tpu.memory_space<vmem>>, vector<32x64xf32>
    %2 = arith.truncf %0 : vector<16x32xf32> to vector<16x32xbf16>
    %3 = arith.truncf %1 : vector<32x64xf32> to vector<32x64xbf16>
    %cst = arith.constant dense<0.000000e+00> : vector<16x64xf32>
    %4 = tpu.matmul %2, %3, %cst {dimension_numbers = #tpu.dot_dimension_numbers<[1], [0], [0], [1], [0, 0, 1, 1], [], []>} : vector<16x32xbf16>, vector<32x64xbf16>, vector<16x64xf32> -> vector<16x64xf32>
    %c0_3 = arith.constant 0 : index
    %c0_4 = arith.constant 0 : index
    %5 = vector.load %arg3[%c0_3, %c0_4] : memref<1x64xf32, #tpu.memory_space<vmem>>, vector<1x64xf32>
    %6 = vector.broadcast %5 : vector<1x64xf32> to vector<16x64xf32>
    %7 = arith.addf %4, %6 : vector<16x64xf32>
    %c0_5 = arith.constant 0 : index
    %c0_6 = arith.constant 0 : index
    %8 = vector.load %arg4[%c0_5, %c0_6] : memref<16x64xf32, #tpu.memory_space<vmem>>, vector<16x64xf32>
    tpu.vector_store %arg4[%c0_5, %c0_6], %7 {strides = array<i32>} : memref<16x64xf32, #tpu.memory_space<vmem>>, vector<16x64xf32>,
    return
  }
  func.func @transform_0(%arg0: i32) -> (i32, i32) {
    %c0_i32 = arith.constant 0 : i32
    %c0_i32_0 = arith.constant 0 : i32
    return %arg0, %c0_i32 : i32, i32
  }
  func.func @transform_1(%arg0: i32) -> (i32, i32) {
    %c0_i32 = arith.constant 0 : i32
    %c0_i32_0 = arith.constant 0 : i32
    %c0_i32_1 = arith.constant 0 : i32
    return %c0_i32, %c0_i32_0 : i32, i32
  }
  func.func @transform_2(%arg0: i32) -> (i32, i32) {
    %c0_i32 = arith.constant 0 : i32
    %c0_i32_0 = arith.constant 0 : i32
    %c0_i32_1 = arith.constant 0 : i32
    return %c0_i32, %c0_i32_0 : i32, i32
  }
  func.func @transform_3(%arg0: i32) -> (i32, i32) {
    %c0_i32 = arith.constant 0 : i32
    %c0_i32_0 = arith.constant 0 : i32
    return %arg0, %c0_i32 : i32, i32
  }
}

module attributes {stable_mosaic.version = 11 : i64} {
  func.func @_dense_kernel(%arg0: i32, %arg1: memref<8x32xf32, #tpu.memory_space<vmem>>, %arg2: memref<32x32xf32, #tpu.memory_space<vmem>>, %arg3: memref<1x32xf32, #tpu.memory_space<vmem>>, %arg4: memref<8x32xf32, #tpu.memory_space<vmem>>) attributes {dimension_semantics = [#tpu.dimension_semantics<parallel>], iteration_bounds = array<i64: 1>, scalar_prefetch = 0 : i64, scratch_operands = 0 : i64, tpu.core_type = #tpu.core_type<tc>, window_params = [{transform_indices = @transform_0, window_bounds = array<i64: 8, 32>}, {pipeline_mode = #tpu.pipeline_mode<synchronous>, transform_indices = @transform_1, window_bounds = array<i64: 32, 32>}, {pipeline_mode = #tpu.pipeline_mode<synchronous>, transform_indices = @transform_2, window_bounds = array<i64: 1, 32>}, {transform_indices = @transform_3, window_bounds = array<i64: 8, 32>}]} {
    %c0 = arith.constant 0 : index
    %c0_0 = arith.constant 0 : index
    %0 = vector.load %arg1[%c0, %c0_0] : memref<8x32xf32, #tpu.memory_space<vmem>>, vector<8x32xf32>
    %c0_1 = arith.constant 0 : index
    %c0_2 = arith.constant 0 : index
    %1 = vector.load %arg2[%c0_1, %c0_2] : memref<32x32xf32, #tpu.memory_space<vmem>>, vector<32x32xf32>
    %2 = arith.truncf %0 : vector<8x32xf32> to vector<8x32xbf16>
    %3 = arith.truncf %1 : vector<32x32xf32> to vector<32x32xbf16>
    %cst = arith.constant dense<0.000000e+00> : vector<8x32xf32>
    %4 = tpu.matmul %2, %3, %cst {dimension_numbers = #tpu.dot_dimension_numbers<[1], [0], [0], [1], [0, 0, 1, 1], [], []>} : vector<8x32xbf16>, vector<32x32xbf16>, vector<8x32xf32> -> vector<8x32xf32>
    %c0_3 = arith.constant 0 : index
    %c0_4 = arith.constant 0 : index
    %5 = vector.load %arg3[%c0_3, %c0_4] : memref<1x32xf32, #tpu.memory_space<vmem>>, vector<1x32xf32>
    %6 = vector.broadcast %5 : vector<1x32xf32> to vector<8x32xf32>
    %7 = arith.addf %4, %6 : vector<8x32xf32>
    %c0_5 = arith.constant 0 : index
    %c0_6 = arith.constant 0 : index
    %8 = vector.load %arg4[%c0_5, %c0_6] : memref<8x32xf32, #tpu.memory_space<vmem>>, vector<8x32xf32>
    tpu.vector_store %arg4[%c0_5, %c0_6], %7 {strides = array<i32>} : memref<8x32xf32, #tpu.memory_space<vmem>>, vector<8x32xf32>,
    return
  }
  func.func @transform_0(%arg0: i32) -> (i32, i32) {
    %c0_i32 = arith.constant 0 : i32
    %c0_i32_0 = arith.constant 0 : i32
    return %arg0, %c0_i32 : i32, i32
  }
  func.func @transform_1(%arg0: i32) -> (i32, i32) {
    %c0_i32 = arith.constant 0 : i32
    %c0_i32_0 = arith.constant 0 : i32
    %c0_i32_1 = arith.constant 0 : i32
    return %c0_i32, %c0_i32_0 : i32, i32
  }
  func.func @transform_2(%arg0: i32) -> (i32, i32) {
    %c0_i32 = arith.constant 0 : i32
    %c0_i32_0 = arith.constant 0 : i32
    %c0_i32_1 = arith.constant 0 : i32
    return %c0_i32, %c0_i32_0 : i32, i32
  }
  func.func @transform_3(%arg0: i32) -> (i32, i32) {
    %c0_i32 = arith.constant 0 : i32
    %c0_i32_0 = arith.constant 0 : i32
    return %arg0, %c0_i32 : i32, i32
  }
}

module attributes {stable_mosaic.version = 11 : i64} {
  func.func @_cross_attn_kernel(%arg0: i32, %arg1: memref<1x4x32xf32, #tpu.memory_space<vmem>>, %arg2: memref<1x8x64xf32, #tpu.memory_space<vmem>>, %arg3: memref<1x4x32xf32, #tpu.memory_space<vmem>>) attributes {dimension_semantics = [#tpu.dimension_semantics<parallel>], iteration_bounds = array<i64: 2>, scalar_prefetch = 0 : i64, scratch_operands = 0 : i64, tpu.core_type = #tpu.core_type<tc>, window_params = [{transform_indices = @transform_0, window_bounds = array<i64: 1, 4, 32>}, {transform_indices = @transform_1, window_bounds = array<i64: 1, 8, 64>}, {transform_indices = @transform_2, window_bounds = array<i64: 1, 4, 32>}]} {
    %c0 = arith.constant 0 : index
    %c0_0 = arith.constant 0 : index
    %c0_1 = arith.constant 0 : index
    %0 = vector.load %arg1[%c0, %c0_0, %c0_1] : memref<1x4x32xf32, #tpu.memory_space<vmem>>, vector<1x4x32xf32>
    %1 = vector.shape_cast %0 : vector<1x4x32xf32> to vector<4x32xf32>
    %c0_2 = arith.constant 0 : index
    %c0_3 = arith.constant 0 : index
    %c0_4 = arith.constant 0 : index
    %2 = vector.load %arg2[%c0_2, %c0_3, %c0_4] : memref<1x8x64xf32, #tpu.memory_space<vmem>>, vector<1x8x64xf32>
    %3 = vector.shape_cast %2 : vector<1x8x64xf32> to vector<8x64xf32>
    %4 = vector.extract_strided_slice %3 {offsets = [0, 0], sizes = [8, 32], strides = [1, 1]} : vector<8x64xf32> to vector<8x32xf32>
    %5 = vector.extract_strided_slice %3 {offsets = [0, 32], sizes = [8, 32], strides = [1, 1]} : vector<8x64xf32> to vector<8x32xf32>
    %cst = arith.constant 0.353553385 : f32
    %6 = vector.broadcast %cst : f32 to vector<4x32xf32>
    %7 = arith.mulf %1, %6 : vector<4x32xf32>
    %8 = vector.extract_strided_slice %7 {offsets = [0, 0], sizes = [4, 8], strides = [1, 1]} : vector<4x32xf32> to vector<4x8xf32>
    %9 = arith.truncf %8 : vector<4x8xf32> to vector<4x8xbf16>
    %10 = vector.extract_strided_slice %4 {offsets = [0, 0], sizes = [8, 8], strides = [1, 1]} : vector<8x32xf32> to vector<8x8xf32>
    %11 = arith.truncf %10 : vector<8x8xf32> to vector<8x8xbf16>
    %12 = vector.extract_strided_slice %5 {offsets = [0, 0], sizes = [8, 8], strides = [1, 1]} : vector<8x32xf32> to vector<8x8xf32>
    %13 = arith.truncf %12 : vector<8x8xf32> to vector<8x8xbf16>
    %cst_5 = arith.constant dense<0.000000e+00> : vector<4x8xf32>
    %14 = tpu.matmul %9, %11, %cst_5 {dimension_numbers = #tpu.dot_dimension_numbers<[1], [1], [0], [0], [0, 0, 1, 0], [], []>} : vector<4x8xbf16>, vector<8x8xbf16>, vector<4x8xf32> -> vector<4x8xf32>
    %cst_6 = arith.constant dense<0xFF800000> : vector<4xf32>
    %15 = vector.multi_reduction <maximumf>, %14, %cst_6 [1] : vector<4x8xf32> to vector<4xf32>
    %16 = vector.shape_cast %15 : vector<4xf32> to vector<4x1xf32>
    %17 = vector.broadcast %16 : vector<4x1xf32> to vector<4x8xf32>
    %18 = arith.subf %14, %17 : vector<4x8xf32>
    %19 = math.exp %18 : vector<4x8xf32>
    %cst_7 = arith.constant dense<0.000000e+00> : vector<4xf32>
    %20 = vector.multi_reduction <add>, %19, %cst_7 [1] : vector<4x8xf32> to vector<4xf32>
    %21 = vector.shape_cast %20 : vector<4xf32> to vector<4x1xf32>
    %22 = tpu.reciprocal %21 {approx = true} : vector<4x1xf32> -> vector<4x1xf32>
    %23 = vector.broadcast %22 : vector<4x1xf32> to vector<4x8xf32>
    %24 = arith.mulf %19, %23 : vector<4x8xf32>
    %25 = arith.truncf %24 : vector<4x8xf32> to vector<4x8xbf16>
    %cst_8 = arith.constant dense<0.000000e+00> : vector<4x8xf32>
    %26 = tpu.matmul %25, %13, %cst_8 {dimension_numbers = #tpu.dot_dimension_numbers<[1], [0], [0], [1], [0, 0, 1, 1], [], []>} : vector<4x8xbf16>, vector<8x8xbf16>, vector<4x8xf32> -> vector<4x8xf32>
    %27 = vector.extract_strided_slice %7 {offsets = [0, 8], sizes = [4, 8], strides = [1, 1]} : vector<4x32xf32> to vector<4x8xf32>
    %28 = arith.truncf %27 : vector<4x8xf32> to vector<4x8xbf16>
    %29 = vector.extract_strided_slice %4 {offsets = [0, 8], sizes = [8, 8], strides = [1, 1]} : vector<8x32xf32> to vector<8x8xf32>
    %30 = arith.truncf %29 : vector<8x8xf32> to vector<8x8xbf16>
    %31 = vector.extract_strided_slice %5 {offsets = [0, 8], sizes = [8, 8], strides = [1, 1]} : vector<8x32xf32> to vector<8x8xf32>
    %32 = arith.truncf %31 : vector<8x8xf32> to vector<8x8xbf16>
    %cst_9 = arith.constant dense<0.000000e+00> : vector<4x8xf32>
    %33 = tpu.matmul %28, %30, %cst_9 {dimension_numbers = #tpu.dot_dimension_numbers<[1], [1], [0], [0], [0, 0, 1, 0], [], []>} : vector<4x8xbf16>, vector<8x8xbf16>, vector<4x8xf32> -> vector<4x8xf32>
    %cst_10 = arith.constant dense<0xFF800000> : vector<4xf32>
    %34 = vector.multi_reduction <maximumf>, %33, %cst_10 [1] : vector<4x8xf32> to vector<4xf32>
    %35 = vector.shape_cast %34 : vector<4xf32> to vector<4x1xf32>
    %36 = vector.broadcast %35 : vector<4x1xf32> to vector<4x8xf32>
    %37 = arith.subf %33, %36 : vector<4x8xf32>
    %38 = math.exp %37 : vector<4x8xf32>
    %cst_11 = arith.constant dense<0.000000e+00> : vector<4xf32>
    %39 = vector.multi_reduction <add>, %38, %cst_11 [1] : vector<4x8xf32> to vector<4xf32>
    %40 = vector.shape_cast %39 : vector<4xf32> to vector<4x1xf32>
    %41 = tpu.reciprocal %40 {approx = true} : vector<4x1xf32> -> vector<4x1xf32>
    %42 = vector.broadcast %41 : vector<4x1xf32> to vector<4x8xf32>
    %43 = arith.mulf %38, %42 : vector<4x8xf32>
    %44 = arith.truncf %43 : vector<4x8xf32> to vector<4x8xbf16>
    %cst_12 = arith.constant dense<0.000000e+00> : vector<4x8xf32>
    %45 = tpu.matmul %44, %32, %cst_12 {dimension_numbers = #tpu.dot_dimension_numbers<[1], [0], [0], [1], [0, 0, 1, 1], [], []>} : vector<4x8xbf16>, vector<8x8xbf16>, vector<4x8xf32> -> vector<4x8xf32>
    %46 = vector.extract_strided_slice %7 {offsets = [0, 16], sizes = [4, 8], strides = [1, 1]} : vector<4x32xf32> to vector<4x8xf32>
    %47 = arith.truncf %46 : vector<4x8xf32> to vector<4x8xbf16>
    %48 = vector.extract_strided_slice %4 {offsets = [0, 16], sizes = [8, 8], strides = [1, 1]} : vector<8x32xf32> to vector<8x8xf32>
    %49 = arith.truncf %48 : vector<8x8xf32> to vector<8x8xbf16>
    %50 = vector.extract_strided_slice %5 {offsets = [0, 16], sizes = [8, 8], strides = [1, 1]} : vector<8x32xf32> to vector<8x8xf32>
    %51 = arith.truncf %50 : vector<8x8xf32> to vector<8x8xbf16>
    %cst_13 = arith.constant dense<0.000000e+00> : vector<4x8xf32>
    %52 = tpu.matmul %47, %49, %cst_13 {dimension_numbers = #tpu.dot_dimension_numbers<[1], [1], [0], [0], [0, 0, 1, 0], [], []>} : vector<4x8xbf16>, vector<8x8xbf16>, vector<4x8xf32> -> vector<4x8xf32>
    %cst_14 = arith.constant dense<0xFF800000> : vector<4xf32>
    %53 = vector.multi_reduction <maximumf>, %52, %cst_14 [1] : vector<4x8xf32> to vector<4xf32>
    %54 = vector.shape_cast %53 : vector<4xf32> to vector<4x1xf32>
    %55 = vector.broadcast %54 : vector<4x1xf32> to vector<4x8xf32>
    %56 = arith.subf %52, %55 : vector<4x8xf32>
    %57 = math.exp %56 : vector<4x8xf32>
    %cst_15 = arith.constant dense<0.000000e+00> : vector<4xf32>
    %58 = vector.multi_reduction <add>, %57, %cst_15 [1] : vector<4x8xf32> to vector<4xf32>
    %59 = vector.shape_cast %58 : vector<4xf32> to vector<4x1xf32>
    %60 = tpu.reciprocal %59 {approx = true} : vector<4x1xf32> -> vector<4x1xf32>
    %61 = vector.broadcast %60 : vector<4x1xf32> to vector<4x8xf32>
    %62 = arith.mulf %57, %61 : vector<4x8xf32>
    %63 = arith.truncf %62 : vector<4x8xf32> to vector<4x8xbf16>
    %cst_16 = arith.constant dense<0.000000e+00> : vector<4x8xf32>
    %64 = tpu.matmul %63, %51, %cst_16 {dimension_numbers = #tpu.dot_dimension_numbers<[1], [0], [0], [1], [0, 0, 1, 1], [], []>} : vector<4x8xbf16>, vector<8x8xbf16>, vector<4x8xf32> -> vector<4x8xf32>
    %65 = vector.extract_strided_slice %7 {offsets = [0, 24], sizes = [4, 8], strides = [1, 1]} : vector<4x32xf32> to vector<4x8xf32>
    %66 = arith.truncf %65 : vector<4x8xf32> to vector<4x8xbf16>
    %67 = vector.extract_strided_slice %4 {offsets = [0, 24], sizes = [8, 8], strides = [1, 1]} : vector<8x32xf32> to vector<8x8xf32>
    %68 = arith.truncf %67 : vector<8x8xf32> to vector<8x8xbf16>
    %69 = vector.extract_strided_slice %5 {offsets = [0, 24], sizes = [8, 8], strides = [1, 1]} : vector<8x32xf32> to vector<8x8xf32>
    %70 = arith.truncf %69 : vector<8x8xf32> to vector<8x8xbf16>
    %cst_17 = arith.constant dense<0.000000e+00> : vector<4x8xf32>
    %71 = tpu.matmul %66, %68, %cst_17 {dimension_numbers = #tpu.dot_dimension_numbers<[1], [1], [0], [0], [0, 0, 1, 0], [], []>} : vector<4x8xbf16>, vector<8x8xbf16>, vector<4x8xf32> -> vector<4x8xf32>
    %cst_18 = arith.constant dense<0xFF800000> : vector<4xf32>
    %72 = vector.multi_reduction <maximumf>, %71, %cst_18 [1] : vector<4x8xf32> to vector<4xf32>
    %73 = vector.shape_cast %72 : vector<4xf32> to vector<4x1xf32>
    %74 = vector.broadcast %73 : vector<4x1xf32> to vector<4x8xf32>
    %75 = arith.subf %71, %74 : vector<4x8xf32>
    %76 = math.exp %75 : vector<4x8xf32>
    %cst_19 = arith.constant dense<0.000000e+00> : vector<4xf32>
    %77 = vector.multi_reduction <add>, %76, %cst_19 [1] : vector<4x8xf32> to vector<4xf32>
    %78 = vector.shape_cast %77 : vector<4xf32> to vector<4x1xf32>
    %79 = tpu.reciprocal %78 {approx = true} : vector<4x1xf32> -> vector<4x1xf32>
    %80 = vector.broadcast %79 : vector<4x1xf32> to vector<4x8xf32>
    %81 = arith.mulf %76, %80 : vector<4x8xf32>
    %82 = arith.truncf %81 : vector<4x8xf32> to vector<4x8xbf16>
    %cst_20 = arith.constant dense<0.000000e+00> : vector<4x8xf32>
    %83 = tpu.matmul %82, %70, %cst_20 {dimension_numbers = #tpu.dot_dimension_numbers<[1], [0], [0], [1], [0, 0, 1, 1], [], []>} : vector<4x8xbf16>, vector<8x8xbf16>, vector<4x8xf32> -> vector<4x8xf32>
    %c0_21 = arith.constant 0 : index
    %c0_22 = arith.constant 0 : index
    %c0_23 = arith.constant 0 : index
    %84 = vector.load %arg3[%c0_21, %c0_22, %c0_23] : memref<1x4x32xf32, #tpu.memory_space<vmem>>, vector<1x4x8xf32>
    %85 = vector.shape_cast %84 : vector<1x4x8xf32> to vector<4x8xf32>
    %86 = vector.shape_cast %26 : vector<4x8xf32> to vector<1x4x8xf32>
    tpu.vector_store %arg3[%c0_21, %c0_22, %c0_23], %86 {strides = array<i32>} : memref<1x4x32xf32, #tpu.memory_space<vmem>>, vector<1x4x8xf32>,
    %c0_24 = arith.constant 0 : index
    %c0_25 = arith.constant 0 : index
    %c8 = arith.constant 8 : index
    %87 = vector.load %arg3[%c0_24, %c0_25, %c8] : memref<1x4x32xf32, #tpu.memory_space<vmem>>, vector<1x4x8xf32>
    %88 = vector.shape_cast %87 : vector<1x4x8xf32> to vector<4x8xf32>
    %89 = vector.shape_cast %45 : vector<4x8xf32> to vector<1x4x8xf32>
    tpu.vector_store %arg3[%c0_24, %c0_25, %c8], %89 {strides = array<i32>} : memref<1x4x32xf32, #tpu.memory_space<vmem>>, vector<1x4x8xf32>,
    %c0_26 = arith.constant 0 : index
    %c0_27 = arith.constant 0 : index
    %c16 = arith.constant 16 : index
    %90 = vector.load %arg3[%c0_26, %c0_27, %c16] : memref<1x4x32xf32, #tpu.memory_space<vmem>>, vector<1x4x8xf32>
    %91 = vector.shape_cast %90 : vector<1x4x8xf32> to vector<4x8xf32>
    %92 = vector.shape_cast %64 : vector<4x8xf32> to vector<1x4x8xf32>
    tpu.vector_store %arg3[%c0_26, %c0_27, %c16], %92 {strides = array<i32>} : memref<1x4x32xf32, #tpu.memory_space<vmem>>, vector<1x4x8xf32>,
    %c0_28 = arith.constant 0 : index
    %c0_29 = arith.constant 0 : index
    %c24 = arith.constant 24 : index
    %93 = vector.load %arg3[%c0_28, %c0_29, %c24] : memref<1x4x32xf32, #tpu.memory_space<vmem>>, vector<1x4x8xf32>
    %94 = vector.shape_cast %93 : vector<1x4x8xf32> to vector<4x8xf32>
    %95 = vector.shape_cast %83 : vector<4x8xf32> to vector<1x4x8xf32>
    tpu.vector_store %arg3[%c0_28, %c0_29, %c24], %95 {strides = array<i32>} : memref<1x4x32xf32, #tpu.memory_space<vmem>>, vector<1x4x8xf32>,
    return
  }
  func.func @transform_0(%arg0: i32) -> (i32, i32, i32) {
    %c0_i32 = arith.constant 0 : i32
    %c0_i32_0 = arith.constant 0 : i32
    %c0_i32_1 = arith.constant 0 : i32
    return %arg0, %c0_i32, %c0_i32_0 : i32, i32, i32
  }
  func.func @transform_1(%arg0: i32) -> (i32, i32, i32) {
    %c0_i32 = arith.constant 0 : i32
    %c0_i32_0 = arith.constant 0 : i32
    %c0_i32_1 = arith.constant 0 : i32
    return %arg0, %c0_i32, %c0_i32_0 : i32, i32, i32
  }
  func.func @transform_2(%arg0: i32) -> (i32, i32, i32) {
    %c0_i32 = arith.constant 0 : i32
    %c0_i32_0 = arith.constant 0 : i32
    %c0_i32_1 = arith.constant 0 : i32
    return %arg0, %c0_i32, %c0_i32_0 : i32, i32, i32
  }
}

module attributes {stable_mosaic.version = 11 : i64} {
  func.func @_head_kernel(%arg0: i32, %arg1: memref<8x32xf32, #tpu.memory_space<vmem>>, %arg2: memref<32x32xf32, #tpu.memory_space<vmem>>, %arg3: memref<1x32xf32, #tpu.memory_space<vmem>>, %arg4: memref<1x32xf32, #tpu.memory_space<vmem>>, %arg5: memref<1x32xf32, #tpu.memory_space<vmem>>, %arg6: memref<32x32xf32, #tpu.memory_space<vmem>>, %arg7: memref<1x32xf32, #tpu.memory_space<vmem>>, %arg8: memref<32x16xf32, #tpu.memory_space<vmem>>, %arg9: memref<1x16xf32, #tpu.memory_space<vmem>>, %arg10: memref<16x5xf32, #tpu.memory_space<vmem>>, %arg11: memref<1x5xf32, #tpu.memory_space<vmem>>, %arg12: memref<8x5xf32, #tpu.memory_space<vmem>>) attributes {dimension_semantics = [#tpu.dimension_semantics<parallel>], iteration_bounds = array<i64: 1>, scalar_prefetch = 0 : i64, scratch_operands = 0 : i64, tpu.core_type = #tpu.core_type<tc>, window_params = [{transform_indices = @transform_0, window_bounds = array<i64: 8, 32>}, {pipeline_mode = #tpu.pipeline_mode<synchronous>, transform_indices = @transform_1, window_bounds = array<i64: 32, 32>}, {pipeline_mode = #tpu.pipeline_mode<synchronous>, transform_indices = @transform_2, window_bounds = array<i64: 1, 32>}, {pipeline_mode = #tpu.pipeline_mode<synchronous>, transform_indices = @transform_3, window_bounds = array<i64: 1, 32>}, {pipeline_mode = #tpu.pipeline_mode<synchronous>, transform_indices = @transform_4, window_bounds = array<i64: 1, 32>}, {pipeline_mode = #tpu.pipeline_mode<synchronous>, transform_indices = @transform_5, window_bounds = array<i64: 32, 32>}, {pipeline_mode = #tpu.pipeline_mode<synchronous>, transform_indices = @transform_6, window_bounds = array<i64: 1, 32>}, {pipeline_mode = #tpu.pipeline_mode<synchronous>, transform_indices = @transform_7, window_bounds = array<i64: 32, 16>}, {pipeline_mode = #tpu.pipeline_mode<synchronous>, transform_indices = @transform_8, window_bounds = array<i64: 1, 16>}, {pipeline_mode = #tpu.pipeline_mode<synchronous>, transform_indices = @transform_9, window_bounds = array<i64: 16, 5>}, {pipeline_mode = #tpu.pipeline_mode<synchronous>, transform_indices = @transform_10, window_bounds = array<i64: 1, 5>}, {transform_indices = @transform_11, window_bounds = array<i64: 8, 5>}]} {
    %c0 = arith.constant 0 : index
    %c0_0 = arith.constant 0 : index
    %0 = vector.load %arg1[%c0, %c0_0] : memref<8x32xf32, #tpu.memory_space<vmem>>, vector<8x32xf32>
    %c0_1 = arith.constant 0 : index
    %c0_2 = arith.constant 0 : index
    %1 = vector.load %arg2[%c0_1, %c0_2] : memref<32x32xf32, #tpu.memory_space<vmem>>, vector<32x32xf32>
    %2 = arith.truncf %0 : vector<8x32xf32> to vector<8x32xbf16>
    %3 = arith.truncf %1 : vector<32x32xf32> to vector<32x32xbf16>
    %cst = arith.constant dense<0.000000e+00> : vector<8x32xf32>
    %4 = tpu.matmul %2, %3, %cst {dimension_numbers = #tpu.dot_dimension_numbers<[1], [0], [0], [1], [0, 0, 1, 1], [], []>} : vector<8x32xbf16>, vector<32x32xbf16>, vector<8x32xf32> -> vector<8x32xf32>
    %c0_3 = arith.constant 0 : index
    %c0_4 = arith.constant 0 : index
    %5 = vector.load %arg3[%c0_3, %c0_4] : memref<1x32xf32, #tpu.memory_space<vmem>>, vector<1x32xf32>
    %6 = vector.broadcast %5 : vector<1x32xf32> to vector<8x32xf32>
    %7 = arith.addf %4, %6 : vector<8x32xf32>
    %c0_5 = arith.constant 0 : index
    %c0_6 = arith.constant 0 : index
    %8 = vector.load %arg4[%c0_5, %c0_6] : memref<1x32xf32, #tpu.memory_space<vmem>>, vector<1x32xf32>
    %c0_7 = arith.constant 0 : index
    %c0_8 = arith.constant 0 : index
    %9 = vector.load %arg5[%c0_7, %c0_8] : memref<1x32xf32, #tpu.memory_space<vmem>>, vector<1x32xf32>
    %cst_9 = arith.constant dense<0.000000e+00> : vector<8xf32>
    %10 = vector.multi_reduction <add>, %7, %cst_9 [1] : vector<8x32xf32> to vector<8xf32>
    %11 = vector.shape_cast %10 : vector<8xf32> to vector<8x1xf32>
    %cst_10 = arith.constant 3.200000e+01 : f32
    %12 = vector.broadcast %cst_10 : f32 to vector<8x1xf32>
    %13 = arith.divf %11, %12 : vector<8x1xf32>
    %14 = vector.broadcast %13 : vector<8x1xf32> to vector<8x32xf32>
    %15 = arith.subf %7, %14 : vector<8x32xf32>
    %16 = arith.mulf %15, %15 : vector<8x32xf32>
    %cst_11 = arith.constant dense<0.000000e+00> : vector<8xf32>
    %17 = vector.multi_reduction <add>, %16, %cst_11 [1] : vector<8x32xf32> to vector<8xf32>
    %18 = vector.shape_cast %17 : vector<8xf32> to vector<8x1xf32>
    %cst_12 = arith.constant 3.200000e+01 : f32
    %19 = vector.broadcast %cst_12 : f32 to vector<8x1xf32>
    %20 = arith.divf %18, %19 : vector<8x1xf32>
    %21 = vector.broadcast %13 : vector<8x1xf32> to vector<8x32xf32>
    %22 = arith.subf %7, %21 : vector<8x32xf32>
    %cst_13 = arith.constant 9.99999974E-6 : f32
    %23 = vector.broadcast %cst_13 : f32 to vector<8x1xf32>
    %24 = arith.addf %20, %23 : vector<8x1xf32>
    %25 = math.rsqrt %24 : vector<8x1xf32>
    %26 = vector.broadcast %25 : vector<8x1xf32> to vector<8x32xf32>
    %27 = arith.mulf %22, %26 : vector<8x32xf32>
    %28 = vector.broadcast %8 : vector<1x32xf32> to vector<8x32xf32>
    %29 = arith.mulf %27, %28 : vector<8x32xf32>
    %30 = vector.broadcast %9 : vector<1x32xf32> to vector<8x32xf32>
    %31 = arith.addf %29, %30 : vector<8x32xf32>
    %c0_14 = arith.constant 0 : index
    %c0_15 = arith.constant 0 : index
    %32 = vector.load %arg6[%c0_14, %c0_15] : memref<32x32xf32, #tpu.memory_space<vmem>>, vector<32x32xf32>
    %33 = arith.truncf %31 : vector<8x32xf32> to vector<8x32xbf16>
    %34 = arith.truncf %32 : vector<32x32xf32> to vector<32x32xbf16>
    %cst_16 = arith.constant dense<0.000000e+00> : vector<8x32xf32>
    %35 = tpu.matmul %33, %34, %cst_16 {dimension_numbers = #tpu.dot_dimension_numbers<[1], [0], [0], [1], [0, 0, 1, 1], [], []>} : vector<8x32xbf16>, vector<32x32xbf16>, vector<8x32xf32> -> vector<8x32xf32>
    %c0_17 = arith.constant 0 : index
    %c0_18 = arith.constant 0 : index
    %36 = vector.load %arg7[%c0_17, %c0_18] : memref<1x32xf32, #tpu.memory_space<vmem>>, vector<1x32xf32>
    %37 = vector.broadcast %36 : vector<1x32xf32> to vector<8x32xf32>
    %38 = arith.addf %35, %37 : vector<8x32xf32>
    %cst_19 = arith.constant 5.000000e-01 : f32
    %39 = vector.broadcast %cst_19 : f32 to vector<8x32xf32>
    %40 = arith.mulf %39, %38 : vector<8x32xf32>
    %cst_20 = arith.constant 0.707106769 : f32
    %41 = vector.broadcast %cst_20 : f32 to vector<8x32xf32>
    %42 = arith.mulf %38, %41 : vector<8x32xf32>
    %43 = math.absf %42 : vector<8x32xf32>
    %cst_21 = arith.constant 0.327591091 : f32
    %44 = vector.broadcast %cst_21 : f32 to vector<8x32xf32>
    %45 = arith.mulf %44, %43 : vector<8x32xf32>
    %cst_22 = arith.constant 1.000000e+00 : f32
    %46 = vector.broadcast %cst_22 : f32 to vector<8x32xf32>
    %47 = arith.addf %46, %45 : vector<8x32xf32>
    %cst_23 = arith.constant 1.000000e+00 : f32
    %48 = vector.broadcast %cst_23 : f32 to vector<8x32xf32>
    %49 = arith.divf %48, %47 : vector<8x32xf32>
    %cst_24 = arith.constant 1.06140542 : f32
    %50 = vector.broadcast %cst_24 : f32 to vector<8x32xf32>
    %51 = arith.mulf %50, %49 : vector<8x32xf32>
    %cst_25 = arith.constant -1.45315206 : f32
    %52 = vector.broadcast %cst_25 : f32 to vector<8x32xf32>
    %53 = arith.addf %51, %52 : vector<8x32xf32>
    %54 = arith.mulf %53, %49 : vector<8x32xf32>
    %cst_26 = arith.constant 1.42141378 : f32
    %55 = vector.broadcast %cst_26 : f32 to vector<8x32xf32>
    %56 = arith.addf %54, %55 : vector<8x32xf32>
    %57 = arith.mulf %56, %49 : vector<8x32xf32>
    %cst_27 = arith.constant -0.284496725 : f32
    %58 = vector.broadcast %cst_27 : f32 to vector<8x32xf32>
    %59 = arith.addf %57, %58 : vector<8x32xf32>
    %60 = arith.mulf %59, %49 : vector<8x32xf32>
    %cst_28 = arith.constant 0.254829586 : f32
    %61 = vector.broadcast %cst_28 : f32 to vector<8x32xf32>
    %62 = arith.addf %60, %61 : vector<8x32xf32>
    %63 = arith.mulf %62, %49 : vector<8x32xf32>
    %cst_29 = arith.constant 0.000000e+00 : f32
    %64 = vector.broadcast %cst_29 : f32 to vector<8x32xf32>
    %65 = arith.subf %64, %43 : vector<8x32xf32>
    %66 = arith.mulf %65, %43 : vector<8x32xf32>
    %67 = math.exp %66 : vector<8x32xf32>
    %68 = arith.mulf %63, %67 : vector<8x32xf32>
    %cst_30 = arith.constant 1.000000e+00 : f32
    %69 = vector.broadcast %cst_30 : f32 to vector<8x32xf32>
    %70 = arith.subf %69, %68 : vector<8x32xf32>
    %cst_31 = arith.constant 0.000000e+00 : f32
    %71 = vector.broadcast %cst_31 : f32 to vector<8x32xf32>
    %72 = arith.cmpf oge, %42, %71 : vector<8x32xf32>
    %cst_32 = arith.constant 0.000000e+00 : f32
    %73 = vector.broadcast %cst_32 : f32 to vector<8x32xf32>
    %74 = arith.subf %73, %70 : vector<8x32xf32>
    %75 = arith.select %72, %70, %74 : vector<8x32xi1>, vector<8x32xf32>
    %cst_33 = arith.constant 1.000000e+00 : f32
    %76 = vector.broadcast %cst_33 : f32 to vector<8x32xf32>
    %77 = arith.addf %76, %75 : vector<8x32xf32>
    %78 = arith.mulf %40, %77 : vector<8x32xf32>
    %c0_34 = arith.constant 0 : index
    %c0_35 = arith.constant 0 : index
    %79 = vector.load %arg8[%c0_34, %c0_35] : memref<32x16xf32, #tpu.memory_space<vmem>>, vector<32x16xf32>
    %80 = arith.truncf %78 : vector<8x32xf32> to vector<8x32xbf16>
    %81 = arith.truncf %79 : vector<32x16xf32> to vector<32x16xbf16>
    %cst_36 = arith.constant dense<0.000000e+00> : vector<8x16xf32>
    %82 = tpu.matmul %80, %81, %cst_36 {dimension_numbers = #tpu.dot_dimension_numbers<[1], [0], [0], [1], [0, 0, 1, 1], [], []>} : vector<8x32xbf16>, vector<32x16xbf16>, vector<8x16xf32> -> vector<8x16xf32>
    %c0_37 = arith.constant 0 : index
    %c0_38 = arith.constant 0 : index
    %83 = vector.load %arg9[%c0_37, %c0_38] : memref<1x16xf32, #tpu.memory_space<vmem>>, vector<1x16xf32>
    %84 = vector.broadcast %83 : vector<1x16xf32> to vector<8x16xf32>
    %85 = arith.addf %82, %84 : vector<8x16xf32>
    %cst_39 = arith.constant 5.000000e-01 : f32
    %86 = vector.broadcast %cst_39 : f32 to vector<8x16xf32>
    %87 = arith.mulf %86, %85 : vector<8x16xf32>
    %cst_40 = arith.constant 0.707106769 : f32
    %88 = vector.broadcast %cst_40 : f32 to vector<8x16xf32>
    %89 = arith.mulf %85, %88 : vector<8x16xf32>
    %90 = math.absf %89 : vector<8x16xf32>
    %cst_41 = arith.constant 0.327591091 : f32
    %91 = vector.broadcast %cst_41 : f32 to vector<8x16xf32>
    %92 = arith.mulf %91, %90 : vector<8x16xf32>
    %cst_42 = arith.constant 1.000000e+00 : f32
    %93 = vector.broadcast %cst_42 : f32 to vector<8x16xf32>
    %94 = arith.addf %93, %92 : vector<8x16xf32>
    %cst_43 = arith.constant 1.000000e+00 : f32
    %95 = vector.broadcast %cst_43 : f32 to vector<8x16xf32>
    %96 = arith.divf %95, %94 : vector<8x16xf32>
    %cst_44 = arith.constant 1.06140542 : f32
    %97 = vector.broadcast %cst_44 : f32 to vector<8x16xf32>
    %98 = arith.mulf %97, %96 : vector<8x16xf32>
    %cst_45 = arith.constant -1.45315206 : f32
    %99 = vector.broadcast %cst_45 : f32 to vector<8x16xf32>
    %100 = arith.addf %98, %99 : vector<8x16xf32>
    %101 = arith.mulf %100, %96 : vector<8x16xf32>
    %cst_46 = arith.constant 1.42141378 : f32
    %102 = vector.broadcast %cst_46 : f32 to vector<8x16xf32>
    %103 = arith.addf %101, %102 : vector<8x16xf32>
    %104 = arith.mulf %103, %96 : vector<8x16xf32>
    %cst_47 = arith.constant -0.284496725 : f32
    %105 = vector.broadcast %cst_47 : f32 to vector<8x16xf32>
    %106 = arith.addf %104, %105 : vector<8x16xf32>
    %107 = arith.mulf %106, %96 : vector<8x16xf32>
    %cst_48 = arith.constant 0.254829586 : f32
    %108 = vector.broadcast %cst_48 : f32 to vector<8x16xf32>
    %109 = arith.addf %107, %108 : vector<8x16xf32>
    %110 = arith.mulf %109, %96 : vector<8x16xf32>
    %cst_49 = arith.constant 0.000000e+00 : f32
    %111 = vector.broadcast %cst_49 : f32 to vector<8x16xf32>
    %112 = arith.subf %111, %90 : vector<8x16xf32>
    %113 = arith.mulf %112, %90 : vector<8x16xf32>
    %114 = math.exp %113 : vector<8x16xf32>
    %115 = arith.mulf %110, %114 : vector<8x16xf32>
    %cst_50 = arith.constant 1.000000e+00 : f32
    %116 = vector.broadcast %cst_50 : f32 to vector<8x16xf32>
    %117 = arith.subf %116, %115 : vector<8x16xf32>
    %cst_51 = arith.constant 0.000000e+00 : f32
    %118 = vector.broadcast %cst_51 : f32 to vector<8x16xf32>
    %119 = arith.cmpf oge, %89, %118 : vector<8x16xf32>
    %cst_52 = arith.constant 0.000000e+00 : f32
    %120 = vector.broadcast %cst_52 : f32 to vector<8x16xf32>
    %121 = arith.subf %120, %117 : vector<8x16xf32>
    %122 = arith.select %119, %117, %121 : vector<8x16xi1>, vector<8x16xf32>
    %cst_53 = arith.constant 1.000000e+00 : f32
    %123 = vector.broadcast %cst_53 : f32 to vector<8x16xf32>
    %124 = arith.addf %123, %122 : vector<8x16xf32>
    %125 = arith.mulf %87, %124 : vector<8x16xf32>
    %c0_54 = arith.constant 0 : index
    %c0_55 = arith.constant 0 : index
    %126 = vector.load %arg10[%c0_54, %c0_55] : memref<16x5xf32, #tpu.memory_space<vmem>>, vector<16x5xf32>
    %127 = arith.truncf %125 : vector<8x16xf32> to vector<8x16xbf16>
    %128 = arith.truncf %126 : vector<16x5xf32> to vector<16x5xbf16>
    %cst_56 = arith.constant dense<0.000000e+00> : vector<8x5xf32>
    %129 = tpu.matmul %127, %128, %cst_56 {dimension_numbers = #tpu.dot_dimension_numbers<[1], [0], [0], [1], [0, 0, 1, 1], [], []>} : vector<8x16xbf16>, vector<16x5xbf16>, vector<8x5xf32> -> vector<8x5xf32>
    %c0_57 = arith.constant 0 : index
    %c0_58 = arith.constant 0 : index
    %130 = vector.load %arg11[%c0_57, %c0_58] : memref<1x5xf32, #tpu.memory_space<vmem>>, vector<1x5xf32>
    %131 = vector.broadcast %130 : vector<1x5xf32> to vector<8x5xf32>
    %132 = arith.addf %129, %131 : vector<8x5xf32>
    %c0_59 = arith.constant 0 : index
    %c0_60 = arith.constant 0 : index
    %133 = vector.load %arg12[%c0_59, %c0_60] : memref<8x5xf32, #tpu.memory_space<vmem>>, vector<8x5xf32>
    tpu.vector_store %arg12[%c0_59, %c0_60], %132 {strides = array<i32>} : memref<8x5xf32, #tpu.memory_space<vmem>>, vector<8x5xf32>,
    return
  }
  func.func @transform_0(%arg0: i32) -> (i32, i32) {
    %c0_i32 = arith.constant 0 : i32
    %c0_i32_0 = arith.constant 0 : i32
    return %arg0, %c0_i32 : i32, i32
  }
  func.func @transform_1(%arg0: i32) -> (i32, i32) {
    %c0_i32 = arith.constant 0 : i32
    %c0_i32_0 = arith.constant 0 : i32
    %c0_i32_1 = arith.constant 0 : i32
    return %c0_i32, %c0_i32_0 : i32, i32
  }
  func.func @transform_2(%arg0: i32) -> (i32, i32) {
    %c0_i32 = arith.constant 0 : i32
    %c0_i32_0 = arith.constant 0 : i32
    %c0_i32_1 = arith.constant 0 : i32
    return %c0_i32, %c0_i32_0 : i32, i32
  }
  func.func @transform_3(%arg0: i32) -> (i32, i32) {
    %c0_i32 = arith.constant 0 : i32
    %c0_i32_0 = arith.constant 0 : i32
    %c0_i32_1 = arith.constant 0 : i32
    return %c0_i32, %c0_i32_0 : i32, i32
  }
  func.func @transform_4(%arg0: i32) -> (i32, i32) {
    %c0_i32 = arith.constant 0 : i32
    %c0_i32_0 = arith.constant 0 : i32
    %c0_i32_1 = arith.constant 0 : i32
    return %c0_i32, %c0_i32_0 : i32, i32
  }
  func.func @transform_5(%arg0: i32) -> (i32, i32) {
    %c0_i32 = arith.constant 0 : i32
    %c0_i32_0 = arith.constant 0 : i32
    %c0_i32_1 = arith.constant 0 : i32
    return %c0_i32, %c0_i32_0 : i32, i32
  }
  func.func @transform_6(%arg0: i32) -> (i32, i32) {
    %c0_i32 = arith.constant 0 : i32
    %c0_i32_0 = arith.constant 0 : i32
    %c0_i32_1 = arith.constant 0 : i32
    return %c0_i32, %c0_i32_0 : i32, i32
  }
  func.func @transform_7(%arg0: i32) -> (i32, i32) {
    %c0_i32 = arith.constant 0 : i32
    %c0_i32_0 = arith.constant 0 : i32
    %c0_i32_1 = arith.constant 0 : i32
    return %c0_i32, %c0_i32_0 : i32, i32
  }
  func.func @transform_8(%arg0: i32) -> (i32, i32) {
    %c0_i32 = arith.constant 0 : i32
    %c0_i32_0 = arith.constant 0 : i32
    %c0_i32_1 = arith.constant 0 : i32
    return %c0_i32, %c0_i32_0 : i32, i32
  }
  func.func @transform_9(%arg0: i32) -> (i32, i32) {
    %c0_i32 = arith.constant 0 : i32
    %c0_i32_0 = arith.constant 0 : i32
    %c0_i32_1 = arith.constant 0 : i32
    return %c0_i32, %c0_i32_0 : i32, i32
  }
  func.func @transform_10(%arg0: i32) -> (i32, i32) {
    %c0_i32 = arith.constant 0 : i32
    %c0_i32_0 = arith.constant 0 : i32
    %c0_i32_1 = arith.constant 0 : i32
    return %c0_i32, %c0_i32_0 : i32, i32
  }
  func.func @transform_11(%arg0: i32) -> (i32, i32) {
    %c0_i32 = arith.constant 0 : i32
    %c0_i32_0 = arith.constant 0 : i32
    return %arg0, %c0_i32 : i32, i32
  }
}

</mosaic_0001>

<llo_original>
// kernel: tabpfn_forward.14
$region0: #{tabpfn_forward.14}
  #allocation0 [shape = 'u32[]', space=smem, size = 0x4, offset = 0x4, fixed_abs, tag = 'smem constant byte address 0x4 - core index']
  #allocation1 [shape = 'u32[144,128]{1,0:T(1,128)}', space=vmem, size = 0x12000, scoped, tag = 'internal scratch']
  %s0 = inlined_call_operand.vmem [shape: f32[16,8], index: 0, kind: input, shape index: {}]
  %s1 = inlined_call_operand.vmem [shape: f32[1,8], index: 1, kind: input, shape index: {}]
  %s2 = inlined_call_operand.vmem [shape: f32[1,8], index: 2, kind: input, shape index: {}]
  %s3 = inlined_call_operand.vmem [shape: f32[8,32], index: 3, kind: input, shape index: {}]
  %s4 = inlined_call_operand.vmem [shape: f32[1,32], index: 4, kind: input, shape index: {}]
  %s5 = inlined_call_operand.vmem [shape: f32[16,32], index: 5, kind: output, shape index: {}]
  %s6 = sld [smem:[#allocation0]]
  $region30: #{tabpfn_forward.14} parent=0
    _
  %s8 = ssub.s32 1, %s6
  %s9 = scalar_select 0, %s8, %s6
  // Predicated region
  $region2: #{tabpfn_forward.14} parent=0 // pred_check
    _
  $region3: #{tabpfn_forward.14} parent=0 // pred_check_branch
    %11 = sbr.rel (0) target = $region5
  $region4: #{tabpfn_forward.14} parent=0 // pred_region
    _
  $region5: #{tabpfn_forward.14} parent=0 // pred_fallthru
    _
  // Predicated region
  $region6: #{tabpfn_forward.14} parent=0 // pred_check
    _
  $region7: #{tabpfn_forward.14} parent=0 // pred_check_branch
    %13 = sbr.rel (0) target = $region9
  $region8: #{tabpfn_forward.14} parent=0 // pred_region
    _
  $region9: #{tabpfn_forward.14} parent=0 // pred_fallthru
    _
  // Predicated region
  $region10: #{tabpfn_forward.14} parent=0 // pred_check
    _
  $region11: #{tabpfn_forward.14} parent=0 // pred_check_branch
    %15 = sbr.rel (0) target = $region13
  $region12: #{tabpfn_forward.14} parent=0 // pred_region
    _
  $region13: #{tabpfn_forward.14} parent=0 // pred_fallthru
    _
  // Predicated region
  $region14: #{tabpfn_forward.14} parent=0 // pred_check
    _
  $region15: #{tabpfn_forward.14} parent=0 // pred_check_branch
    %17 = sbr.rel (0) target = $region17
  $region16: #{tabpfn_forward.14} parent=0 // pred_region
    _
  $region17: #{tabpfn_forward.14} parent=0 // pred_fallthru
    _
  // Predicated region
  $region18: #{tabpfn_forward.14} parent=0 // pred_check
    _
  $region19: #{tabpfn_forward.14} parent=0 // pred_check_branch
    %19 = sbr.rel (0) target = $region21
  $region20: #{tabpfn_forward.14} parent=0 // pred_region
    _
  $region21: #{tabpfn_forward.14} parent=0 // pred_fallthru
    _
  %v21 = vld [vmem:[%s0] sm:$0xff]
  %v22 = vld [vmem:[%s0 + $0x8] sm:$0xff]
  %v23 = vld [vmem:[%s1] sm:$0x1]
  %v24 = vld [vmem:[%s2] sm:$0x1]
  %vm25 = vcmask 64512
  %v26 = vsel %vm25, %v21, 0.0
  %27 = vadd.xlane.f32.xlu0 %v26
  %v28 = vpop.xlane.xlu0 %27
  %v29 = vsel %vm25, %v22, 0.0
  %30 = vadd.xlane.f32.xlu0 %v29
  %v31 = vpop.xlane.xlu0 %30
  %v32 = vrcp.pop 8.0
  %v33 = vmul.f32 %v28, %v32
  %v34 = vmul.f32 %v31, %v32
  %v35 = vsub.f32 %v21, %v33
  %v36 = vsub.f32 %v22, %v34
  %v37 = vmul.f32 %v35, %v35
  %v38 = vmul.f32 %v36, %v36
  %v39 = vsel %vm25, %v37, 0.0
  %40 = vadd.xlane.f32.xlu0 %v39
  %v41 = vpop.xlane.xlu0 %40
  %v42 = vsel %vm25, %v38, 0.0
  %43 = vadd.xlane.f32.xlu0 %v42
  %v44 = vpop.xlane.xlu0 %43
  %v45 = vmul.f32 %v41, %v32
  %v46 = vmul.f32 %v44, %v32
  %v47 = vadd.f32 %v45, 1e-05
  %v48 = vadd.f32 %v46, 1e-05
  %v49 = vrsqrt.pop %v47
  %v50 = vrsqrt.pop %v48
  %v51 = vmul.f32 %v35, %v49
  %v52 = vmul.f32 %v36, %v50
  %v54 = vlaneseq
  %v55 = vshrl.u32 %v54, 7
  %v56 = vsub.s32 0, %v55
  %v57 = vrot.slane %v23, %v56
  %v59 = vmul.f32 %v51, %v57
  %v60 = vmul.f32 %v52, %v57
  %v62 = vlaneseq
  %v63 = vshrl.u32 %v62, 7
  %v64 = vsub.s32 0, %v63
  %v65 = vrot.slane %v24, %v64
  %v67 = vadd.f32 %v59, %v65
  %v68 = vadd.f32 %v60, %v65
  %v69 = vld [vmem:[%s3] sm:$0xff]
  %v70 = vpack.c.bf16 %v68, %v67
  %v71 = vpack.c.bf16 %v69, %v69
  %v72 = vld [vmem:[%s4] sm:$0x1]
  %v74 = vlaneseq
  %v75 = vshrl.u32 %v74, 7
  %v76 = vsub.s32 0, %v75
  %v77 = vrot.slane %v72, %v76
  %v80 = vsel %vm25, %v70, 0
  %vm82 = vcmask 1043456
  %v84 = vsel %vm82, %v71, 0
  %86 = vmatprep.subr.bf16.mxu0 0
  %87 = vmatpush1.bf16.msra.mxu0 0
  %88 = vmatprep.subr.bf16.mxu0 0
  %89 = vmatpush1.bf16.msra.mxu0 0
  %90 = vmatprep.subr.bf16.mxu0 0
  %91 = vmatpush1.bf16.msra.mxu0 0
  %92 = vmatprep.subr.bf16.mxu0 0
  %93 = vmatpush1.bf16.msra.mxu0 0
  %94 = vmatprep.subr.bf16.mxu0 0
  %95 = vmatpush1.bf16.msra.mxu0 0
  %96 = vmatprep.subr.bf16.mxu0 0
  %97 = vmatpush1.bf16.msra.mxu0 0
  %98 = vmatprep.subr.bf16.mxu0 0
  %99 = vmatpush1.bf16.msra.mxu0 0
  %100 = vmatprep.subr.bf16.mxu0 0
  %101 = vmatpush1.bf16.msra.mxu0 %v84
  %102 = vmatprep.subr.bf16.mxu0 0
  %103 = vmatpush2.bf16.msra.mxu0 0
  %104 = vmatprep.subr.bf16.mxu0 0
  %105 = vmatpush2.bf16.msra.mxu0 0
  %106 = vmatprep.subr.bf16.mxu0 0
  %107 = vmatpush2.bf16.msra.mxu0 0
  %108 = vmatprep.subr.bf16.mxu0 0
  %109 = vmatpush2.bf16.msra.mxu0 0
  %110 = vmatprep.subr.bf16.mxu0 0
  %111 = vmatpush2.bf16.msra.mxu0 0
  %112 = vmatprep.subr.bf16.mxu0 0
  %113 = vmatpush2.bf16.msra.mxu0 0
  %114 = vmatprep.subr.bf16.mxu0 0
  %115 = vmatpush2.bf16.msra.mxu0 0
  %116 = vmatprep.subr.bf16.mxu0 0
  %117 = vmatpush2.bf16.msra.mxu0 0
  %118 = vmatprep.mubr.bf16.mxu0 0
  %119 = vmatmul.mubr.bf16.gmra.mxu0 %v80
  %v120 = vpop.f32.mrf.mxu0
  %v121 = vadd.f32 %v77, %v120
  %v122 = vpop.f32.mrf.mxu0
  %v123 = vpop.f32.mrf.mxu0
  %v124 = vadd.f32 %v77, %v123
  %v125 = vpop.f32.mrf.mxu0
  %126 = vdwg.mxu0
  %vm127 = vcmask 261120
  %128 = vst.msk [vmem:[%s5] sm:$0xff] %vm127, %v121
  %129 = vst.msk [vmem:[%s5 + $0x8] sm:$0xff] %vm127, %v124
  // Predicated region
  $region22: #{tabpfn_forward.14} parent=0 // pred_check
    _
  $region23: #{tabpfn_forward.14} parent=0 // pred_check_branch
    %131 = sbr.rel (0) target = $region25
  $region24: #{tabpfn_forward.14} parent=0 // pred_region
    _
  $region25: #{tabpfn_forward.14} parent=0 // pred_fallthru
    _
  // Predicated region
  $region26: #{tabpfn_forward.14} parent=0 // pred_check
    _
  $region27: #{tabpfn_forward.14} parent=0 // pred_check_branch
    %133 = sbr.rel (0) target = $region29
  $region28: #{tabpfn_forward.14} parent=0 // pred_region
    _
  $region29: #{tabpfn_forward.14} parent=0 // pred_fallthru
    _

// kernel: tabpfn_forward.16
$region0: #{tabpfn_forward.16}
  #allocation0 [shape = 'u32[]', space=smem, size = 0x4, offset = 0x4, fixed_abs, tag = 'smem constant byte address 0x4 - core index']
  #allocation1 [shape = 'u32[144,128]{1,0:T(1,128)}', space=vmem, size = 0x12000, scoped, tag = 'internal scratch']
  %s0 = inlined_call_operand.vmem [shape: f32[24,32], index: 0, kind: input, shape index: {}]
  %s1 = inlined_call_operand.vmem [shape: f32[32,96], index: 1, kind: input, shape index: {}]
  %s2 = inlined_call_operand.vmem [shape: f32[1,96], index: 2, kind: input, shape index: {}]
  %s3 = inlined_call_operand.vmem [shape: f32[24,96], index: 3, kind: output, shape index: {}]
  %s4 = sld [smem:[#allocation0]]
  $region22: #{tabpfn_forward.16} parent=0
    _
  %s6 = ssub.s32 1, %s4
  %s7 = scalar_select 0, %s6, %s4
  // Predicated region
  $region2: #{tabpfn_forward.16} parent=0 // pred_check
    _
  $region3: #{tabpfn_forward.16} parent=0 // pred_check_branch
    %9 = sbr.rel (0) target = $region5
  $region4: #{tabpfn_forward.16} parent=0 // pred_region
    _
  $region5: #{tabpfn_forward.16} parent=0 // pred_fallthru
    _
  // Predicated region
  $region6: #{tabpfn_forward.16} parent=0 // pred_check
    _
  $region7: #{tabpfn_forward.16} parent=0 // pred_check_branch
    %11 = sbr.rel (0) target = $region9
  $region8: #{tabpfn_forward.16} parent=0 // pred_region
    _
  $region9: #{tabpfn_forward.16} parent=0 // pred_fallthru
    _
  // Predicated region
  $region10: #{tabpfn_forward.16} parent=0 // pred_check
    _
  $region11: #{tabpfn_forward.16} parent=0 // pred_check_branch
    %13 = sbr.rel (0) target = $region13
  $region12: #{tabpfn_forward.16} parent=0 // pred_region
    _
  $region13: #{tabpfn_forward.16} parent=0 // pred_fallthru
    _
  %v15 = vld [vmem:[%s0] sm:$0xff]
  %v16 = vld [vmem:[%s0 + $0x8] sm:$0xff]
  %v17 = vld [vmem:[%s0 + $0x10] sm:$0xff]
  %v18 = vld [vmem:[%s1] sm:$0xff]
  %v19 = vld [vmem:[%s1 + $0x8] sm:$0xff]
  %v20 = vld [vmem:[%s1 + $0x10] sm:$0xff]
  %v21 = vld [vmem:[%s1 + $0x18] sm:$0xff]
  %v22 = vpack.c.bf16 %v16, %v15
  %v23 = vpack.c.bf16 %v17, %v17
  %v24 = vpack.c.bf16 %v19, %v18
  %v25 = vpack.c.bf16 %v21, %v20
  %v26 = vld [vmem:[%s2] sm:$0x1]
  %v28 = vlaneseq
  %v29 = vshrl.u32 %v28, 7
  %v30 = vsub.s32 0, %v29
  %v31 = vrot.slane %v26, %v30
  %vm33 = vcmask 261120
  %v35 = vsel %vm33, %v22, 0
  %v38 = vsel %vm33, %v23, 0
  %40 = vmatprep.subr.bf16.mxu0 0
  %41 = vmatpush1.bf16.msra.mxu0 0
  %42 = vmatprep.subr.bf16.mxu0 0
  %43 = vmatpush1.bf16.msra.mxu0 0
  %44 = vmatprep.subr.bf16.mxu0 0
  %45 = vmatpush1.bf16.msra.mxu0 0
  %46 = vmatprep.subr.bf16.mxu0 0
  %47 = vmatpush1.bf16.msra.mxu0 0
  %48 = vmatprep.subr.bf16.mxu0 0
  %49 = vmatpush1.bf16.msra.mxu0 0
  %50 = vmatprep.subr.bf16.mxu0 0
  %51 = vmatpush1.bf16.msra.mxu0 0
  %52 = vmatprep.subr.bf16.mxu0 0
  %53 = vmatpush1.bf16.msra.mxu0 %v25
  %54 = vmatprep.subr.bf16.mxu0 0
  %55 = vmatpush1.bf16.msra.mxu0 %v24
  %56 = vmatprep.subr.bf16.mxu0 0
  %57 = vmatpush2.bf16.msra.mxu0 0
  %58 = vmatprep.subr.bf16.mxu0 0
  %59 = vmatpush2.bf16.msra.mxu0 0
  %60 = vmatprep.subr.bf16.mxu0 0
  %61 = vmatpush2.bf16.msra.mxu0 0
  %62 = vmatprep.subr.bf16.mxu0 0
  %63 = vmatpush2.bf16.msra.mxu0 0
  %64 = vmatprep.subr.bf16.mxu0 0
  %65 = vmatpush2.bf16.msra.mxu0 0
  %66 = vmatprep.subr.bf16.mxu0 0
  %67 = vmatpush2.bf16.msra.mxu0 0
  %68 = vmatprep.subr.bf16.mxu0 0
  %69 = vmatpush2.bf16.msra.mxu0 0
  %70 = vmatprep.subr.bf16.mxu0 0
  %71 = vmatpush2.bf16.msra.mxu0 0
  %72 = vmatprep.mubr.bf16.mxu0 0
  %73 = vmatmul.mubr.bf16.gmra.mxu0 %v35
  %v74 = vpop.f32.mrf.mxu0
  %v75 = vadd.f32 %v31, %v74
  %v76 = vpop.f32.mrf.mxu0
  %v77 = vpop.f32.mrf.mxu0
  %v78 = vadd.f32 %v31, %v77
  %v79 = vpop.f32.mrf.mxu0
  %80 = vmatprep.mubr.bf16.mxu0 0
  %81 = vmatmul.mubr.bf16.gmra.mxu0 %v38
  %v82 = vpop.f32.mrf.mxu0
  %v83 = vadd.f32 %v31, %v82
  %v84 = vpop.f32.mrf.mxu0
  %v85 = vpop.f32.mrf.mxu0
  %v86 = vpop.f32.mrf.mxu0
  %87 = vdwg.mxu0
  %vm88 = vcmask 785408
  %89 = vst.msk [vmem:[%s3] sm:$0xff] %vm88, %v75
  %90 = vst.msk [vmem:[%s3 + $0x8] sm:$0xff] %vm88, %v78
  %91 = vst.msk [vmem:[%s3 + $0x10] sm:$0xff] %vm88, %v83
  // Predicated region
  $region14: #{tabpfn_forward.16} parent=0 // pred_check
    _
  $region15: #{tabpfn_forward.16} parent=0 // pred_check_branch
    %93 = sbr.rel (0) target = $region17
  $region16: #{tabpfn_forward.16} parent=0 // pred_region
    _
  $region17: #{tabpfn_forward.16} parent=0 // pred_fallthru
    _
  // Predicated region
  $region18: #{tabpfn_forward.16} parent=0 // pred_check
    _
  $region19: #{tabpfn_forward.16} parent=0 // pred_check_branch
    %95 = sbr.rel (0) target = $region21
  $region20: #{tabpfn_forward.16} parent=0 // pred_region
    _
  $region21: #{tabpfn_forward.16} parent=0 // pred_fallthru
    _

// kernel: tabpfn_forward.15
$region0: #{tabpfn_forward.15}
  #allocation0 [shape = 'u32[]', space=smem, size = 0x4, offset = 0x4, fixed_abs, tag = 'smem constant byte address 0x4 - core index']
  #allocation1 [shape = 'u32[144,128]{1,0:T(1,128)}', space=vmem, size = 0x12000, scoped, tag = 'internal scratch']
  %s0 = inlined_call_operand.vmem [shape: f32[8,8], index: 0, kind: input, shape index: {}]
  %s1 = inlined_call_operand.vmem [shape: f32[1,8], index: 1, kind: input, shape index: {}]
  %s2 = inlined_call_operand.vmem [shape: f32[1,8], index: 2, kind: input, shape index: {}]
  %s3 = inlined_call_operand.vmem [shape: f32[8,32], index: 3, kind: input, shape index: {}]
  %s4 = inlined_call_operand.vmem [shape: f32[1,32], index: 4, kind: input, shape index: {}]
  %s5 = inlined_call_operand.vmem [shape: f32[8,32], index: 5, kind: output, shape index: {}]
  %s6 = sld [smem:[#allocation0]]
  $region30: #{tabpfn_forward.15} parent=0
    _
  %s8 = ssub.s32 1, %s6
  %s9 = scalar_select 0, %s8, %s6
  // Predicated region
  $region2: #{tabpfn_forward.15} parent=0 // pred_check
    _
  $region3: #{tabpfn_forward.15} parent=0 // pred_check_branch
    %11 = sbr.rel (0) target = $region5
  $region4: #{tabpfn_forward.15} parent=0 // pred_region
    _
  $region5: #{tabpfn_forward.15} parent=0 // pred_fallthru
    _
  // Predicated region
  $region6: #{tabpfn_forward.15} parent=0 // pred_check
    _
  $region7: #{tabpfn_forward.15} parent=0 // pred_check_branch
    %13 = sbr.rel (0) target = $region9
  $region8: #{tabpfn_forward.15} parent=0 // pred_region
    _
  $region9: #{tabpfn_forward.15} parent=0 // pred_fallthru
    _
  // Predicated region
  $region10: #{tabpfn_forward.15} parent=0 // pred_check
    _
  $region11: #{tabpfn_forward.15} parent=0 // pred_check_branch
    %15 = sbr.rel (0) target = $region13
  $region12: #{tabpfn_forward.15} parent=0 // pred_region
    _
  $region13: #{tabpfn_forward.15} parent=0 // pred_fallthru
    _
  // Predicated region
  $region14: #{tabpfn_forward.15} parent=0 // pred_check
    _
  $region15: #{tabpfn_forward.15} parent=0 // pred_check_branch
    %17 = sbr.rel (0) target = $region17
  $region16: #{tabpfn_forward.15} parent=0 // pred_region
    _
  $region17: #{tabpfn_forward.15} parent=0 // pred_fallthru
    _
  // Predicated region
  $region18: #{tabpfn_forward.15} parent=0 // pred_check
    _
  $region19: #{tabpfn_forward.15} parent=0 // pred_check_branch
    %19 = sbr.rel (0) target = $region21
  $region20: #{tabpfn_forward.15} parent=0 // pred_region
    _
  $region21: #{tabpfn_forward.15} parent=0 // pred_fallthru
    _
  %v21 = vld [vmem:[%s0] sm:$0xff]
  %v22 = vld [vmem:[%s1] sm:$0x1]
  %v23 = vld [vmem:[%s2] sm:$0x1]
  %vm24 = vcmask 64512
  %v25 = vsel %vm24, %v21, 0.0
  %26 = vadd.xlane.f32.xlu0 %v25
  %v27 = vpop.xlane.xlu0 %26
  %v28 = vrcp.pop 8.0
  %v29 = vmul.f32 %v27, %v28
  %v30 = vsub.f32 %v21, %v29
  %v31 = vmul.f32 %v30, %v30
  %v32 = vsel %vm24, %v31, 0.0
  %33 = vadd.xlane.f32.xlu0 %v32
  %v34 = vpop.xlane.xlu0 %33
  %v35 = vmul.f32 %v34, %v28
  %v36 = vadd.f32 %v35, 1e-05
  %v37 = vrsqrt.pop %v36
  %v38 = vmul.f32 %v30, %v37
  %v40 = vlaneseq
  %v41 = vshrl.u32 %v40, 7
  %v42 = vsub.s32 0, %v41
  %v43 = vrot.slane %v22, %v42
  %v45 = vmul.f32 %v38, %v43
  %v47 = vlaneseq
  %v48 = vshrl.u32 %v47, 7
  %v49 = vsub.s32 0, %v48
  %v50 = vrot.slane %v23, %v49
  %v52 = vadd.f32 %v45, %v50
  %v53 = vld [vmem:[%s3] sm:$0xff]
  %v54 = vpack.c.bf16 %v52, %v52
  %v55 = vpack.c.bf16 %v53, %v53
  %v56 = vld [vmem:[%s4] sm:$0x1]
  %v58 = vlaneseq
  %v59 = vshrl.u32 %v58, 7
  %v60 = vsub.s32 0, %v59
  %v61 = vrot.slane %v56, %v60
  %v64 = vsel %vm24, %v54, 0
  %vm66 = vcmask 1043456
  %v68 = vsel %vm66, %v55, 0
  %70 = vmatprep.subr.bf16.mxu0 0
  %71 = vmatpush1.bf16.msra.mxu0 0
  %72 = vmatprep.subr.bf16.mxu0 0
  %73 = vmatpush1.bf16.msra.mxu0 0
  %74 = vmatprep.subr.bf16.mxu0 0
  %75 = vmatpush1.bf16.msra.mxu0 0
  %76 = vmatprep.subr.bf16.mxu0 0
  %77 = vmatpush1.bf16.msra.mxu0 0
  %78 = vmatprep.subr.bf16.mxu0 0
  %79 = vmatpush1.bf16.msra.mxu0 0
  %80 = vmatprep.subr.bf16.mxu0 0
  %81 = vmatpush1.bf16.msra.mxu0 0
  %82 = vmatprep.subr.bf16.mxu0 0
  %83 = vmatpush1.bf16.msra.mxu0 0
  %84 = vmatprep.subr.bf16.mxu0 0
  %85 = vmatpush1.bf16.msra.mxu0 %v68
  %86 = vmatprep.subr.bf16.mxu0 0
  %87 = vmatpush2.bf16.msra.mxu0 0
  %88 = vmatprep.subr.bf16.mxu0 0
  %89 = vmatpush2.bf16.msra.mxu0 0
  %90 = vmatprep.subr.bf16.mxu0 0
  %91 = vmatpush2.bf16.msra.mxu0 0
  %92 = vmatprep.subr.bf16.mxu0 0
  %93 = vmatpush2.bf16.msra.mxu0 0
  %94 = vmatprep.subr.bf16.mxu0 0
  %95 = vmatpush2.bf16.msra.mxu0 0
  %96 = vmatprep.subr.bf16.mxu0 0
  %97 = vmatpush2.bf16.msra.mxu0 0
  %98 = vmatprep.subr.bf16.mxu0 0
  %99 = vmatpush2.bf16.msra.mxu0 0
  %100 = vmatprep.subr.bf16.mxu0 0
  %101 = vmatpush2.bf16.msra.mxu0 0
  %102 = vmatprep.mubr.bf16.mxu0 0
  %103 = vmatmul.mubr.bf16.gmra.mxu0 %v64
  %v104 = vpop.f32.mrf.mxu0
  %v105 = vadd.f32 %v61, %v104
  %v106 = vpop.f32.mrf.mxu0
  %v107 = vpop.f32.mrf.mxu0
  %v108 = vpop.f32.mrf.mxu0
  %109 = vdwg.mxu0
  %vm110 = vcmask 261120
  %111 = vst.msk [vmem:[%s5] sm:$0xff] %vm110, %v105
  // Predicated region
  $region22: #{tabpfn_forward.15} parent=0 // pred_check
    _
  $region23: #{tabpfn_forward.15} parent=0 // pred_check_branch
    %113 = sbr.rel (0) target = $region25
  $region24: #{tabpfn_forward.15} parent=0 // pred_region
    _
  $region25: #{tabpfn_forward.15} parent=0 // pred_fallthru
    _
  // Predicated region
  $region26: #{tabpfn_forward.15} parent=0 // pred_check
    _
  $region27: #{tabpfn_forward.15} parent=0 // pred_check_branch
    %115 = sbr.rel (0) target = $region29
  $region28: #{tabpfn_forward.15} parent=0 // pred_region
    _
  $region29: #{tabpfn_forward.15} parent=0 // pred_fallthru
    _

// kernel: tabpfn_forward.17
$region0: #{tabpfn_forward.17}
  #allocation0 [shape = 'u32[]', space=smem, size = 0x4, offset = 0x4, fixed_abs, tag = 'smem constant byte address 0x4 - core index']
  #allocation1 [shape = 'u32[144,128]{1,0:T(1,128)}', space=vmem, size = 0x12000, scoped, tag = 'internal scratch']
  %s0 = inlined_call_operand.vmem [shape: f32[2,12,96], index: 0, kind: input, shape index: {}]
  %s1 = inlined_call_operand.vmem [shape: f32[2,12,32], index: 1, kind: output, shape index: {}]
  %s2 = sld [smem:[#allocation0]]
  $region37: #{tabpfn_forward.17} parent=0
    _
  %s4 = ssub.s32 1, %s2
  %s5 = scalar_select 0, %s4, %s2
  loop: start=0, step=1, limit=4
  $region2: #{tabpfn_forward.17} parent=0 // loop_pre_header
    _
  $region3: #{tabpfn_forward.17} parent=0 // loop_header
    %s7 = sphi 0, %s11
    %p8 = scmp.ge.s32.totalorder %s7, 4
    %s17 = sphi 0, %s19
    %s20 = sphi 0, %s17
    %s21 = sphi 0, %s20
    %s37 = sphi 0, %s21
    %s43 = sphi 0, %s45
    %s46 = sphi 0, %s43
    %s47 = sphi 0, %s46
    %s63 = sphi 0, %s47
  $region4: #{tabpfn_forward.17} parent=0 // loop_header_branch
    %10 = sbr.rel (%p8) target = $region8
  $region5: #{tabpfn_forward.17} parent=0 // loop_body
    %s12 = ssub.s32 %s7, 1
    %s13 = ssub.s32 %s7, 2
    %s14 = sadd.s32 %s7, 1
    %s15 = ssub.s32 %s7, %s14
    %p16 = scmp.eq.s32.totalorder %s15, 0
    %s18 = sadd.s32 %s17, 1
    %s19 = scalar_select %p16, %s17, %s18
    %p22 = pneg %p16
    %p23 = scmp.eq.s32.totalorder %s7, 1
    %p24 = por %p22, %p23
    %p25 = scmp.ne.s32.totalorder %s17, %s20
    %p26 = scmp.eq.s32.totalorder %s7, 0
    %p27 = por %p25, %p26
    %p28 = scmp.ne.s32.totalorder %s17, %s20
    %p29 = scmp.eq.s32.totalorder %s12, 1
    %p30 = por %p28, %p29
    %p31 = scmp.ne.s32.totalorder %s20, %s21
    %p32 = scmp.eq.s32.totalorder %s12, 0
    %p33 = por %p31, %p32
    %p34 = scmp.ne.s32.totalorder %s20, %s21
    %p35 = scmp.eq.s32.totalorder %s13, 1
    %p36 = por %p34, %p35
    %p38 = scmp.ne.s32.totalorder %s21, %s37
    %p39 = scmp.eq.s32.totalorder %s13, 0
    %p40 = por %p38, %p39
    %s41 = ssub.s32 %s7, %s14
    %p42 = scmp.eq.s32.totalorder %s41, 0
    %s44 = sadd.s32 %s43, 1
    %s45 = scalar_select %p42, %s43, %s44
    %p48 = pneg %p42
    %p49 = scmp.eq.s32.totalorder %s7, 1
    %p50 = por %p48, %p49
    %p51 = scmp.ne.s32.totalorder %s43, %s46
    %p52 = scmp.eq.s32.totalorder %s7, 0
    %p53 = por %p51, %p52
    %p54 = scmp.ne.s32.totalorder %s43, %s46
    %p55 = scmp.eq.s32.totalorder %s12, 1
    %p56 = por %p54, %p55
    %p57 = scmp.ne.s32.totalorder %s46, %s47
    %p58 = scmp.eq.s32.totalorder %s12, 0
    %p59 = por %p57, %p58
    %p60 = scmp.ne.s32.totalorder %s46, %s47
    %p61 = scmp.eq.s32.totalorder %s13, 1
    %p62 = por %p60, %p61
    %p64 = scmp.ne.s32.totalorder %s47, %s63
    %p65 = scmp.eq.s32.totalorder %s13, 0
    %p66 = por %p64, %p65
    %p67 = scmp.le.s32.totalorder 1, %s7
    %p68 = scmp.lt.s32.totalorder %s7, 3
    %p69 = pnand %p67, %p68
    %p70 = pneg %p69
    // Predicated region
    $region9: #{tabpfn_forward.17} parent=5 // pred_check
      _
    $region10: #{tabpfn_forward.17} parent=5 // pred_check_branch
      %72 = sbr.rel (%p69) target = $region12
    $region11: #{tabpfn_forward.17} parent=5 // pred_region
      %s73 = ssub.s32 %s7, 1
    $region12: #{tabpfn_forward.17} parent=5 // pred_fallthru
      _
    %p74 = scmp.lt.s32.totalorder %s7, 2
    // Predicated region
    $region13: #{tabpfn_forward.17} parent=5 // pred_check
      %p75 = pneg %p74
    $region14: #{tabpfn_forward.17} parent=5 // pred_check_branch
      %77 = sbr.rel (%p75) target = $region16
    $region15: #{tabpfn_forward.17} parent=5 // pred_region
      // Predicated region
      $region17: #{tabpfn_forward.17} parent=15 // pred_check
        %p78 = pneg %p27
      $region18: #{tabpfn_forward.17} parent=15 // pred_check_branch
        %80 = sbr.rel (%p78) target = $region20
      $region19: #{tabpfn_forward.17} parent=15 // pred_region
        %p81 = scmp.lt.s32.totalorder %s7, 1
        %s82 = scalar_select %p81, %s7, 1
        %s83 = smul.addr %s82, 2
        %s84 = smul.addr %s83, 8
        %s85 = scalar_lea.vmem %s0, %s84
      $region20: #{tabpfn_forward.17} parent=15 // pred_fallthru
        _
    $region16: #{tabpfn_forward.17} parent=5 // pred_fallthru
      _
    %p86 = scmp.le.s32.totalorder 1, %s7
    %p87 = scmp.lt.s32.totalorder %s7, 3
    %p88 = pnand %p86, %p87
    %p89 = pneg %p88
    // Predicated region
    $region21: #{tabpfn_forward.17} parent=5 // pred_check
      _
    $region22: #{tabpfn_forward.17} parent=5 // pred_check_branch
      %91 = sbr.rel (%p88) target = $region24
    $region23: #{tabpfn_forward.17} parent=5 // pred_region
      %s92 = ssub.s32 %s7, 1
      %p93 = scmp.lt.s32.totalorder %s12, 1
      %s94 = scalar_select %p93, %s12, 1
      %s95 = smul.addr %s94, 2
      %s96 = smul.addr %s95, 8
      %s97 = scalar_lea.vmem %s0, %s96
      %p98 = pneg %p33
      %p99 = pneg %p30
      %p100 = pneg %p59
      %p101 = pneg %p56
      %p102 = scmp.lt.s32.totalorder %s12, 1
      %s103 = scalar_select %p102, %s12, 1
      %s104 = smul.addr %s103, 2
      %s105 = smul.addr %s104, 8
      %s106 = scalar_lea.vmem %s1, %s105
      %p107 = scmp.lt.s32.totalorder %s12, 1
      %s108 = scalar_select %p107, %s12, 1
      %s109 = smul.addr %s108, 2
      %s110 = smul.addr %s109, 8
      %s111 = scalar_lea.vmem %s0, %s110
      %p112 = scmp.lt.s32.totalorder %s12, 1
      %s113 = scalar_select %p112, %s12, 1
      %s114 = smul.addr %s113, 2
      %s115 = smul.addr %s114, 8
      %s116 = scalar_lea.vmem %s1, %s115
      %v118 = vld [vmem:[%s111] sm:$0xff]
      %v119 = vld [vmem:[%s111 + $0x8] sm:$0xf]
      %v120 = vmul.f32 %v118, 0.35355338
      %v121 = vmul.f32 %v119, 0.35355338
      %v122 = vpack.c.bf16 %v121, %v120
      %v123 = vpack.c.bf16 %v119, %v118
      %125 = vrot.lane.b32.xlu0 %v123, 96
      %v126 = vpop.permute.xlu0 %125
      %vm127 = vcmask 64512
      %v129 = vsel %vm127, %v122, 0
      %v132 = vsel %vm127, %v126, 0
      %134 = vmatprep.subr.bf16.mxu0 0
      %135 = vmatpush1.bf16.xpose.msra.mxu0 0
      %136 = vmatprep.subr.bf16.mxu0 0
      %137 = vmatpush1.bf16.xpose.msra.mxu0 0
      %138 = vmatprep.subr.bf16.mxu0 0
      %139 = vmatpush1.bf16.xpose.msra.mxu0 0
      %140 = vmatprep.subr.bf16.mxu0 0
      %141 = vmatpush1.bf16.xpose.msra.mxu0 0
      %142 = vmatprep.subr.bf16.mxu0 0
      %143 = vmatpush1.bf16.xpose.msra.mxu0 0
      %144 = vmatprep.subr.bf16.mxu0 0
      %145 = vmatpush1.bf16.xpose.msra.mxu0 0
      %146 = vmatprep.subr.bf16.mxu0 0
      %147 = vmatpush1.bf16.xpose.msra.mxu0 0
      %148 = vmatprep.subr.bf16.mxu0 0
      %149 = vmatpush1.bf16.xpose.msra.mxu0 %v132
      %150 = vmatprep.subr.bf16.mxu0 0
      %151 = vmatpush2.bf16.xpose.msra.mxu0 0
      %152 = vmatprep.subr.bf16.mxu0 0
      %153 = vmatpush2.bf16.xpose.msra.mxu0 0
      %154 = vmatprep.subr.bf16.mxu0 0
      %155 = vmatpush2.bf16.xpose.msra.mxu0 0
      %156 = vmatprep.subr.bf16.mxu0 0
      %157 = vmatpush2.bf16.xpose.msra.mxu0 0
      %158 = vmatprep.subr.bf16.mxu0 0
      %159 = vmatpush2.bf16.xpose.msra.mxu0 0
      %160 = vmatprep.subr.bf16.mxu0 0
      %161 = vmatpush2.bf16.xpose.msra.mxu0 0
      %162 = vmatprep.subr.bf16.mxu0 0
      %163 = vmatpush2.bf16.xpose.msra.mxu0 0
      %164 = vmatprep.subr.bf16.mxu0 0
      %165 = vmatpush2.bf16.xpose.msra.mxu0 0
      %166 = vmatprep.mubr.bf16.mxu0 0
      %167 = vmatmul.mubr.bf16.gmra.mxu0 %v129
      %v168 = vpop.f32.mrf.mxu0
      %v169 = vadd.f32 0.0, %v168
      %v170 = vpop.f32.mrf.mxu0
      %v171 = vpop.f32.mrf.mxu0
      %v172 = vadd.f32 0.0, %v171
      %v173 = vpop.f32.mrf.mxu0
      %174 = vdwg.mxu0
      %vm175 = vcmask 97280
      %v176 = vsel %vm175, %v169, -inf
      %177 = vmax.xlane.f32.xlu0 %v176
      %v178 = vpop.xlane.xlu0 %177
      %vm179 = vcmask 93184
      %v180 = vsel %vm179, %v172, -inf
      %181 = vmax.xlane.f32.xlu0 %v180
      %v182 = vpop.xlane.xlu0 %181
      %v183 = vsub.f32 %v169, %v178
      %v184 = vsub.f32 %v172, %v182
      %v185 = vmul.f32 %v183, 1.442695
      %v186 = vpow.pop %v185
      %v187 = vmul.f32 %v184, 1.442695
      %v188 = vpow.pop %v187
      %v189 = vsel %vm175, %v186, 0.0
      %190 = vadd.xlane.f32.xlu0 %v189
      %v191 = vpop.xlane.xlu0 %190
      %v192 = vsel %vm179, %v188, 0.0
      %193 = vadd.xlane.f32.xlu0 %v192
      %v194 = vpop.xlane.xlu0 %193
      %v195 = vrcp.pop %v191
      %v196 = vrcp.pop %v194
      %v197 = vmul.f32 %v186, %v195
      %v198 = vmul.f32 %v188, %v196
      %v199 = vpack.c.bf16 %v198, %v197
      %200 = vrot.lane.b32.xlu0 %v123, 64
      %v201 = vpop.permute.xlu0 %200
      %v203 = vsel %vm175, %v199, 0
      %vm205 = vcmask 1045504
      %v207 = vsel %vm205, %v201, 0
      %209 = vmatprep.subr.bf16.mxu0 0
      %210 = vmatpush1.bf16.msra.mxu0 0
      %211 = vmatprep.subr.bf16.mxu0 0
      %212 = vmatpush1.bf16.msra.mxu0 0
      %213 = vmatprep.subr.bf16.mxu0 0
      %214 = vmatpush1.bf16.msra.mxu0 0
      %215 = vmatprep.subr.bf16.mxu0 0
      %216 = vmatpush1.bf16.msra.mxu0 0
      %217 = vmatprep.subr.bf16.mxu0 0
      %218 = vmatpush1.bf16.msra.mxu0 0
      %219 = vmatprep.subr.bf16.mxu0 0
      %220 = vmatpush1.bf16.msra.mxu0 0
      %221 = vmatprep.subr.bf16.mxu0 0
      %222 = vmatpush1.bf16.msra.mxu0 0
      %223 = vmatprep.subr.bf16.mxu0 0
      %224 = vmatpush1.bf16.msra.mxu0 %v207
      %225 = vmatprep.subr.bf16.mxu0 0
      %226 = vmatpush2.bf16.msra.mxu0 0
      %227 = vmatprep.subr.bf16.mxu0 0
      %228 = vmatpush2.bf16.msra.mxu0 0
      %229 = vmatprep.subr.bf16.mxu0 0
      %230 = vmatpush2.bf16.msra.mxu0 0
      %231 = vmatprep.subr.bf16.mxu0 0
      %232 = vmatpush2.bf16.msra.mxu0 0
      %233 = vmatprep.subr.bf16.mxu0 0
      %234 = vmatpush2.bf16.msra.mxu0 0
      %235 = vmatprep.subr.bf16.mxu0 0
      %236 = vmatpush2.bf16.msra.mxu0 0
      %237 = vmatprep.subr.bf16.mxu0 0
      %238 = vmatpush2.bf16.msra.mxu0 0
      %239 = vmatprep.subr.bf16.mxu0 0
      %240 = vmatpush2.bf16.msra.mxu0 0
      %241 = vmatprep.mubr.bf16.mxu0 0
      %242 = vmatmul.mubr.bf16.gmra.mxu0 %v203
      %v243 = vpop.f32.mrf.mxu0
      %v244 = vadd.f32 0.0, %v243
      %v245 = vpop.f32.mrf.mxu0
      %v246 = vpop.f32.mrf.mxu0
      %v247 = vadd.f32 0.0, %v246
      %v248 = vpop.f32.mrf.mxu0
      %249 = vdwg.mxu0
      %251 = vrot.lane.b32.xlu0 %v122, 120
      %v252 = vpop.permute.xlu0 %251
      %253 = vrot.lane.b32.xlu0 %v123, 88
      %v254 = vpop.permute.xlu0 %253
      %v256 = vsel %vm127, %v252, 0
      %v259 = vsel %vm127, %v254, 0
      %261 = vmatprep.subr.bf16.mxu0 0
      %262 = vmatpush1.bf16.xpose.msra.mxu0 0
      %263 = vmatprep.subr.bf16.mxu0 0
      %264 = vmatpush1.bf16.xpose.msra.mxu0 0
      %265 = vmatprep.subr.bf16.mxu0 0
      %266 = vmatpush1.bf16.xpose.msra.mxu0 0
      %267 = vmatprep.subr.bf16.mxu0 0
      %268 = vmatpush1.bf16.xpose.msra.mxu0 0
      %269 = vmatprep.subr.bf16.mxu0 0
      %270 = vmatpush1.bf16.xpose.msra.mxu0 0
      %271 = vmatprep.subr.bf16.mxu0 0
      %272 = vmatpush1.bf16.xpose.msra.mxu0 0
      %273 = vmatprep.subr.bf16.mxu0 0
      %274 = vmatpush1.bf16.xpose.msra.mxu0 0
      %275 = vmatprep.subr.bf16.mxu0 0
      %276 = vmatpush1.bf16.xpose.msra.mxu0 %v259
      %277 = vmatprep.subr.bf16.mxu0 0
      %278 = vmatpush2.bf16.xpose.msra.mxu0 0
      %279 = vmatprep.subr.bf16.mxu0 0
      %280 = vmatpush2.bf16.xpose.msra.mxu0 0
      %281 = vmatprep.subr.bf16.mxu0 0
      %282 = vmatpush2.bf16.xpose.msra.mxu0 0
      %283 = vmatprep.subr.bf16.mxu0 0
      %284 = vmatpush2.bf16.xpose.msra.mxu0 0
      %285 = vmatprep.subr.bf16.mxu0 0
      %286 = vmatpush2.bf16.xpose.msra.mxu0 0
      %287 = vmatprep.subr.bf16.mxu0 0
      %288 = vmatpush2.bf16.xpose.msra.mxu0 0
      %289 = vmatprep.subr.bf16.mxu0 0
      %290 = vmatpush2.bf16.xpose.msra.mxu0 0
      %291 = vmatprep.subr.bf16.mxu0 0
      %292 = vmatpush2.bf16.xpose.msra.mxu0 0
      %293 = vmatprep.mubr.bf16.mxu0 0
      %294 = vmatmul.mubr.bf16.gmra.mxu0 %v256
      %v295 = vpop.f32.mrf.mxu0
      %v296 = vadd.f32 0.0, %v295
      %v297 = vpop.f32.mrf.mxu0
      %v298 = vpop.f32.mrf.mxu0
      %v299 = vadd.f32 0.0, %v298
      %v300 = vpop.f32.mrf.mxu0
      %301 = vdwg.mxu0
      %v302 = vsel %vm175, %v296, -inf
      %303 = vmax.xlane.f32.xlu0 %v302
      %v304 = vpop.xlane.xlu0 %303
      %v305 = vsel %vm179, %v299, -inf
      %306 = vmax.xlane.f32.xlu0 %v305
      %v307 = vpop.xlane.xlu0 %306
      %v308 = vsub.f32 %v296, %v304
      %v309 = vsub.f32 %v299, %v307
      %v310 = vmul.f32 %v308, 1.442695
      %v311 = vpow.pop %v310
      %v312 = vmul.f32 %v309, 1.442695
      %v313 = vpow.pop %v312
      %v314 = vsel %vm175, %v311, 0.0
      %315 = vadd.xlane.f32.xlu0 %v314
      %v316 = vpop.xlane.xlu0 %315
      %v317 = vsel %vm179, %v313, 0.0
      %318 = vadd.xlane.f32.xlu0 %v317
      %v319 = vpop.xlane.xlu0 %318
      %v320 = vrcp.pop %v316
      %v321 = vrcp.pop %v319
      %v322 = vmul.f32 %v311, %v320
      %v323 = vmul.f32 %v313, %v321
      %v324 = vpack.c.bf16 %v323, %v322
      %325 = vrot.lane.b32.xlu0 %v123, 56
      %v326 = vpop.permute.xlu0 %325
      %v328 = vsel %vm175, %v324, 0
      %v331 = vsel %vm205, %v326, 0
      %333 = vmatprep.subr.bf16.mxu0 0
      %334 = vmatpush1.bf16.msra.mxu0 0
      %335 = vmatprep.subr.bf16.mxu0 0
      %336 = vmatpush1.bf16.msra.mxu0 0
      %337 = vmatprep.subr.bf16.mxu0 0
      %338 = vmatpush1.bf16.msra.mxu0 0
      %339 = vmatprep.subr.bf16.mxu0 0
      %340 = vmatpush1.bf16.msra.mxu0 0
      %341 = vmatprep.subr.bf16.mxu0 0
      %342 = vmatpush1.bf16.msra.mxu0 0
      %343 = vmatprep.subr.bf16.mxu0 0
      %344 = vmatpush1.bf16.msra.mxu0 0
      %345 = vmatprep.subr.bf16.mxu0 0
      %346 = vmatpush1.bf16.msra.mxu0 0
      %347 = vmatprep.subr.bf16.mxu0 0
      %348 = vmatpush1.bf16.msra.mxu0 %v331
      %349 = vmatprep.subr.bf16.mxu0 0
      %350 = vmatpush2.bf16.msra.mxu0 0
      %351 = vmatprep.subr.bf16.mxu0 0
      %352 = vmatpush2.bf16.msra.mxu0 0
      %353 = vmatprep.subr.bf16.mxu0 0
      %354 = vmatpush2.bf16.msra.mxu0 0
      %355 = vmatprep.subr.bf16.mxu0 0
      %356 = vmatpush2.bf16.msra.mxu0 0
      %357 = vmatprep.subr.bf16.mxu0 0
      %358 = vmatpush2.bf16.msra.mxu0 0
      %359 = vmatprep.subr.bf16.mxu0 0
      %360 = vmatpush2.bf16.msra.mxu0 0
      %361 = vmatprep.subr.bf16.mxu0 0
      %362 = vmatpush2.bf16.msra.mxu0 0
      %363 = vmatprep.subr.bf16.mxu0 0
      %364 = vmatpush2.bf16.msra.mxu0 0
      %365 = vmatprep.mubr.bf16.mxu0 0
      %366 = vmatmul.mubr.bf16.gmra.mxu0 %v328
      %v367 = vpop.f32.mrf.mxu0
      %v368 = vadd.f32 0.0, %v367
      %v369 = vpop.f32.mrf.mxu0
      %v370 = vpop.f32.mrf.mxu0
      %v371 = vadd.f32 0.0, %v370
      %v372 = vpop.f32.mrf.mxu0
      %373 = vdwg.mxu0
      %374 = vrot.lane.b32.xlu0 %v122, 112
      %v375 = vpop.permute.xlu0 %374
      %376 = vrot.lane.b32.xlu0 %v123, 80
      %v377 = vpop.permute.xlu0 %376
      %v379 = vsel %vm127, %v375, 0
      %v382 = vsel %vm127, %v377, 0
      %384 = vmatprep.subr.bf16.mxu0 0
      %385 = vmatpush1.bf16.xpose.msra.mxu0 0
      %386 = vmatprep.subr.bf16.mxu0 0
      %387 = vmatpush1.bf16.xpose.msra.mxu0 0
      %388 = vmatprep.subr.bf16.mxu0 0
      %389 = vmatpush1.bf16.xpose.msra.mxu0 0
      %390 = vmatprep.subr.bf16.mxu0 0
      %391 = vmatpush1.bf16.xpose.msra.mxu0 0
      %392 = vmatprep.subr.bf16.mxu0 0
      %393 = vmatpush1.bf16.xpose.msra.mxu0 0
      %394 = vmatprep.subr.bf16.mxu0 0
      %395 = vmatpush1.bf16.xpose.msra.mxu0 0
      %396 = vmatprep.subr.bf16.mxu0 0
      %397 = vmatpush1.bf16.xpose.msra.mxu0 0
      %398 = vmatprep.subr.bf16.mxu0 0
      %399 = vmatpush1.bf16.xpose.msra.mxu0 %v382
      %400 = vmatprep.subr.bf16.mxu0 0
      %401 = vmatpush2.bf16.xpose.msra.mxu0 0
      %402 = vmatprep.subr.bf16.mxu0 0
      %403 = vmatpush2.bf16.xpose.msra.mxu0 0
      %404 = vmatprep.subr.bf16.mxu0 0
      %405 = vmatpush2.bf16.xpose.msra.mxu0 0
      %406 = vmatprep.subr.bf16.mxu0 0
      %407 = vmatpush2.bf16.xpose.msra.mxu0 0
      %408 = vmatprep.subr.bf16.mxu0 0
      %409 = vmatpush2.bf16.xpose.msra.mxu0 0
      %410 = vmatprep.subr.bf16.mxu0 0
      %411 = vmatpush2.bf16.xpose.msra.mxu0 0
      %412 = vmatprep.subr.bf16.mxu0 0
      %413 = vmatpush2.bf16.xpose.msra.mxu0 0
      %414 = vmatprep.subr.bf16.mxu0 0
      %415 = vmatpush2.bf16.xpose.msra.mxu0 0
      %416 = vmatprep.mubr.bf16.mxu0 0
      %417 = vmatmul.mubr.bf16.gmra.mxu0 %v379
      %v418 = vpop.f32.mrf.mxu0
      %v419 = vadd.f32 0.0, %v418
      %v420 = vpop.f32.mrf.mxu0
      %v421 = vpop.f32.mrf.mxu0
      %v422 = vadd.f32 0.0, %v421
      %v423 = vpop.f32.mrf.mxu0
      %424 = vdwg.mxu0
      %v425 = vsel %vm175, %v419, -inf
      %426 = vmax.xlane.f32.xlu0 %v425
      %v427 = vpop.xlane.xlu0 %426
      %v428 = vsel %vm179, %v422, -inf
      %429 = vmax.xlane.f32.xlu0 %v428
      %v430 = vpop.xlane.xlu0 %429
      %v431 = vsub.f32 %v419, %v427
      %v432 = vsub.f32 %v422, %v430
      %v433 = vmul.f32 %v431, 1.442695
      %v434 = vpow.pop %v433
      %v435 = vmul.f32 %v432, 1.442695
      %v436 = vpow.pop %v435
      %v437 = vsel %vm175, %v434, 0.0
      %438 = vadd.xlane.f32.xlu0 %v437
      %v439 = vpop.xlane.xlu0 %438
      %v440 = vsel %vm179, %v436, 0.0
      %441 = vadd.xlane.f32.xlu0 %v440
      %v442 = vpop.xlane.xlu0 %441
      %v443 = vrcp.pop %v439
      %v444 = vrcp.pop %v442
      %v445 = vmul.f32 %v434, %v443
      %v446 = vmul.f32 %v436, %v444
      %v447 = vpack.c.bf16 %v446, %v445
      %448 = vrot.lane.b32.xlu0 %v123, 48
      %v449 = vpop.permute.xlu0 %448
      %v451 = vsel %vm175, %v447, 0
      %v454 = vsel %vm205, %v449, 0
      %456 = vmatprep.subr.bf16.mxu0 0
      %457 = vmatpush1.bf16.msra.mxu0 0
      %458 = vmatprep.subr.bf16.mxu0 0
      %459 = vmatpush1.bf16.msra.mxu0 0
      %460 = vmatprep.subr.bf16.mxu0 0
      %461 = vmatpush1.bf16.msra.mxu0 0
      %462 = vmatprep.subr.bf16.mxu0 0
      %463 = vmatpush1.bf16.msra.mxu0 0
      %464 = vmatprep.subr.bf16.mxu0 0
      %465 = vmatpush1.bf16.msra.mxu0 0
      %466 = vmatprep.subr.bf16.mxu0 0
      %467 = vmatpush1.bf16.msra.mxu0 0
      %468 = vmatprep.subr.bf16.mxu0 0
      %469 = vmatpush1.bf16.msra.mxu0 0
      %470 = vmatprep.subr.bf16.mxu0 0
      %471 = vmatpush1.bf16.msra.mxu0 %v454
      %472 = vmatprep.subr.bf16.mxu0 0
      %473 = vmatpush2.bf16.msra.mxu0 0
      %474 = vmatprep.subr.bf16.mxu0 0
      %475 = vmatpush2.bf16.msra.mxu0 0
      %476 = vmatprep.subr.bf16.mxu0 0
      %477 = vmatpush2.bf16.msra.mxu0 0
      %478 = vmatprep.subr.bf16.mxu0 0
      %479 = vmatpush2.bf16.msra.mxu0 0
      %480 = vmatprep.subr.bf16.mxu0 0
      %481 = vmatpush2.bf16.msra.mxu0 0
      %482 = vmatprep.subr.bf16.mxu0 0
      %483 = vmatpush2.bf16.msra.mxu0 0
      %484 = vmatprep.subr.bf16.mxu0 0
      %485 = vmatpush2.bf16.msra.mxu0 0
      %486 = vmatprep.subr.bf16.mxu0 0
      %487 = vmatpush2.bf16.msra.mxu0 0
      %488 = vmatprep.mubr.bf16.mxu0 0
      %489 = vmatmul.mubr.bf16.gmra.mxu0 %v451
      %v490 = vpop.f32.mrf.mxu0
      %v491 = vadd.f32 0.0, %v490
      %v492 = vpop.f32.mrf.mxu0
      %v493 = vpop.f32.mrf.mxu0
      %v494 = vadd.f32 0.0, %v493
      %v495 = vpop.f32.mrf.mxu0
      %496 = vdwg.mxu0
      %497 = vrot.lane.b32.xlu0 %v122, 104
      %v498 = vpop.permute.xlu0 %497
      %499 = vrot.lane.b32.xlu0 %v123, 72
      %v500 = vpop.permute.xlu0 %499
      %v502 = vsel %vm127, %v498, 0
      %v505 = vsel %vm127, %v500, 0
      %507 = vmatprep.subr.bf16.mxu0 0
      %508 = vmatpush1.bf16.xpose.msra.mxu0 0
      %509 = vmatprep.subr.bf16.mxu0 0
      %510 = vmatpush1.bf16.xpose.msra.mxu0 0
      %511 = vmatprep.subr.bf16.mxu0 0
      %512 = vmatpush1.bf16.xpose.msra.mxu0 0
      %513 = vmatprep.subr.bf16.mxu0 0
      %514 = vmatpush1.bf16.xpose.msra.mxu0 0
      %515 = vmatprep.subr.bf16.mxu0 0
      %516 = vmatpush1.bf16.xpose.msra.mxu0 0
      %517 = vmatprep.subr.bf16.mxu0 0
      %518 = vmatpush1.bf16.xpose.msra.mxu0 0
      %519 = vmatprep.subr.bf16.mxu0 0
      %520 = vmatpush1.bf16.xpose.msra.mxu0 0
      %521 = vmatprep.subr.bf16.mxu0 0
      %522 = vmatpush1.bf16.xpose.msra.mxu0 %v505
      %523 = vmatprep.subr.bf16.mxu0 0
      %524 = vmatpush2.bf16.xpose.msra.mxu0 0
      %525 = vmatprep.subr.bf16.mxu0 0
      %526 = vmatpush2.bf16.xpose.msra.mxu0 0
      %527 = vmatprep.subr.bf16.mxu0 0
      %528 = vmatpush2.bf16.xpose.msra.mxu0 0
      %529 = vmatprep.subr.bf16.mxu0 0
      %530 = vmatpush2.bf16.xpose.msra.mxu0 0
      %531 = vmatprep.subr.bf16.mxu0 0
      %532 = vmatpush2.bf16.xpose.msra.mxu0 0
      %533 = vmatprep.subr.bf16.mxu0 0
      %534 = vmatpush2.bf16.xpose.msra.mxu0 0
      %535 = vmatprep.subr.bf16.mxu0 0
      %536 = vmatpush2.bf16.xpose.msra.mxu0 0
      %537 = vmatprep.subr.bf16.mxu0 0
      %538 = vmatpush2.bf16.xpose.msra.mxu0 0
      %539 = vmatprep.mubr.bf16.mxu0 0
      %540 = vmatmul.mubr.bf16.gmra.mxu0 %v502
      %v541 = vpop.f32.mrf.mxu0
      %v542 = vadd.f32 0.0, %v541
      %v543 = vpop.f32.mrf.mxu0
      %v544 = vpop.f32.mrf.mxu0
      %v545 = vadd.f32 0.0, %v544
      %v546 = vpop.f32.mrf.mxu0
      %547 = vdwg.mxu0
      %v548 = vsel %vm175, %v542, -inf
      %549 = vmax.xlane.f32.xlu0 %v548
      %v550 = vpop.xlane.xlu0 %549
      %v551 = vsel %vm179, %v545, -inf
      %552 = vmax.xlane.f32.xlu0 %v551
      %v553 = vpop.xlane.xlu0 %552
      %v554 = vsub.f32 %v542, %v550
      %v555 = vsub.f32 %v545, %v553
      %v556 = vmul.f32 %v554, 1.442695
      %v557 = vpow.pop %v556
      %v558 = vmul.f32 %v555, 1.442695
      %v559 = vpow.pop %v558
      %v560 = vsel %vm175, %v557, 0.0
      %561 = vadd.xlane.f32.xlu0 %v560
      %v562 = vpop.xlane.xlu0 %561
      %v563 = vsel %vm179, %v559, 0.0
      %564 = vadd.xlane.f32.xlu0 %v563
      %v565 = vpop.xlane.xlu0 %564
      %v566 = vrcp.pop %v562
      %v567 = vrcp.pop %v565
      %v568 = vmul.f32 %v557, %v566
      %v569 = vmul.f32 %v559, %v567
      %v570 = vpack.c.bf16 %v569, %v568
      %571 = vrot.lane.b32.xlu0 %v123, 40
      %v572 = vpop.permute.xlu0 %571
      %v574 = vsel %vm175, %v570, 0
      %v577 = vsel %vm205, %v572, 0
      %579 = vmatprep.subr.bf16.mxu0 0
      %580 = vmatpush1.bf16.msra.mxu0 0
      %581 = vmatprep.subr.bf16.mxu0 0
      %582 = vmatpush1.bf16.msra.mxu0 0
      %583 = vmatprep.subr.bf16.mxu0 0
      %584 = vmatpush1.bf16.msra.mxu0 0
      %585 = vmatprep.subr.bf16.mxu0 0
      %586 = vmatpush1.bf16.msra.mxu0 0
      %587 = vmatprep.subr.bf16.mxu0 0
      %588 = vmatpush1.bf16.msra.mxu0 0
      %589 = vmatprep.subr.bf16.mxu0 0
      %590 = vmatpush1.bf16.msra.mxu0 0
      %591 = vmatprep.subr.bf16.mxu0 0
      %592 = vmatpush1.bf16.msra.mxu0 0
      %593 = vmatprep.subr.bf16.mxu0 0
      %594 = vmatpush1.bf16.msra.mxu0 %v577
      %595 = vmatprep.subr.bf16.mxu0 0
      %596 = vmatpush2.bf16.msra.mxu0 0
      %597 = vmatprep.subr.bf16.mxu0 0
      %598 = vmatpush2.bf16.msra.mxu0 0
      %599 = vmatprep.subr.bf16.mxu0 0
      %600 = vmatpush2.bf16.msra.mxu0 0
      %601 = vmatprep.subr.bf16.mxu0 0
      %602 = vmatpush2.bf16.msra.mxu0 0
      %603 = vmatprep.subr.bf16.mxu0 0
      %604 = vmatpush2.bf16.msra.mxu0 0
      %605 = vmatprep.subr.bf16.mxu0 0
      %606 = vmatpush2.bf16.msra.mxu0 0
      %607 = vmatprep.subr.bf16.mxu0 0
      %608 = vmatpush2.bf16.msra.mxu0 0
      %609 = vmatprep.subr.bf16.mxu0 0
      %610 = vmatpush2.bf16.msra.mxu0 0
      %611 = vmatprep.mubr.bf16.mxu0 0
      %612 = vmatmul.mubr.bf16.gmra.mxu0 %v574
      %v613 = vpop.f32.mrf.mxu0
      %v614 = vadd.f32 0.0, %v613
      %v615 = vpop.f32.mrf.mxu0
      %v616 = vpop.f32.mrf.mxu0
      %v617 = vadd.f32 0.0, %v616
      %v618 = vpop.f32.mrf.mxu0
      %619 = vdwg.mxu0
      %620 = vst.msk [vmem:[%s116] sm:$0xff] %vm127, %v244
      %vm621 = vcmask 60416
      %622 = vst.msk [vmem:[%s116 + $0x8] sm:$0xf] %vm621, %v247
      %625 = vrot.lane.b32.xlu0 %v368, 8
      %v626 = vpop.permute.xlu0 %625
      %627 = vrot.lane.b32.xlu0 %v371, 8
      %v628 = vpop.permute.xlu0 %627
      %vm631 = vcmask 130112
      %632 = vst.msk [vmem:[%s116] sm:$0xff] %vm631, %v626
      %vm633 = vcmask 126016
      %634 = vst.msk [vmem:[%s116 + $0x8] sm:$0xf] %vm633, %v628
      %637 = vrot.lane.b32.xlu0 %v491, 16
      %v638 = vpop.permute.xlu0 %637
      %639 = vrot.lane.b32.xlu0 %v494, 16
      %v640 = vpop.permute.xlu0 %639
      %vm643 = vcmask 195712
      %644 = vst.msk [vmem:[%s116] sm:$0xff] %vm643, %v638
      %vm645 = vcmask 191616
      %646 = vst.msk [vmem:[%s116 + $0x8] sm:$0xf] %vm645, %v640
      %649 = vrot.lane.b32.xlu0 %v614, 24
      %v650 = vpop.permute.xlu0 %649
      %651 = vrot.lane.b32.xlu0 %v617, 24
      %v652 = vpop.permute.xlu0 %651
      %vm655 = vcmask 261312
      %656 = vst.msk [vmem:[%s116] sm:$0xff] %vm655, %v650
      %vm657 = vcmask 257216
      %658 = vst.msk [vmem:[%s116 + $0x8] sm:$0xf] %vm657, %v652
      %p659 = scmp.lt.s32.totalorder %s12, 1
      %s660 = scalar_select %p659, %s12, 1
      %s661 = smul.addr %s660, 2
      %s662 = smul.addr %s661, 8
      %s663 = scalar_lea.vmem %s1, %s662
      // Predicated region
      $region25: #{tabpfn_forward.17} parent=23 // pred_check
        %p664 = pneg %p56
      $region26: #{tabpfn_forward.17} parent=23 // pred_check_branch
        %666 = sbr.rel (%p664) target = $region28
      $region27: #{tabpfn_forward.17} parent=23 // pred_region
        _
      $region28: #{tabpfn_forward.17} parent=23 // pred_fallthru
        _
    $region24: #{tabpfn_forward.17} parent=5 // pred_fallthru
      _
    %p667 = scmp.le.s32.totalorder 2, %s7
    // Predicated region
    $region29: #{tabpfn_forward.17} parent=5 // pred_check
      %p668 = pneg %p667
    $region30: #{tabpfn_forward.17} parent=5 // pred_check_branch
      %670 = sbr.rel (%p668) target = $region32
    $region31: #{tabpfn_forward.17} parent=5 // pred_region
      %s671 = ssub.s32 %s7, 2
      // Predicated region
      $region33: #{tabpfn_forward.17} parent=31 // pred_check
        %p672 = pneg %p62
      $region34: #{tabpfn_forward.17} parent=31 // pred_check_branch
        %674 = sbr.rel (%p672) target = $region36
      $region35: #{tabpfn_forward.17} parent=31 // pred_region
        %p675 = scmp.lt.s32.totalorder %s13, 1
        %s676 = scalar_select %p675, %s13, 1
        %s677 = smul.addr %s676, 2
        %s678 = smul.addr %s677, 8
        %s679 = scalar_lea.vmem %s1, %s678
      $region36: #{tabpfn_forward.17} parent=31 // pred_fallthru
        _
    $region32: #{tabpfn_forward.17} parent=5 // pred_fallthru
      _
  $region6: #{tabpfn_forward.17} parent=0 // loop_footer
    %s11 = sadd.s32 1, %s7
  $region7: #{tabpfn_forward.17} parent=0 // loop_footer_branch
    %6 = sbr.rel target = $region3
  $region8: #{tabpfn_forward.17} parent=0 // loop_exit
    _

// kernel: tabpfn_forward.18
$region0: #{tabpfn_forward.18}
  #allocation0 [shape = 'u32[]', space=smem, size = 0x4, offset = 0x4, fixed_abs, tag = 'smem constant byte address 0x4 - core index']
  #allocation1 [shape = 'u32[144,128]{1,0:T(1,128)}', space=vmem, size = 0x12000, scoped, tag = 'internal scratch']
  %s0 = inlined_call_operand.vmem [shape: f32[24,32], index: 0, kind: input, shape index: {}]
  %s1 = inlined_call_operand.vmem [shape: f32[24,32], index: 1, kind: input, shape index: {}]
  %s2 = inlined_call_operand.vmem [shape: f32[32,32], index: 2, kind: input, shape index: {}]
  %s3 = inlined_call_operand.vmem [shape: f32[1,32], index: 3, kind: input, shape index: {}]
  %s4 = inlined_call_operand.vmem [shape: f32[1,32], index: 4, kind: input, shape index: {}]
  %s5 = inlined_call_operand.vmem [shape: f32[1,32], index: 5, kind: input, shape index: {}]
  %s6 = inlined_call_operand.vmem [shape: f32[24,32], index: 6, kind: output, shape index: {}]
  %s7 = sld [smem:[#allocation0]]
  $region34: #{tabpfn_forward.18} parent=0
    _
  %s9 = ssub.s32 1, %s7
  %s10 = scalar_select 0, %s9, %s7
  // Predicated region
  $region2: #{tabpfn_forward.18} parent=0 // pred_check
    _
  $region3: #{tabpfn_forward.18} parent=0 // pred_check_branch
    %12 = sbr.rel (0) target = $region5
  $region4: #{tabpfn_forward.18} parent=0 // pred_region
    _
  $region5: #{tabpfn_forward.18} parent=0 // pred_fallthru
    _
  // Predicated region
  $region6: #{tabpfn_forward.18} parent=0 // pred_check
    _
  $region7: #{tabpfn_forward.18} parent=0 // pred_check_branch
    %14 = sbr.rel (0) target = $region9
  $region8: #{tabpfn_forward.18} parent=0 // pred_region
    _
  $region9: #{tabpfn_forward.18} parent=0 // pred_fallthru
    _
  // Predicated region
  $region10: #{tabpfn_forward.18} parent=0 // pred_check
    _
  $region11: #{tabpfn_forward.18} parent=0 // pred_check_branch
    %16 = sbr.rel (0) target = $region13
  $region12: #{tabpfn_forward.18} parent=0 // pred_region
    _
  $region13: #{tabpfn_forward.18} parent=0 // pred_fallthru
    _
  // Predicated region
  $region14: #{tabpfn_forward.18} parent=0 // pred_check
    _
  $region15: #{tabpfn_forward.18} parent=0 // pred_check_branch
    %18 = sbr.rel (0) target = $region17
  $region16: #{tabpfn_forward.18} parent=0 // pred_region
    _
  $region17: #{tabpfn_forward.18} parent=0 // pred_fallthru
    _
  // Predicated region
  $region18: #{tabpfn_forward.18} parent=0 // pred_check
    _
  $region19: #{tabpfn_forward.18} parent=0 // pred_check_branch
    %20 = sbr.rel (0) target = $region21
  $region20: #{tabpfn_forward.18} parent=0 // pred_region
    _
  $region21: #{tabpfn_forward.18} parent=0 // pred_fallthru
    _
  // Predicated region
  $region22: #{tabpfn_forward.18} parent=0 // pred_check
    _
  $region23: #{tabpfn_forward.18} parent=0 // pred_check_branch
    %22 = sbr.rel (0) target = $region25
  $region24: #{tabpfn_forward.18} parent=0 // pred_region
    _
  $region25: #{tabpfn_forward.18} parent=0 // pred_fallthru
    _
  %v24 = vld [vmem:[%s1] sm:$0xff]
  %v25 = vld [vmem:[%s1 + $0x8] sm:$0xff]
  %v26 = vld [vmem:[%s1 + $0x10] sm:$0xff]
  %v27 = vld [vmem:[%s0] sm:$0xff]
  %v28 = vld [vmem:[%s0 + $0x8] sm:$0xff]
  %v29 = vld [vmem:[%s0 + $0x10] sm:$0xff]
  %v30 = vld [vmem:[%s2] sm:$0xff]
  %v31 = vld [vmem:[%s2 + $0x8] sm:$0xff]
  %v32 = vld [vmem:[%s2 + $0x10] sm:$0xff]
  %v33 = vld [vmem:[%s2 + $0x18] sm:$0xff]
  %v34 = vpack.c.bf16 %v28, %v27
  %v35 = vpack.c.bf16 %v29, %v29
  %v36 = vpack.c.bf16 %v31, %v30
  %v37 = vpack.c.bf16 %v33, %v32
  %vm38 = vcmask 261120
  %v40 = vsel %vm38, %v34, 0
  %v43 = vsel %vm38, %v35, 0
  %45 = vmatprep.subr.bf16.mxu0 0
  %46 = vmatpush1.bf16.msra.mxu0 0
  %47 = vmatprep.subr.bf16.mxu0 0
  %48 = vmatpush1.bf16.msra.mxu0 0
  %49 = vmatprep.subr.bf16.mxu0 0
  %50 = vmatpush1.bf16.msra.mxu0 0
  %51 = vmatprep.subr.bf16.mxu0 0
  %52 = vmatpush1.bf16.msra.mxu0 0
  %53 = vmatprep.subr.bf16.mxu0 0
  %54 = vmatpush1.bf16.msra.mxu0 0
  %55 = vmatprep.subr.bf16.mxu0 0
  %56 = vmatpush1.bf16.msra.mxu0 0
  %57 = vmatprep.subr.bf16.mxu0 0
  %58 = vmatpush1.bf16.msra.mxu0 %v37
  %59 = vmatprep.subr.bf16.mxu0 0
  %60 = vmatpush1.bf16.msra.mxu0 %v36
  %61 = vmatprep.subr.bf16.mxu0 0
  %62 = vmatpush2.bf16.msra.mxu0 0
  %63 = vmatprep.subr.bf16.mxu0 0
  %64 = vmatpush2.bf16.msra.mxu0 0
  %65 = vmatprep.subr.bf16.mxu0 0
  %66 = vmatpush2.bf16.msra.mxu0 0
  %67 = vmatprep.subr.bf16.mxu0 0
  %68 = vmatpush2.bf16.msra.mxu0 0
  %69 = vmatprep.subr.bf16.mxu0 0
  %70 = vmatpush2.bf16.msra.mxu0 0
  %71 = vmatprep.subr.bf16.mxu0 0
  %72 = vmatpush2.bf16.msra.mxu0 0
  %73 = vmatprep.subr.bf16.mxu0 0
  %74 = vmatpush2.bf16.msra.mxu0 0
  %75 = vmatprep.subr.bf16.mxu0 0
  %76 = vmatpush2.bf16.msra.mxu0 0
  %77 = vmatprep.mubr.bf16.mxu0 0
  %78 = vmatmul.mubr.bf16.gmra.mxu0 %v40
  %v79 = vpop.f32.mrf.mxu0
  %v80 = vadd.f32 0.0, %v79
  %v81 = vpop.f32.mrf.mxu0
  %v82 = vpop.f32.mrf.mxu0
  %v83 = vadd.f32 0.0, %v82
  %v84 = vpop.f32.mrf.mxu0
  %85 = vmatprep.mubr.bf16.mxu0 0
  %86 = vmatmul.mubr.bf16.gmra.mxu0 %v43
  %v87 = vpop.f32.mrf.mxu0
  %v88 = vadd.f32 0.0, %v87
  %v89 = vpop.f32.mrf.mxu0
  %v90 = vpop.f32.mrf.mxu0
  %v91 = vpop.f32.mrf.mxu0
  %92 = vdwg.mxu0
  %v93 = vadd.f32 %v24, %v80
  %v94 = vadd.f32 %v25, %v83
  %v95 = vadd.f32 %v26, %v88
  %v96 = vld [vmem:[%s3] sm:$0x1]
  %v98 = vlaneseq
  %v99 = vshrl.u32 %v98, 7
  %v100 = vsub.s32 0, %v99
  %v101 = vrot.slane %v96, %v100
  %v103 = vadd.f32 %v93, %v101
  %v104 = vadd.f32 %v94, %v101
  %v105 = vadd.f32 %v95, %v101
  %v106 = vld [vmem:[%s4] sm:$0x1]
  %v107 = vld [vmem:[%s5] sm:$0x1]
  %v108 = vsel %vm38, %v103, 0.0
  %109 = vadd.xlane.f32.xlu0 %v108
  %v110 = vpop.xlane.xlu0 %109
  %v111 = vsel %vm38, %v104, 0.0
  %112 = vadd.xlane.f32.xlu0 %v111
  %v113 = vpop.xlane.xlu0 %112
  %v114 = vsel %vm38, %v105, 0.0
  %115 = vadd.xlane.f32.xlu0 %v114
  %v116 = vpop.xlane.xlu0 %115
  %v117 = vrcp.pop 32.0
  %v118 = vmul.f32 %v110, %v117
  %v119 = vmul.f32 %v113, %v117
  %v120 = vmul.f32 %v116, %v117
  %v121 = vsub.f32 %v103, %v118
  %v122 = vsub.f32 %v104, %v119
  %v123 = vsub.f32 %v105, %v120
  %v124 = vmul.f32 %v121, %v121
  %v125 = vmul.f32 %v122, %v122
  %v126 = vmul.f32 %v123, %v123
  %v127 = vsel %vm38, %v124, 0.0
  %128 = vadd.xlane.f32.xlu0 %v127
  %v129 = vpop.xlane.xlu0 %128
  %v130 = vsel %vm38, %v125, 0.0
  %131 = vadd.xlane.f32.xlu0 %v130
  %v132 = vpop.xlane.xlu0 %131
  %v133 = vsel %vm38, %v126, 0.0
  %134 = vadd.xlane.f32.xlu0 %v133
  %v135 = vpop.xlane.xlu0 %134
  %v136 = vmul.f32 %v129, %v117
  %v137 = vmul.f32 %v132, %v117
  %v138 = vmul.f32 %v135, %v117
  %v139 = vadd.f32 %v136, 1e-05
  %v140 = vadd.f32 %v137, 1e-05
  %v141 = vadd.f32 %v138, 1e-05
  %v142 = vrsqrt.pop %v139
  %v143 = vrsqrt.pop %v140
  %v144 = vrsqrt.pop %v141
  %v145 = vmul.f32 %v121, %v142
  %v146 = vmul.f32 %v122, %v143
  %v147 = vmul.f32 %v123, %v144
  %v149 = vlaneseq
  %v150 = vshrl.u32 %v149, 7
  %v151 = vsub.s32 0, %v150
  %v152 = vrot.slane %v106, %v151
  %v154 = vmul.f32 %v145, %v152
  %v155 = vmul.f32 %v146, %v152
  %v156 = vmul.f32 %v147, %v152
  %v158 = vlaneseq
  %v159 = vshrl.u32 %v158, 7
  %v160 = vsub.s32 0, %v159
  %v161 = vrot.slane %v107, %v160
  %v163 = vadd.f32 %v154, %v161
  %v164 = vadd.f32 %v155, %v161
  %v165 = vadd.f32 %v156, %v161
  %166 = vst.msk [vmem:[%s6] sm:$0xff] %vm38, %v163
  %167 = vst.msk [vmem:[%s6 + $0x8] sm:$0xff] %vm38, %v164
  %168 = vst.msk [vmem:[%s6 + $0x10] sm:$0xff] %vm38, %v165
  // Predicated region
  $region26: #{tabpfn_forward.18} parent=0 // pred_check
    _
  $region27: #{tabpfn_forward.18} parent=0 // pred_check_branch
    %170 = sbr.rel (0) target = $region29
  $region28: #{tabpfn_forward.18} parent=0 // pred_region
    _
  $region29: #{tabpfn_forward.18} parent=0 // pred_fallthru
    _
  // Predicated region
  $region30: #{tabpfn_forward.18} parent=0 // pred_check
    _
  $region31: #{tabpfn_forward.18} parent=0 // pred_check_branch
    %172 = sbr.rel (0) target = $region33
  $region32: #{tabpfn_forward.18} parent=0 // pred_region
    _
  $region33: #{tabpfn_forward.18} parent=0 // pred_fallthru
    _

// kernel: tabpfn_forward.25
$region0: #{tabpfn_forward.25}
  #allocation0 [shape = 'u32[]', space=smem, size = 0x4, offset = 0x4, fixed_abs, tag = 'smem constant byte address 0x4 - core index']
  #allocation1 [shape = 'u32[144,128]{1,0:T(1,128)}', space=vmem, size = 0x12000, scoped, tag = 'internal scratch']
  %s0 = inlined_call_operand.vmem [shape: f32[16,32], index: 0, kind: input, shape index: {}]
  %s1 = inlined_call_operand.vmem [shape: f32[32,64], index: 1, kind: input, shape index: {}]
  %s2 = inlined_call_operand.vmem [shape: f32[1,64], index: 2, kind: input, shape index: {}]
  %s3 = inlined_call_operand.vmem [shape: f32[16,64], index: 3, kind: output, shape index: {}]
  %s4 = sld [smem:[#allocation0]]
  $region22: #{tabpfn_forward.25} parent=0
    _
  %s6 = ssub.s32 1, %s4
  %s7 = scalar_select 0, %s6, %s4
  // Predicated region
  $region2: #{tabpfn_forward.25} parent=0 // pred_check
    _
  $region3: #{tabpfn_forward.25} parent=0 // pred_check_branch
    %9 = sbr.rel (0) target = $region5
  $region4: #{tabpfn_forward.25} parent=0 // pred_region
    _
  $region5: #{tabpfn_forward.25} parent=0 // pred_fallthru
    _
  // Predicated region
  $region6: #{tabpfn_forward.25} parent=0 // pred_check
    _
  $region7: #{tabpfn_forward.25} parent=0 // pred_check_branch
    %11 = sbr.rel (0) target = $region9
  $region8: #{tabpfn_forward.25} parent=0 // pred_region
    _
  $region9: #{tabpfn_forward.25} parent=0 // pred_fallthru
    _
  // Predicated region
  $region10: #{tabpfn_forward.25} parent=0 // pred_check
    _
  $region11: #{tabpfn_forward.25} parent=0 // pred_check_branch
    %13 = sbr.rel (0) target = $region13
  $region12: #{tabpfn_forward.25} parent=0 // pred_region
    _
  $region13: #{tabpfn_forward.25} parent=0 // pred_fallthru
    _
  %v15 = vld [vmem:[%s0] sm:$0xff]
  %v16 = vld [vmem:[%s0 + $0x8] sm:$0xff]
  %v17 = vld [vmem:[%s1] sm:$0xff]
  %v18 = vld [vmem:[%s1 + $0x8] sm:$0xff]
  %v19 = vld [vmem:[%s1 + $0x10] sm:$0xff]
  %v20 = vld [vmem:[%s1 + $0x18] sm:$0xff]
  %v21 = vpack.c.bf16 %v16, %v15
  %v22 = vpack.c.bf16 %v18, %v17
  %v23 = vpack.c.bf16 %v20, %v19
  %v24 = vld [vmem:[%s2] sm:$0x1]
  %v26 = vlaneseq
  %v27 = vshrl.u32 %v26, 7
  %v28 = vsub.s32 0, %v27
  %v29 = vrot.slane %v24, %v28
  %vm31 = vcmask 261120
  %v33 = vsel %vm31, %v21, 0
  %35 = vmatprep.subr.bf16.mxu0 0
  %36 = vmatpush1.bf16.msra.mxu0 0
  %37 = vmatprep.subr.bf16.mxu0 0
  %38 = vmatpush1.bf16.msra.mxu0 0
  %39 = vmatprep.subr.bf16.mxu0 0
  %40 = vmatpush1.bf16.msra.mxu0 0
  %41 = vmatprep.subr.bf16.mxu0 0
  %42 = vmatpush1.bf16.msra.mxu0 0
  %43 = vmatprep.subr.bf16.mxu0 0
  %44 = vmatpush1.bf16.msra.mxu0 0
  %45 = vmatprep.subr.bf16.mxu0 0
  %46 = vmatpush1.bf16.msra.mxu0 0
  %47 = vmatprep.subr.bf16.mxu0 0
  %48 = vmatpush1.bf16.msra.mxu0 %v23
  %49 = vmatprep.subr.bf16.mxu0 0
  %50 = vmatpush1.bf16.msra.mxu0 %v22
  %51 = vmatprep.subr.bf16.mxu0 0
  %52 = vmatpush2.bf16.msra.mxu0 0
  %53 = vmatprep.subr.bf16.mxu0 0
  %54 = vmatpush2.bf16.msra.mxu0 0
  %55 = vmatprep.subr.bf16.mxu0 0
  %56 = vmatpush2.bf16.msra.mxu0 0
  %57 = vmatprep.subr.bf16.mxu0 0
  %58 = vmatpush2.bf16.msra.mxu0 0
  %59 = vmatprep.subr.bf16.mxu0 0
  %60 = vmatpush2.bf16.msra.mxu0 0
  %61 = vmatprep.subr.bf16.mxu0 0
  %62 = vmatpush2.bf16.msra.mxu0 0
  %63 = vmatprep.subr.bf16.mxu0 0
  %64 = vmatpush2.bf16.msra.mxu0 0
  %65 = vmatprep.subr.bf16.mxu0 0
  %66 = vmatpush2.bf16.msra.mxu0 0
  %67 = vmatprep.mubr.bf16.mxu0 0
  %68 = vmatmul.mubr.bf16.gmra.mxu0 %v33
  %v69 = vpop.f32.mrf.mxu0
  %v70 = vadd.f32 %v29, %v69
  %v71 = vpop.f32.mrf.mxu0
  %v72 = vpop.f32.mrf.mxu0
  %v73 = vadd.f32 %v29, %v72
  %v74 = vpop.f32.mrf.mxu0
  %75 = vdwg.mxu0
  %vm76 = vcmask 523264
  %77 = vst.msk [vmem:[%s3] sm:$0xff] %vm76, %v70
  %78 = vst.msk [vmem:[%s3 + $0x8] sm:$0xff] %vm76, %v73
  // Predicated region
  $region14: #{tabpfn_forward.25} parent=0 // pred_check
    _
  $region15: #{tabpfn_forward.25} parent=0 // pred_check_branch
    %80 = sbr.rel (0) target = $region17
  $region16: #{tabpfn_forward.25} parent=0 // pred_region
    _
  $region17: #{tabpfn_forward.25} parent=0 // pred_fallthru
    _
  // Predicated region
  $region18: #{tabpfn_forward.25} parent=0 // pred_check
    _
  $region19: #{tabpfn_forward.25} parent=0 // pred_check_branch
    %82 = sbr.rel (0) target = $region21
  $region20: #{tabpfn_forward.25} parent=0 // pred_region
    _
  $region21: #{tabpfn_forward.25} parent=0 // pred_fallthru
    _

// kernel: tabpfn_forward.19
$region0: #{tabpfn_forward.19}
  #allocation0 [shape = 'u32[]', space=smem, size = 0x4, offset = 0x4, fixed_abs, tag = 'smem constant byte address 0x4 - core index']
  #allocation1 [shape = 'u32[144,128]{1,0:T(1,128)}', space=vmem, size = 0x12000, scoped, tag = 'internal scratch']
  %s0 = inlined_call_operand.vmem [shape: f32[24,32], index: 0, kind: input, shape index: {}]
  %s1 = inlined_call_operand.vmem [shape: f32[32,128], index: 1, kind: input, shape index: {}]
  %s2 = inlined_call_operand.vmem [shape: f32[1,128], index: 2, kind: input, shape index: {}]
  %s3 = inlined_call_operand.vmem [shape: f32[128,32], index: 3, kind: input, shape index: {}]
  %s4 = inlined_call_operand.vmem [shape: f32[1,32], index: 4, kind: input, shape index: {}]
  %s5 = inlined_call_operand.vmem [shape: f32[1,32], index: 5, kind: input, shape index: {}]
  %s6 = inlined_call_operand.vmem [shape: f32[1,32], index: 6, kind: input, shape index: {}]
  %s7 = inlined_call_operand.vmem [shape: f32[24,32], index: 7, kind: output, shape index: {}]
  %s8 = sld [smem:[#allocation0]]
  $region38: #{tabpfn_forward.19} parent=0
    _
  %s10 = ssub.s32 1, %s8
  %s11 = scalar_select 0, %s10, %s8
  // Predicated region
  $region2: #{tabpfn_forward.19} parent=0 // pred_check
    _
  $region3: #{tabpfn_forward.19} parent=0 // pred_check_branch
    %13 = sbr.rel (0) target = $region5
  $region4: #{tabpfn_forward.19} parent=0 // pred_region
    _
  $region5: #{tabpfn_forward.19} parent=0 // pred_fallthru
    _
  // Predicated region
  $region6: #{tabpfn_forward.19} parent=0 // pred_check
    _
  $region7: #{tabpfn_forward.19} parent=0 // pred_check_branch
    %15 = sbr.rel (0) target = $region9
  $region8: #{tabpfn_forward.19} parent=0 // pred_region
    _
  $region9: #{tabpfn_forward.19} parent=0 // pred_fallthru
    _
  // Predicated region
  $region10: #{tabpfn_forward.19} parent=0 // pred_check
    _
  $region11: #{tabpfn_forward.19} parent=0 // pred_check_branch
    %17 = sbr.rel (0) target = $region13
  $region12: #{tabpfn_forward.19} parent=0 // pred_region
    _
  $region13: #{tabpfn_forward.19} parent=0 // pred_fallthru
    _
  // Predicated region
  $region14: #{tabpfn_forward.19} parent=0 // pred_check
    _
  $region15: #{tabpfn_forward.19} parent=0 // pred_check_branch
    %19 = sbr.rel (0) target = $region17
  $region16: #{tabpfn_forward.19} parent=0 // pred_region
    _
  $region17: #{tabpfn_forward.19} parent=0 // pred_fallthru
    _
  // Predicated region
  $region18: #{tabpfn_forward.19} parent=0 // pred_check
    _
  $region19: #{tabpfn_forward.19} parent=0 // pred_check_branch
    %21 = sbr.rel (0) target = $region21
  $region20: #{tabpfn_forward.19} parent=0 // pred_region
    _
  $region21: #{tabpfn_forward.19} parent=0 // pred_fallthru
    _
  // Predicated region
  $region22: #{tabpfn_forward.19} parent=0 // pred_check
    _
  $region23: #{tabpfn_forward.19} parent=0 // pred_check_branch
    %23 = sbr.rel (0) target = $region25
  $region24: #{tabpfn_forward.19} parent=0 // pred_region
    _
  $region25: #{tabpfn_forward.19} parent=0 // pred_fallthru
    _
  // Predicated region
  $region26: #{tabpfn_forward.19} parent=0 // pred_check
    _
  $region27: #{tabpfn_forward.19} parent=0 // pred_check_branch
    %25 = sbr.rel (0) target = $region29
  $region28: #{tabpfn_forward.19} parent=0 // pred_region
    _
  $region29: #{tabpfn_forward.19} parent=0 // pred_fallthru
    _
  %v27 = vld [vmem:[%s0] sm:$0xff]
  %v28 = vld [vmem:[%s0 + $0x8] sm:$0xff]
  %v29 = vld [vmem:[%s0 + $0x10] sm:$0xff]
  %v30 = vld [vmem:[%s1] sm:$0xff]
  %v31 = vld [vmem:[%s1 + $0x8] sm:$0xff]
  %v32 = vld [vmem:[%s1 + $0x10] sm:$0xff]
  %v33 = vld [vmem:[%s1 + $0x18] sm:$0xff]
  %v34 = vpack.c.bf16 %v28, %v27
  %v35 = vpack.c.bf16 %v29, %v29
  %v36 = vpack.c.bf16 %v31, %v30
  %v37 = vpack.c.bf16 %v33, %v32
  %v38 = vld [vmem:[%s2] sm:$0x1]
  %v40 = vlaneseq
  %v41 = vshrl.u32 %v40, 7
  %v42 = vsub.s32 0, %v41
  %v43 = vrot.slane %v38, %v42
  %vm45 = vcmask 261120
  %v47 = vsel %vm45, %v34, 0
  %v50 = vsel %vm45, %v35, 0
  %52 = vmatprep.subr.bf16.mxu0 0
  %53 = vmatpush1.bf16.msra.mxu0 0
  %54 = vmatprep.subr.bf16.mxu0 0
  %55 = vmatpush1.bf16.msra.mxu0 0
  %56 = vmatprep.subr.bf16.mxu0 0
  %57 = vmatpush1.bf16.msra.mxu0 0
  %58 = vmatprep.subr.bf16.mxu0 0
  %59 = vmatpush1.bf16.msra.mxu0 0
  %60 = vmatprep.subr.bf16.mxu0 0
  %61 = vmatpush1.bf16.msra.mxu0 0
  %62 = vmatprep.subr.bf16.mxu0 0
  %63 = vmatpush1.bf16.msra.mxu0 0
  %64 = vmatprep.subr.bf16.mxu0 0
  %65 = vmatpush1.bf16.msra.mxu0 %v37
  %66 = vmatprep.subr.bf16.mxu0 0
  %67 = vmatpush1.bf16.msra.mxu0 %v36
  %68 = vmatprep.subr.bf16.mxu0 0
  %69 = vmatpush2.bf16.msra.mxu0 0
  %70 = vmatprep.subr.bf16.mxu0 0
  %71 = vmatpush2.bf16.msra.mxu0 0
  %72 = vmatprep.subr.bf16.mxu0 0
  %73 = vmatpush2.bf16.msra.mxu0 0
  %74 = vmatprep.subr.bf16.mxu0 0
  %75 = vmatpush2.bf16.msra.mxu0 0
  %76 = vmatprep.subr.bf16.mxu0 0
  %77 = vmatpush2.bf16.msra.mxu0 0
  %78 = vmatprep.subr.bf16.mxu0 0
  %79 = vmatpush2.bf16.msra.mxu0 0
  %80 = vmatprep.subr.bf16.mxu0 0
  %81 = vmatpush2.bf16.msra.mxu0 0
  %82 = vmatprep.subr.bf16.mxu0 0
  %83 = vmatpush2.bf16.msra.mxu0 0
  %84 = vmatprep.mubr.bf16.mxu0 0
  %85 = vmatmul.mubr.bf16.gmra.mxu0 %v47
  %v86 = vpop.f32.mrf.mxu0
  %v87 = vadd.f32 %v43, %v86
  %v88 = vpop.f32.mrf.mxu0
  %v89 = vpop.f32.mrf.mxu0
  %v90 = vadd.f32 %v43, %v89
  %v91 = vpop.f32.mrf.mxu0
  %92 = vmatprep.mubr.bf16.mxu0 0
  %93 = vmatmul.mubr.bf16.gmra.mxu0 %v50
  %v94 = vpop.f32.mrf.mxu0
  %v95 = vadd.f32 %v43, %v94
  %v96 = vpop.f32.mrf.mxu0
  %v97 = vpop.f32.mrf.mxu0
  %v98 = vpop.f32.mrf.mxu0
  %99 = vdwg.mxu0
  %v100 = vmul.f32 %v87, 0.5
  %v101 = vmul.f32 %v90, 0.5
  %v102 = vmul.f32 %v95, 0.5
  %v103 = vmul.f32 %v87, 0.70710677
  %v104 = vmul.f32 %v90, 0.70710677
  %v105 = vmul.f32 %v95, 0.70710677
  %v106 = vand.u32 2147483647, %v103
  %v107 = vand.u32 2147483647, %v104
  %v108 = vand.u32 2147483647, %v105
  %v109 = vmul.f32 %v106, 0.3275911
  %v110 = vmul.f32 %v107, 0.3275911
  %v111 = vmul.f32 %v108, 0.3275911
  %v112 = vadd.f32 %v109, 1.0
  %v113 = vadd.f32 %v110, 1.0
  %v114 = vadd.f32 %v111, 1.0
  %v115 = vrcp.pop %v112
  %v116 = vmul.f32 1.0, %v115
  %v117 = vrcp.pop %v113
  %v118 = vmul.f32 1.0, %v117
  %v119 = vrcp.pop %v114
  %v120 = vmul.f32 1.0, %v119
  %v121 = vmul.f32 %v116, 1.0614054
  %v122 = vmul.f32 %v118, 1.0614054
  %v123 = vmul.f32 %v120, 1.0614054
  %v124 = vadd.f32 %v121, -1.4531521
  %v125 = vadd.f32 %v122, -1.4531521
  %v126 = vadd.f32 %v123, -1.4531521
  %v127 = vmul.f32 %v124, %v116
  %v128 = vmul.f32 %v125, %v118
  %v129 = vmul.f32 %v126, %v120
  %v130 = vadd.f32 %v127, 1.4214138
  %v131 = vadd.f32 %v128, 1.4214138
  %v132 = vadd.f32 %v129, 1.4214138
  %v133 = vmul.f32 %v130, %v116
  %v134 = vmul.f32 %v131, %v118
  %v135 = vmul.f32 %v132, %v120
  %v136 = vadd.f32 %v133, -0.28449672
  %v137 = vadd.f32 %v134, -0.28449672
  %v138 = vadd.f32 %v135, -0.28449672
  %v139 = vmul.f32 %v136, %v116
  %v140 = vmul.f32 %v137, %v118
  %v141 = vmul.f32 %v138, %v120
  %v142 = vadd.f32 %v139, 0.2548296
  %v143 = vadd.f32 %v140, 0.2548296
  %v144 = vadd.f32 %v141, 0.2548296
  %v145 = vmul.f32 %v142, %v116
  %v146 = vmul.f32 %v143, %v118
  %v147 = vmul.f32 %v144, %v120
  %v148 = vsub.f32 0.0, %v106
  %v149 = vsub.f32 0.0, %v107
  %v150 = vsub.f32 0.0, %v108
  %v151 = vmul.f32 %v148, %v106
  %v152 = vmul.f32 %v149, %v107
  %v153 = vmul.f32 %v150, %v108
  %v154 = vmul.f32 %v151, 1.442695
  %v155 = vpow.pop %v154
  %v156 = vmul.f32 %v152, 1.442695
  %v157 = vpow.pop %v156
  %v158 = vmul.f32 %v153, 1.442695
  %v159 = vpow.pop %v158
  %v160 = vmul.f32 %v145, %v155
  %v161 = vmul.f32 %v146, %v157
  %v162 = vmul.f32 %v147, %v159
  %v163 = vsub.f32 1.0, %v160
  %v164 = vsub.f32 1.0, %v161
  %v165 = vsub.f32 1.0, %v162
  %vm166 = vcmp.ge.f32.partialorder %v103, 0.0
  %vm167 = vcmp.ge.f32.partialorder %v104, 0.0
  %vm168 = vcmp.ge.f32.partialorder %v105, 0.0
  %v169 = vsub.f32 0.0, %v163
  %v170 = vsub.f32 0.0, %v164
  %v171 = vsub.f32 0.0, %v165
  %v172 = vsel %vm166, %v163, %v169
  %v173 = vsel %vm167, %v164, %v170
  %v174 = vsel %vm168, %v165, %v171
  %v175 = vadd.f32 %v172, 1.0
  %v176 = vadd.f32 %v173, 1.0
  %v177 = vadd.f32 %v174, 1.0
  %v178 = vmul.f32 %v100, %v175
  %v179 = vmul.f32 %v101, %v176
  %v180 = vmul.f32 %v102, %v177
  %v181 = vld [vmem:[%s3] sm:$0xff]
  %v182 = vld [vmem:[%s3 + $0x8] sm:$0xff]
  %v183 = vld [vmem:[%s3 + $0x10] sm:$0xff]
  %v184 = vld [vmem:[%s3 + $0x18] sm:$0xff]
  %v185 = vld [vmem:[%s3 + $0x20] sm:$0xff]
  %v186 = vld [vmem:[%s3 + $0x28] sm:$0xff]
  %v187 = vld [vmem:[%s3 + $0x30] sm:$0xff]
  %v188 = vld [vmem:[%s3 + $0x38] sm:$0xff]
  %v189 = vld [vmem:[%s3 + $0x40] sm:$0xff]
  %v190 = vld [vmem:[%s3 + $0x48] sm:$0xff]
  %v191 = vld [vmem:[%s3 + $0x50] sm:$0xff]
  %v192 = vld [vmem:[%s3 + $0x58] sm:$0xff]
  %v193 = vld [vmem:[%s3 + $0x60] sm:$0xff]
  %v194 = vld [vmem:[%s3 + $0x68] sm:$0xff]
  %v195 = vld [vmem:[%s3 + $0x70] sm:$0xff]
  %v196 = vld [vmem:[%s3 + $0x78] sm:$0xff]
  %v197 = vpack.c.bf16 %v179, %v178
  %v198 = vpack.c.bf16 %v180, %v180
  %v199 = vpack.c.bf16 %v182, %v181
  %v200 = vpack.c.bf16 %v184, %v183
  %v201 = vpack.c.bf16 %v186, %v185
  %v202 = vpack.c.bf16 %v188, %v187
  %v203 = vpack.c.bf16 %v190, %v189
  %v204 = vpack.c.bf16 %v192, %v191
  %v205 = vpack.c.bf16 %v194, %v193
  %v206 = vpack.c.bf16 %v196, %v195
  %207 = vmatprep.subr.bf16.mxu0 0
  %208 = vmatpush1.bf16.msra.mxu0 %v206
  %209 = vmatprep.subr.bf16.mxu0 0
  %210 = vmatpush1.bf16.msra.mxu0 %v205
  %211 = vmatprep.subr.bf16.mxu0 0
  %212 = vmatpush1.bf16.msra.mxu0 %v204
  %213 = vmatprep.subr.bf16.mxu0 0
  %214 = vmatpush1.bf16.msra.mxu0 %v203
  %215 = vmatprep.subr.bf16.mxu0 0
  %216 = vmatpush1.bf16.msra.mxu0 %v202
  %217 = vmatprep.subr.bf16.mxu0 0
  %218 = vmatpush1.bf16.msra.mxu0 %v201
  %219 = vmatprep.subr.bf16.mxu0 0
  %220 = vmatpush1.bf16.msra.mxu0 %v200
  %221 = vmatprep.subr.bf16.mxu0 0
  %222 = vmatpush1.bf16.msra.mxu0 %v199
  %223 = vmatprep.subr.bf16.mxu0 0
  %224 = vmatpush2.bf16.msra.mxu0 0
  %225 = vmatprep.subr.bf16.mxu0 0
  %226 = vmatpush2.bf16.msra.mxu0 0
  %227 = vmatprep.subr.bf16.mxu0 0
  %228 = vmatpush2.bf16.msra.mxu0 0
  %229 = vmatprep.subr.bf16.mxu0 0
  %230 = vmatpush2.bf16.msra.mxu0 0
  %231 = vmatprep.subr.bf16.mxu0 0
  %232 = vmatpush2.bf16.msra.mxu0 0
  %233 = vmatprep.subr.bf16.mxu0 0
  %234 = vmatpush2.bf16.msra.mxu0 0
  %235 = vmatprep.subr.bf16.mxu0 0
  %236 = vmatpush2.bf16.msra.mxu0 0
  %237 = vmatprep.subr.bf16.mxu0 0
  %238 = vmatpush2.bf16.msra.mxu0 0
  %239 = vmatprep.mubr.bf16.mxu0 0
  %240 = vmatmul.mubr.bf16.gmra.mxu0 %v197
  %v241 = vpop.f32.mrf.mxu0
  %v242 = vadd.f32 0.0, %v241
  %v243 = vpop.f32.mrf.mxu0
  %v244 = vpop.f32.mrf.mxu0
  %v245 = vadd.f32 0.0, %v244
  %v246 = vpop.f32.mrf.mxu0
  %247 = vmatprep.mubr.bf16.mxu0 0
  %248 = vmatmul.mubr.bf16.gmra.mxu0 %v198
  %v249 = vpop.f32.mrf.mxu0
  %v250 = vadd.f32 0.0, %v249
  %v251 = vpop.f32.mrf.mxu0
  %v252 = vpop.f32.mrf.mxu0
  %v253 = vpop.f32.mrf.mxu0
  %254 = vdwg.mxu0
  %v255 = vadd.f32 %v27, %v242
  %v256 = vadd.f32 %v28, %v245
  %v257 = vadd.f32 %v29, %v250
  %v258 = vld [vmem:[%s4] sm:$0x1]
  %v260 = vlaneseq
  %v261 = vshrl.u32 %v260, 7
  %v262 = vsub.s32 0, %v261
  %v263 = vrot.slane %v258, %v262
  %v265 = vadd.f32 %v255, %v263
  %v266 = vadd.f32 %v256, %v263
  %v267 = vadd.f32 %v257, %v263
  %v268 = vld [vmem:[%s5] sm:$0x1]
  %v269 = vld [vmem:[%s6] sm:$0x1]
  %v270 = vsel %vm45, %v265, 0.0
  %271 = vadd.xlane.f32.xlu0 %v270
  %v272 = vpop.xlane.xlu0 %271
  %v273 = vsel %vm45, %v266, 0.0
  %274 = vadd.xlane.f32.xlu0 %v273
  %v275 = vpop.xlane.xlu0 %274
  %v276 = vsel %vm45, %v267, 0.0
  %277 = vadd.xlane.f32.xlu0 %v276
  %v278 = vpop.xlane.xlu0 %277
  %v279 = vrcp.pop 32.0
  %v280 = vmul.f32 %v272, %v279
  %v281 = vmul.f32 %v275, %v279
  %v282 = vmul.f32 %v278, %v279
  %v283 = vsub.f32 %v265, %v280
  %v284 = vsub.f32 %v266, %v281
  %v285 = vsub.f32 %v267, %v282
  %v286 = vmul.f32 %v283, %v283
  %v287 = vmul.f32 %v284, %v284
  %v288 = vmul.f32 %v285, %v285
  %v289 = vsel %vm45, %v286, 0.0
  %290 = vadd.xlane.f32.xlu0 %v289
  %v291 = vpop.xlane.xlu0 %290
  %v292 = vsel %vm45, %v287, 0.0
  %293 = vadd.xlane.f32.xlu0 %v292
  %v294 = vpop.xlane.xlu0 %293
  %v295 = vsel %vm45, %v288, 0.0
  %296 = vadd.xlane.f32.xlu0 %v295
  %v297 = vpop.xlane.xlu0 %296
  %v298 = vmul.f32 %v291, %v279
  %v299 = vmul.f32 %v294, %v279
  %v300 = vmul.f32 %v297, %v279
  %v301 = vadd.f32 %v298, 1e-05
  %v302 = vadd.f32 %v299, 1e-05
  %v303 = vadd.f32 %v300, 1e-05
  %v304 = vrsqrt.pop %v301
  %v305 = vrsqrt.pop %v302
  %v306 = vrsqrt.pop %v303
  %v307 = vmul.f32 %v283, %v304
  %v308 = vmul.f32 %v284, %v305
  %v309 = vmul.f32 %v285, %v306
  %v311 = vlaneseq
  %v312 = vshrl.u32 %v311, 7
  %v313 = vsub.s32 0, %v312
  %v314 = vrot.slane %v268, %v313
  %v316 = vmul.f32 %v307, %v314
  %v317 = vmul.f32 %v308, %v314
  %v318 = vmul.f32 %v309, %v314
  %v320 = vlaneseq
  %v321 = vshrl.u32 %v320, 7
  %v322 = vsub.s32 0, %v321
  %v323 = vrot.slane %v269, %v322
  %v325 = vadd.f32 %v316, %v323
  %v326 = vadd.f32 %v317, %v323
  %v327 = vadd.f32 %v318, %v323
  %328 = vst.msk [vmem:[%s7] sm:$0xff] %vm45, %v325
  %329 = vst.msk [vmem:[%s7 + $0x8] sm:$0xff] %vm45, %v326
  %330 = vst.msk [vmem:[%s7 + $0x10] sm:$0xff] %vm45, %v327
  // Predicated region
  $region30: #{tabpfn_forward.19} parent=0 // pred_check
    _
  $region31: #{tabpfn_forward.19} parent=0 // pred_check_branch
    %332 = sbr.rel (0) target = $region33
  $region32: #{tabpfn_forward.19} parent=0 // pred_region
    _
  $region33: #{tabpfn_forward.19} parent=0 // pred_fallthru
    _
  // Predicated region
  $region34: #{tabpfn_forward.19} parent=0 // pred_check
    _
  $region35: #{tabpfn_forward.19} parent=0 // pred_check_branch
    %334 = sbr.rel (0) target = $region37
  $region36: #{tabpfn_forward.19} parent=0 // pred_region
    _
  $region37: #{tabpfn_forward.19} parent=0 // pred_fallthru
    _

// kernel: tabpfn_forward.24
$region0: #{tabpfn_forward.24}
  #allocation0 [shape = 'u32[]', space=smem, size = 0x4, offset = 0x4, fixed_abs, tag = 'smem constant byte address 0x4 - core index']
  #allocation1 [shape = 'u32[144,128]{1,0:T(1,128)}', space=vmem, size = 0x12000, scoped, tag = 'internal scratch']
  %s0 = inlined_call_operand.vmem [shape: f32[8,32], index: 0, kind: input, shape index: {}]
  %s1 = inlined_call_operand.vmem [shape: f32[32,32], index: 1, kind: input, shape index: {}]
  %s2 = inlined_call_operand.vmem [shape: f32[1,32], index: 2, kind: input, shape index: {}]
  %s3 = inlined_call_operand.vmem [shape: f32[8,32], index: 3, kind: output, shape index: {}]
  %s4 = sld [smem:[#allocation0]]
  $region22: #{tabpfn_forward.24} parent=0
    _
  %s6 = ssub.s32 1, %s4
  %s7 = scalar_select 0, %s6, %s4
  // Predicated region
  $region2: #{tabpfn_forward.24} parent=0 // pred_check
    _
  $region3: #{tabpfn_forward.24} parent=0 // pred_check_branch
    %9 = sbr.rel (0) target = $region5
  $region4: #{tabpfn_forward.24} parent=0 // pred_region
    _
  $region5: #{tabpfn_forward.24} parent=0 // pred_fallthru
    _
  // Predicated region
  $region6: #{tabpfn_forward.24} parent=0 // pred_check
    _
  $region7: #{tabpfn_forward.24} parent=0 // pred_check_branch
    %11 = sbr.rel (0) target = $region9
  $region8: #{tabpfn_forward.24} parent=0 // pred_region
    _
  $region9: #{tabpfn_forward.24} parent=0 // pred_fallthru
    _
  // Predicated region
  $region10: #{tabpfn_forward.24} parent=0 // pred_check
    _
  $region11: #{tabpfn_forward.24} parent=0 // pred_check_branch
    %13 = sbr.rel (0) target = $region13
  $region12: #{tabpfn_forward.24} parent=0 // pred_region
    _
  $region13: #{tabpfn_forward.24} parent=0 // pred_fallthru
    _
  %v15 = vld [vmem:[%s0] sm:$0xff]
  %v16 = vld [vmem:[%s1] sm:$0xff]
  %v17 = vld [vmem:[%s1 + $0x8] sm:$0xff]
  %v18 = vld [vmem:[%s1 + $0x10] sm:$0xff]
  %v19 = vld [vmem:[%s1 + $0x18] sm:$0xff]
  %v20 = vpack.c.bf16 %v15, %v15
  %v21 = vpack.c.bf16 %v17, %v16
  %v22 = vpack.c.bf16 %v19, %v18
  %v23 = vld [vmem:[%s2] sm:$0x1]
  %v25 = vlaneseq
  %v26 = vshrl.u32 %v25, 7
  %v27 = vsub.s32 0, %v26
  %v28 = vrot.slane %v23, %v27
  %vm30 = vcmask 261120
  %v32 = vsel %vm30, %v20, 0
  %34 = vmatprep.subr.bf16.mxu0 0
  %35 = vmatpush1.bf16.msra.mxu0 0
  %36 = vmatprep.subr.bf16.mxu0 0
  %37 = vmatpush1.bf16.msra.mxu0 0
  %38 = vmatprep.subr.bf16.mxu0 0
  %39 = vmatpush1.bf16.msra.mxu0 0
  %40 = vmatprep.subr.bf16.mxu0 0
  %41 = vmatpush1.bf16.msra.mxu0 0
  %42 = vmatprep.subr.bf16.mxu0 0
  %43 = vmatpush1.bf16.msra.mxu0 0
  %44 = vmatprep.subr.bf16.mxu0 0
  %45 = vmatpush1.bf16.msra.mxu0 0
  %46 = vmatprep.subr.bf16.mxu0 0
  %47 = vmatpush1.bf16.msra.mxu0 %v22
  %48 = vmatprep.subr.bf16.mxu0 0
  %49 = vmatpush1.bf16.msra.mxu0 %v21
  %50 = vmatprep.subr.bf16.mxu0 0
  %51 = vmatpush2.bf16.msra.mxu0 0
  %52 = vmatprep.subr.bf16.mxu0 0
  %53 = vmatpush2.bf16.msra.mxu0 0
  %54 = vmatprep.subr.bf16.mxu0 0
  %55 = vmatpush2.bf16.msra.mxu0 0
  %56 = vmatprep.subr.bf16.mxu0 0
  %57 = vmatpush2.bf16.msra.mxu0 0
  %58 = vmatprep.subr.bf16.mxu0 0
  %59 = vmatpush2.bf16.msra.mxu0 0
  %60 = vmatprep.subr.bf16.mxu0 0
  %61 = vmatpush2.bf16.msra.mxu0 0
  %62 = vmatprep.subr.bf16.mxu0 0
  %63 = vmatpush2.bf16.msra.mxu0 0
  %64 = vmatprep.subr.bf16.mxu0 0
  %65 = vmatpush2.bf16.msra.mxu0 0
  %66 = vmatprep.mubr.bf16.mxu0 0
  %67 = vmatmul.mubr.bf16.gmra.mxu0 %v32
  %v68 = vpop.f32.mrf.mxu0
  %v69 = vadd.f32 %v28, %v68
  %v70 = vpop.f32.mrf.mxu0
  %v71 = vpop.f32.mrf.mxu0
  %v72 = vpop.f32.mrf.mxu0
  %73 = vdwg.mxu0
  %74 = vst.msk [vmem:[%s3] sm:$0xff] %vm30, %v69
  // Predicated region
  $region14: #{tabpfn_forward.24} parent=0 // pred_check
    _
  $region15: #{tabpfn_forward.24} parent=0 // pred_check_branch
    %76 = sbr.rel (0) target = $region17
  $region16: #{tabpfn_forward.24} parent=0 // pred_region
    _
  $region17: #{tabpfn_forward.24} parent=0 // pred_fallthru
    _
  // Predicated region
  $region18: #{tabpfn_forward.24} parent=0 // pred_check
    _
  $region19: #{tabpfn_forward.24} parent=0 // pred_check_branch
    %78 = sbr.rel (0) target = $region21
  $region20: #{tabpfn_forward.24} parent=0 // pred_region
    _
  $region21: #{tabpfn_forward.24} parent=0 // pred_fallthru
    _

// kernel: tabpfn_forward.26
$region0: #{tabpfn_forward.26}
  #allocation0 [shape = 'u32[]', space=smem, size = 0x4, offset = 0x4, fixed_abs, tag = 'smem constant byte address 0x4 - core index']
  #allocation1 [shape = 'u32[144,128]{1,0:T(1,128)}', space=vmem, size = 0x12000, scoped, tag = 'internal scratch']
  %s0 = inlined_call_operand.vmem [shape: f32[2,4,32], index: 0, kind: input, shape index: {}]
  %s1 = inlined_call_operand.vmem [shape: f32[2,8,64], index: 1, kind: input, shape index: {}]
  %s2 = inlined_call_operand.vmem [shape: f32[2,4,32], index: 2, kind: output, shape index: {}]
  %s3 = sld [smem:[#allocation0]]
  $region41: #{tabpfn_forward.26} parent=0
    _
  %s5 = ssub.s32 1, %s3
  %s6 = scalar_select 0, %s5, %s3
  loop: start=0, step=1, limit=4
  $region2: #{tabpfn_forward.26} parent=0 // loop_pre_header
    _
  $region3: #{tabpfn_forward.26} parent=0 // loop_header
    %s8 = sphi 0, %s12
    %p9 = scmp.ge.s32.totalorder %s8, 4
    %s18 = sphi 0, %s20
    %s21 = sphi 0, %s18
    %s22 = sphi 0, %s21
    %s38 = sphi 0, %s22
    %s44 = sphi 0, %s46
    %s47 = sphi 0, %s44
    %s48 = sphi 0, %s47
    %s64 = sphi 0, %s48
    %s70 = sphi 0, %s72
    %s73 = sphi 0, %s70
    %s74 = sphi 0, %s73
    %s90 = sphi 0, %s74
  $region4: #{tabpfn_forward.26} parent=0 // loop_header_branch
    %11 = sbr.rel (%p9) target = $region8
  $region5: #{tabpfn_forward.26} parent=0 // loop_body
    %s13 = ssub.s32 %s8, 1
    %s14 = ssub.s32 %s8, 2
    %s15 = sadd.s32 %s8, 1
    %s16 = ssub.s32 %s8, %s15
    %p17 = scmp.eq.s32.totalorder %s16, 0
    %s19 = sadd.s32 %s18, 1
    %s20 = scalar_select %p17, %s18, %s19
    %p23 = pneg %p17
    %p24 = scmp.eq.s32.totalorder %s8, 1
    %p25 = por %p23, %p24
    %p26 = scmp.ne.s32.totalorder %s18, %s21
    %p27 = scmp.eq.s32.totalorder %s8, 0
    %p28 = por %p26, %p27
    %p29 = scmp.ne.s32.totalorder %s18, %s21
    %p30 = scmp.eq.s32.totalorder %s13, 1
    %p31 = por %p29, %p30
    %p32 = scmp.ne.s32.totalorder %s21, %s22
    %p33 = scmp.eq.s32.totalorder %s13, 0
    %p34 = por %p32, %p33
    %p35 = scmp.ne.s32.totalorder %s21, %s22
    %p36 = scmp.eq.s32.totalorder %s14, 1
    %p37 = por %p35, %p36
    %p39 = scmp.ne.s32.totalorder %s22, %s38
    %p40 = scmp.eq.s32.totalorder %s14, 0
    %p41 = por %p39, %p40
    %s42 = ssub.s32 %s8, %s15
    %p43 = scmp.eq.s32.totalorder %s42, 0
    %s45 = sadd.s32 %s44, 1
    %s46 = scalar_select %p43, %s44, %s45
    %p49 = pneg %p43
    %p50 = scmp.eq.s32.totalorder %s8, 1
    %p51 = por %p49, %p50
    %p52 = scmp.ne.s32.totalorder %s44, %s47
    %p53 = scmp.eq.s32.totalorder %s8, 0
    %p54 = por %p52, %p53
    %p55 = scmp.ne.s32.totalorder %s44, %s47
    %p56 = scmp.eq.s32.totalorder %s13, 1
    %p57 = por %p55, %p56
    %p58 = scmp.ne.s32.totalorder %s47, %s48
    %p59 = scmp.eq.s32.totalorder %s13, 0
    %p60 = por %p58, %p59
    %p61 = scmp.ne.s32.totalorder %s47, %s48
    %p62 = scmp.eq.s32.totalorder %s14, 1
    %p63 = por %p61, %p62
    %p65 = scmp.ne.s32.totalorder %s48, %s64
    %p66 = scmp.eq.s32.totalorder %s14, 0
    %p67 = por %p65, %p66
    %s68 = ssub.s32 %s8, %s15
    %p69 = scmp.eq.s32.totalorder %s68, 0
    %s71 = sadd.s32 %s70, 1
    %s72 = scalar_select %p69, %s70, %s71
    %p75 = pneg %p69
    %p76 = scmp.eq.s32.totalorder %s8, 1
    %p77 = por %p75, %p76
    %p78 = scmp.ne.s32.totalorder %s70, %s73
    %p79 = scmp.eq.s32.totalorder %s8, 0
    %p80 = por %p78, %p79
    %p81 = scmp.ne.s32.totalorder %s70, %s73
    %p82 = scmp.eq.s32.totalorder %s13, 1
    %p83 = por %p81, %p82
    %p84 = scmp.ne.s32.totalorder %s73, %s74
    %p85 = scmp.eq.s32.totalorder %s13, 0
    %p86 = por %p84, %p85
    %p87 = scmp.ne.s32.totalorder %s73, %s74
    %p88 = scmp.eq.s32.totalorder %s14, 1
    %p89 = por %p87, %p88
    %p91 = scmp.ne.s32.totalorder %s74, %s90
    %p92 = scmp.eq.s32.totalorder %s14, 0
    %p93 = por %p91, %p92
    %p94 = scmp.le.s32.totalorder 1, %s8
    %p95 = scmp.lt.s32.totalorder %s8, 3
    %p96 = pnand %p94, %p95
    %p97 = pneg %p96
    // Predicated region
    $region9: #{tabpfn_forward.26} parent=5 // pred_check
      _
    $region10: #{tabpfn_forward.26} parent=5 // pred_check_branch
      %99 = sbr.rel (%p96) target = $region12
    $region11: #{tabpfn_forward.26} parent=5 // pred_region
      %s100 = ssub.s32 %s8, 1
    $region12: #{tabpfn_forward.26} parent=5 // pred_fallthru
      _
    %p101 = scmp.lt.s32.totalorder %s8, 2
    // Predicated region
    $region13: #{tabpfn_forward.26} parent=5 // pred_check
      %p102 = pneg %p101
    $region14: #{tabpfn_forward.26} parent=5 // pred_check_branch
      %104 = sbr.rel (%p102) target = $region16
    $region15: #{tabpfn_forward.26} parent=5 // pred_region
      // Predicated region
      $region17: #{tabpfn_forward.26} parent=15 // pred_check
        %p105 = pneg %p28
      $region18: #{tabpfn_forward.26} parent=15 // pred_check_branch
        %107 = sbr.rel (%p105) target = $region20
      $region19: #{tabpfn_forward.26} parent=15 // pred_region
        %p108 = scmp.lt.s32.totalorder %s8, 1
        %s109 = scalar_select %p108, %s8, 1
        %s110 = smul.addr %s109, 4
        %s111 = scalar_lea.vmem %s0, %s110
      $region20: #{tabpfn_forward.26} parent=15 // pred_fallthru
        _
      // Predicated region
      $region21: #{tabpfn_forward.26} parent=15 // pred_check
        %p112 = pneg %p54
      $region22: #{tabpfn_forward.26} parent=15 // pred_check_branch
        %114 = sbr.rel (%p112) target = $region24
      $region23: #{tabpfn_forward.26} parent=15 // pred_region
        %p115 = scmp.lt.s32.totalorder %s8, 1
        %s116 = scalar_select %p115, %s8, 1
        %s117 = smul.addr %s116, 8
        %s118 = scalar_lea.vmem %s1, %s117
      $region24: #{tabpfn_forward.26} parent=15 // pred_fallthru
        _
    $region16: #{tabpfn_forward.26} parent=5 // pred_fallthru
      _
    %p119 = scmp.le.s32.totalorder 1, %s8
    %p120 = scmp.lt.s32.totalorder %s8, 3
    %p121 = pnand %p119, %p120
    %p122 = pneg %p121
    // Predicated region
    $region25: #{tabpfn_forward.26} parent=5 // pred_check
      _
    $region26: #{tabpfn_forward.26} parent=5 // pred_check_branch
      %124 = sbr.rel (%p121) target = $region28
    $region27: #{tabpfn_forward.26} parent=5 // pred_region
      %s125 = ssub.s32 %s8, 1
      %p126 = scmp.lt.s32.totalorder %s13, 1
      %s127 = scalar_select %p126, %s13, 1
      %s128 = smul.addr %s127, 4
      %s129 = scalar_lea.vmem %s0, %s128
      %p130 = pneg %p34
      %p131 = pneg %p31
      %p132 = scmp.lt.s32.totalorder %s13, 1
      %s133 = scalar_select %p132, %s13, 1
      %s134 = smul.addr %s133, 8
      %s135 = scalar_lea.vmem %s1, %s134
      %p136 = pneg %p60
      %p137 = pneg %p57
      %p138 = pneg %p86
      %p139 = pneg %p83
      %p140 = scmp.lt.s32.totalorder %s13, 1
      %s141 = scalar_select %p140, %s13, 1
      %s142 = smul.addr %s141, 4
      %s143 = scalar_lea.vmem %s2, %s142
      %p144 = scmp.lt.s32.totalorder %s13, 1
      %s145 = scalar_select %p144, %s13, 1
      %s146 = smul.addr %s145, 4
      %s147 = scalar_lea.vmem %s0, %s146
      %p148 = scmp.lt.s32.totalorder %s13, 1
      %s149 = scalar_select %p148, %s13, 1
      %s150 = smul.addr %s149, 8
      %s151 = scalar_lea.vmem %s1, %s150
      %p152 = scmp.lt.s32.totalorder %s13, 1
      %s153 = scalar_select %p152, %s13, 1
      %s154 = smul.addr %s153, 4
      %s155 = scalar_lea.vmem %s2, %s154
      %v157 = vld [vmem:[%s147] sm:$0xf]
      %v158 = vld [vmem:[%s151] sm:$0xff]
      %v159 = vmul.f32 %v157, 0.35355338
      %v160 = vpack.c.bf16 %v159, %v159
      %v161 = vpack.c.bf16 %v158, %v158
      %vm162 = vcmask 64512
      %v164 = vsel %vm162, %v160, 0
      %v167 = vsel %vm162, %v161, 0
      %169 = vmatprep.subr.bf16.mxu0 0
      %170 = vmatpush1.bf16.xpose.msra.mxu0 0
      %171 = vmatprep.subr.bf16.mxu0 0
      %172 = vmatpush1.bf16.xpose.msra.mxu0 0
      %173 = vmatprep.subr.bf16.mxu0 0
      %174 = vmatpush1.bf16.xpose.msra.mxu0 0
      %175 = vmatprep.subr.bf16.mxu0 0
      %176 = vmatpush1.bf16.xpose.msra.mxu0 0
      %177 = vmatprep.subr.bf16.mxu0 0
      %178 = vmatpush1.bf16.xpose.msra.mxu0 0
      %179 = vmatprep.subr.bf16.mxu0 0
      %180 = vmatpush1.bf16.xpose.msra.mxu0 0
      %181 = vmatprep.subr.bf16.mxu0 0
      %182 = vmatpush1.bf16.xpose.msra.mxu0 0
      %183 = vmatprep.subr.bf16.mxu0 0
      %184 = vmatpush1.bf16.xpose.msra.mxu0 %v167
      %185 = vmatprep.subr.bf16.mxu0 0
      %186 = vmatpush2.bf16.xpose.msra.mxu0 0
      %187 = vmatprep.subr.bf16.mxu0 0
      %188 = vmatpush2.bf16.xpose.msra.mxu0 0
      %189 = vmatprep.subr.bf16.mxu0 0
      %190 = vmatpush2.bf16.xpose.msra.mxu0 0
      %191 = vmatprep.subr.bf16.mxu0 0
      %192 = vmatpush2.bf16.xpose.msra.mxu0 0
      %193 = vmatprep.subr.bf16.mxu0 0
      %194 = vmatpush2.bf16.xpose.msra.mxu0 0
      %195 = vmatprep.subr.bf16.mxu0 0
      %196 = vmatpush2.bf16.xpose.msra.mxu0 0
      %197 = vmatprep.subr.bf16.mxu0 0
      %198 = vmatpush2.bf16.xpose.msra.mxu0 0
      %199 = vmatprep.subr.bf16.mxu0 0
      %200 = vmatpush2.bf16.xpose.msra.mxu0 0
      %201 = vmatprep.mubr.bf16.mxu0 0
      %202 = vmatmul.mubr.bf16.gmra.mxu0 %v164
      %v203 = vpop.f32.mrf.mxu0
      %v204 = vadd.f32 0.0, %v203
      %v205 = vpop.f32.mrf.mxu0
      %v206 = vpop.f32.mrf.mxu0
      %v207 = vpop.f32.mrf.mxu0
      %208 = vdwg.mxu0
      %vm209 = vcmask 60416
      %v210 = vsel %vm209, %v204, -inf
      %211 = vmax.xlane.f32.xlu0 %v210
      %v212 = vpop.xlane.xlu0 %211
      %v213 = vsub.f32 %v204, %v212
      %v214 = vmul.f32 %v213, 1.442695
      %v215 = vpow.pop %v214
      %v216 = vsel %vm209, %v215, 0.0
      %217 = vadd.xlane.f32.xlu0 %v216
      %v218 = vpop.xlane.xlu0 %217
      %v219 = vrcp.pop %v218
      %v220 = vmul.f32 %v215, %v219
      %v221 = vpack.c.bf16 %v220, %v220
      %223 = vrot.lane.b32.xlu0 %v161, 96
      %v224 = vpop.permute.xlu0 %223
      %v226 = vsel %vm162, %v221, 0
      %vm228 = vcmask 1043456
      %v230 = vsel %vm228, %v224, 0
      %232 = vmatprep.subr.bf16.mxu0 0
      %233 = vmatpush1.bf16.msra.mxu0 0
      %234 = vmatprep.subr.bf16.mxu0 0
      %235 = vmatpush1.bf16.msra.mxu0 0
      %236 = vmatprep.subr.bf16.mxu0 0
      %237 = vmatpush1.bf16.msra.mxu0 0
      %238 = vmatprep.subr.bf16.mxu0 0
      %239 = vmatpush1.bf16.msra.mxu0 0
      %240 = vmatprep.subr.bf16.mxu0 0
      %241 = vmatpush1.bf16.msra.mxu0 0
      %242 = vmatprep.subr.bf16.mxu0 0
      %243 = vmatpush1.bf16.msra.mxu0 0
      %244 = vmatprep.subr.bf16.mxu0 0
      %245 = vmatpush1.bf16.msra.mxu0 0
      %246 = vmatprep.subr.bf16.mxu0 0
      %247 = vmatpush1.bf16.msra.mxu0 %v230
      %248 = vmatprep.subr.bf16.mxu0 0
      %249 = vmatpush2.bf16.msra.mxu0 0
      %250 = vmatprep.subr.bf16.mxu0 0
      %251 = vmatpush2.bf16.msra.mxu0 0
      %252 = vmatprep.subr.bf16.mxu0 0
      %253 = vmatpush2.bf16.msra.mxu0 0
      %254 = vmatprep.subr.bf16.mxu0 0
      %255 = vmatpush2.bf16.msra.mxu0 0
      %256 = vmatprep.subr.bf16.mxu0 0
      %257 = vmatpush2.bf16.msra.mxu0 0
      %258 = vmatprep.subr.bf16.mxu0 0
      %259 = vmatpush2.bf16.msra.mxu0 0
      %260 = vmatprep.subr.bf16.mxu0 0
      %261 = vmatpush2.bf16.msra.mxu0 0
      %262 = vmatprep.subr.bf16.mxu0 0
      %263 = vmatpush2.bf16.msra.mxu0 0
      %264 = vmatprep.mubr.bf16.mxu0 0
      %265 = vmatmul.mubr.bf16.gmra.mxu0 %v226
      %v266 = vpop.f32.mrf.mxu0
      %v267 = vadd.f32 0.0, %v266
      %v268 = vpop.f32.mrf.mxu0
      %v269 = vpop.f32.mrf.mxu0
      %v270 = vpop.f32.mrf.mxu0
      %271 = vdwg.mxu0
      %273 = vrot.lane.b32.xlu0 %v160, 120
      %v274 = vpop.permute.xlu0 %273
      %275 = vrot.lane.b32.xlu0 %v161, 120
      %v276 = vpop.permute.xlu0 %275
      %v278 = vsel %vm162, %v274, 0
      %v281 = vsel %vm162, %v276, 0
      %283 = vmatprep.subr.bf16.mxu0 0
      %284 = vmatpush1.bf16.xpose.msra.mxu0 0
      %285 = vmatprep.subr.bf16.mxu0 0
      %286 = vmatpush1.bf16.xpose.msra.mxu0 0
      %287 = vmatprep.subr.bf16.mxu0 0
      %288 = vmatpush1.bf16.xpose.msra.mxu0 0
      %289 = vmatprep.subr.bf16.mxu0 0
      %290 = vmatpush1.bf16.xpose.msra.mxu0 0
      %291 = vmatprep.subr.bf16.mxu0 0
      %292 = vmatpush1.bf16.xpose.msra.mxu0 0
      %293 = vmatprep.subr.bf16.mxu0 0
      %294 = vmatpush1.bf16.xpose.msra.mxu0 0
      %295 = vmatprep.subr.bf16.mxu0 0
      %296 = vmatpush1.bf16.xpose.msra.mxu0 0
      %297 = vmatprep.subr.bf16.mxu0 0
      %298 = vmatpush1.bf16.xpose.msra.mxu0 %v281
      %299 = vmatprep.subr.bf16.mxu0 0
      %300 = vmatpush2.bf16.xpose.msra.mxu0 0
      %301 = vmatprep.subr.bf16.mxu0 0
      %302 = vmatpush2.bf16.xpose.msra.mxu0 0
      %303 = vmatprep.subr.bf16.mxu0 0
      %304 = vmatpush2.bf16.xpose.msra.mxu0 0
      %305 = vmatprep.subr.bf16.mxu0 0
      %306 = vmatpush2.bf16.xpose.msra.mxu0 0
      %307 = vmatprep.subr.bf16.mxu0 0
      %308 = vmatpush2.bf16.xpose.msra.mxu0 0
      %309 = vmatprep.subr.bf16.mxu0 0
      %310 = vmatpush2.bf16.xpose.msra.mxu0 0
      %311 = vmatprep.subr.bf16.mxu0 0
      %312 = vmatpush2.bf16.xpose.msra.mxu0 0
      %313 = vmatprep.subr.bf16.mxu0 0
      %314 = vmatpush2.bf16.xpose.msra.mxu0 0
      %315 = vmatprep.mubr.bf16.mxu0 0
      %316 = vmatmul.mubr.bf16.gmra.mxu0 %v278
      %v317 = vpop.f32.mrf.mxu0
      %v318 = vadd.f32 0.0, %v317
      %v319 = vpop.f32.mrf.mxu0
      %v320 = vpop.f32.mrf.mxu0
      %v321 = vpop.f32.mrf.mxu0
      %322 = vdwg.mxu0
      %v323 = vsel %vm209, %v318, -inf
      %324 = vmax.xlane.f32.xlu0 %v323
      %v325 = vpop.xlane.xlu0 %324
      %v326 = vsub.f32 %v318, %v325
      %v327 = vmul.f32 %v326, 1.442695
      %v328 = vpow.pop %v327
      %v329 = vsel %vm209, %v328, 0.0
      %330 = vadd.xlane.f32.xlu0 %v329
      %v331 = vpop.xlane.xlu0 %330
      %v332 = vrcp.pop %v331
      %v333 = vmul.f32 %v328, %v332
      %v334 = vpack.c.bf16 %v333, %v333
      %335 = vrot.lane.b32.xlu0 %v161, 88
      %v336 = vpop.permute.xlu0 %335
      %v338 = vsel %vm162, %v334, 0
      %v341 = vsel %vm228, %v336, 0
      %343 = vmatprep.subr.bf16.mxu0 0
      %344 = vmatpush1.bf16.msra.mxu0 0
      %345 = vmatprep.subr.bf16.mxu0 0
      %346 = vmatpush1.bf16.msra.mxu0 0
      %347 = vmatprep.subr.bf16.mxu0 0
      %348 = vmatpush1.bf16.msra.mxu0 0
      %349 = vmatprep.subr.bf16.mxu0 0
      %350 = vmatpush1.bf16.msra.mxu0 0
      %351 = vmatprep.subr.bf16.mxu0 0
      %352 = vmatpush1.bf16.msra.mxu0 0
      %353 = vmatprep.subr.bf16.mxu0 0
      %354 = vmatpush1.bf16.msra.mxu0 0
      %355 = vmatprep.subr.bf16.mxu0 0
      %356 = vmatpush1.bf16.msra.mxu0 0
      %357 = vmatprep.subr.bf16.mxu0 0
      %358 = vmatpush1.bf16.msra.mxu0 %v341
      %359 = vmatprep.subr.bf16.mxu0 0
      %360 = vmatpush2.bf16.msra.mxu0 0
      %361 = vmatprep.subr.bf16.mxu0 0
      %362 = vmatpush2.bf16.msra.mxu0 0
      %363 = vmatprep.subr.bf16.mxu0 0
      %364 = vmatpush2.bf16.msra.mxu0 0
      %365 = vmatprep.subr.bf16.mxu0 0
      %366 = vmatpush2.bf16.msra.mxu0 0
      %367 = vmatprep.subr.bf16.mxu0 0
      %368 = vmatpush2.bf16.msra.mxu0 0
      %369 = vmatprep.subr.bf16.mxu0 0
      %370 = vmatpush2.bf16.msra.mxu0 0
      %371 = vmatprep.subr.bf16.mxu0 0
      %372 = vmatpush2.bf16.msra.mxu0 0
      %373 = vmatprep.subr.bf16.mxu0 0
      %374 = vmatpush2.bf16.msra.mxu0 0
      %375 = vmatprep.mubr.bf16.mxu0 0
      %376 = vmatmul.mubr.bf16.gmra.mxu0 %v338
      %v377 = vpop.f32.mrf.mxu0
      %v378 = vadd.f32 0.0, %v377
      %v379 = vpop.f32.mrf.mxu0
      %v380 = vpop.f32.mrf.mxu0
      %v381 = vpop.f32.mrf.mxu0
      %382 = vdwg.mxu0
      %383 = vrot.lane.b32.xlu0 %v160, 112
      %v384 = vpop.permute.xlu0 %383
      %385 = vrot.lane.b32.xlu0 %v161, 112
      %v386 = vpop.permute.xlu0 %385
      %v388 = vsel %vm162, %v384, 0
      %v391 = vsel %vm162, %v386, 0
      %393 = vmatprep.subr.bf16.mxu0 0
      %394 = vmatpush1.bf16.xpose.msra.mxu0 0
      %395 = vmatprep.subr.bf16.mxu0 0
      %396 = vmatpush1.bf16.xpose.msra.mxu0 0
      %397 = vmatprep.subr.bf16.mxu0 0
      %398 = vmatpush1.bf16.xpose.msra.mxu0 0
      %399 = vmatprep.subr.bf16.mxu0 0
      %400 = vmatpush1.bf16.xpose.msra.mxu0 0
      %401 = vmatprep.subr.bf16.mxu0 0
      %402 = vmatpush1.bf16.xpose.msra.mxu0 0
      %403 = vmatprep.subr.bf16.mxu0 0
      %404 = vmatpush1.bf16.xpose.msra.mxu0 0
      %405 = vmatprep.subr.bf16.mxu0 0
      %406 = vmatpush1.bf16.xpose.msra.mxu0 0
      %407 = vmatprep.subr.bf16.mxu0 0
      %408 = vmatpush1.bf16.xpose.msra.mxu0 %v391
      %409 = vmatprep.subr.bf16.mxu0 0
      %410 = vmatpush2.bf16.xpose.msra.mxu0 0
      %411 = vmatprep.subr.bf16.mxu0 0
      %412 = vmatpush2.bf16.xpose.msra.mxu0 0
      %413 = vmatprep.subr.bf16.mxu0 0
      %414 = vmatpush2.bf16.xpose.msra.mxu0 0
      %415 = vmatprep.subr.bf16.mxu0 0
      %416 = vmatpush2.bf16.xpose.msra.mxu0 0
      %417 = vmatprep.subr.bf16.mxu0 0
      %418 = vmatpush2.bf16.xpose.msra.mxu0 0
      %419 = vmatprep.subr.bf16.mxu0 0
      %420 = vmatpush2.bf16.xpose.msra.mxu0 0
      %421 = vmatprep.subr.bf16.mxu0 0
      %422 = vmatpush2.bf16.xpose.msra.mxu0 0
      %423 = vmatprep.subr.bf16.mxu0 0
      %424 = vmatpush2.bf16.xpose.msra.mxu0 0
      %425 = vmatprep.mubr.bf16.mxu0 0
      %426 = vmatmul.mubr.bf16.gmra.mxu0 %v388
      %v427 = vpop.f32.mrf.mxu0
      %v428 = vadd.f32 0.0, %v427
      %v429 = vpop.f32.mrf.mxu0
      %v430 = vpop.f32.mrf.mxu0
      %v431 = vpop.f32.mrf.mxu0
      %432 = vdwg.mxu0
      %v433 = vsel %vm209, %v428, -inf
      %434 = vmax.xlane.f32.xlu0 %v433
      %v435 = vpop.xlane.xlu0 %434
      %v436 = vsub.f32 %v428, %v435
      %v437 = vmul.f32 %v436, 1.442695
      %v438 = vpow.pop %v437
      %v439 = vsel %vm209, %v438, 0.0
      %440 = vadd.xlane.f32.xlu0 %v439
      %v441 = vpop.xlane.xlu0 %440
      %v442 = vrcp.pop %v441
      %v443 = vmul.f32 %v438, %v442
      %v444 = vpack.c.bf16 %v443, %v443
      %445 = vrot.lane.b32.xlu0 %v161, 80
      %v446 = vpop.permute.xlu0 %445
      %v448 = vsel %vm162, %v444, 0
      %v451 = vsel %vm228, %v446, 0
      %453 = vmatprep.subr.bf16.mxu0 0
      %454 = vmatpush1.bf16.msra.mxu0 0
      %455 = vmatprep.subr.bf16.mxu0 0
      %456 = vmatpush1.bf16.msra.mxu0 0
      %457 = vmatprep.subr.bf16.mxu0 0
      %458 = vmatpush1.bf16.msra.mxu0 0
      %459 = vmatprep.subr.bf16.mxu0 0
      %460 = vmatpush1.bf16.msra.mxu0 0
      %461 = vmatprep.subr.bf16.mxu0 0
      %462 = vmatpush1.bf16.msra.mxu0 0
      %463 = vmatprep.subr.bf16.mxu0 0
      %464 = vmatpush1.bf16.msra.mxu0 0
      %465 = vmatprep.subr.bf16.mxu0 0
      %466 = vmatpush1.bf16.msra.mxu0 0
      %467 = vmatprep.subr.bf16.mxu0 0
      %468 = vmatpush1.bf16.msra.mxu0 %v451
      %469 = vmatprep.subr.bf16.mxu0 0
      %470 = vmatpush2.bf16.msra.mxu0 0
      %471 = vmatprep.subr.bf16.mxu0 0
      %472 = vmatpush2.bf16.msra.mxu0 0
      %473 = vmatprep.subr.bf16.mxu0 0
      %474 = vmatpush2.bf16.msra.mxu0 0
      %475 = vmatprep.subr.bf16.mxu0 0
      %476 = vmatpush2.bf16.msra.mxu0 0
      %477 = vmatprep.subr.bf16.mxu0 0
      %478 = vmatpush2.bf16.msra.mxu0 0
      %479 = vmatprep.subr.bf16.mxu0 0
      %480 = vmatpush2.bf16.msra.mxu0 0
      %481 = vmatprep.subr.bf16.mxu0 0
      %482 = vmatpush2.bf16.msra.mxu0 0
      %483 = vmatprep.subr.bf16.mxu0 0
      %484 = vmatpush2.bf16.msra.mxu0 0
      %485 = vmatprep.mubr.bf16.mxu0 0
      %486 = vmatmul.mubr.bf16.gmra.mxu0 %v448
      %v487 = vpop.f32.mrf.mxu0
      %v488 = vadd.f32 0.0, %v487
      %v489 = vpop.f32.mrf.mxu0
      %v490 = vpop.f32.mrf.mxu0
      %v491 = vpop.f32.mrf.mxu0
      %492 = vdwg.mxu0
      %493 = vrot.lane.b32.xlu0 %v160, 104
      %v494 = vpop.permute.xlu0 %493
      %495 = vrot.lane.b32.xlu0 %v161, 104
      %v496 = vpop.permute.xlu0 %495
      %v498 = vsel %vm162, %v494, 0
      %v501 = vsel %vm162, %v496, 0
      %503 = vmatprep.subr.bf16.mxu0 0
      %504 = vmatpush1.bf16.xpose.msra.mxu0 0
      %505 = vmatprep.subr.bf16.mxu0 0
      %506 = vmatpush1.bf16.xpose.msra.mxu0 0
      %507 = vmatprep.subr.bf16.mxu0 0
      %508 = vmatpush1.bf16.xpose.msra.mxu0 0
      %509 = vmatprep.subr.bf16.mxu0 0
      %510 = vmatpush1.bf16.xpose.msra.mxu0 0
      %511 = vmatprep.subr.bf16.mxu0 0
      %512 = vmatpush1.bf16.xpose.msra.mxu0 0
      %513 = vmatprep.subr.bf16.mxu0 0
      %514 = vmatpush1.bf16.xpose.msra.mxu0 0
      %515 = vmatprep.subr.bf16.mxu0 0
      %516 = vmatpush1.bf16.xpose.msra.mxu0 0
      %517 = vmatprep.subr.bf16.mxu0 0
      %518 = vmatpush1.bf16.xpose.msra.mxu0 %v501
      %519 = vmatprep.subr.bf16.mxu0 0
      %520 = vmatpush2.bf16.xpose.msra.mxu0 0
      %521 = vmatprep.subr.bf16.mxu0 0
      %522 = vmatpush2.bf16.xpose.msra.mxu0 0
      %523 = vmatprep.subr.bf16.mxu0 0
      %524 = vmatpush2.bf16.xpose.msra.mxu0 0
      %525 = vmatprep.subr.bf16.mxu0 0
      %526 = vmatpush2.bf16.xpose.msra.mxu0 0
      %527 = vmatprep.subr.bf16.mxu0 0
      %528 = vmatpush2.bf16.xpose.msra.mxu0 0
      %529 = vmatprep.subr.bf16.mxu0 0
      %530 = vmatpush2.bf16.xpose.msra.mxu0 0
      %531 = vmatprep.subr.bf16.mxu0 0
      %532 = vmatpush2.bf16.xpose.msra.mxu0 0
      %533 = vmatprep.subr.bf16.mxu0 0
      %534 = vmatpush2.bf16.xpose.msra.mxu0 0
      %535 = vmatprep.mubr.bf16.mxu0 0
      %536 = vmatmul.mubr.bf16.gmra.mxu0 %v498
      %v537 = vpop.f32.mrf.mxu0
      %v538 = vadd.f32 0.0, %v537
      %v539 = vpop.f32.mrf.mxu0
      %v540 = vpop.f32.mrf.mxu0
      %v541 = vpop.f32.mrf.mxu0
      %542 = vdwg.mxu0
      %v543 = vsel %vm209, %v538, -inf
      %544 = vmax.xlane.f32.xlu0 %v543
      %v545 = vpop.xlane.xlu0 %544
      %v546 = vsub.f32 %v538, %v545
      %v547 = vmul.f32 %v546, 1.442695
      %v548 = vpow.pop %v547
      %v549 = vsel %vm209, %v548, 0.0
      %550 = vadd.xlane.f32.xlu0 %v549
      %v551 = vpop.xlane.xlu0 %550
      %v552 = vrcp.pop %v551
      %v553 = vmul.f32 %v548, %v552
      %v554 = vpack.c.bf16 %v553, %v553
      %555 = vrot.lane.b32.xlu0 %v161, 72
      %v556 = vpop.permute.xlu0 %555
      %v558 = vsel %vm162, %v554, 0
      %v561 = vsel %vm228, %v556, 0
      %563 = vmatprep.subr.bf16.mxu0 0
      %564 = vmatpush1.bf16.msra.mxu0 0
      %565 = vmatprep.subr.bf16.mxu0 0
      %566 = vmatpush1.bf16.msra.mxu0 0
      %567 = vmatprep.subr.bf16.mxu0 0
      %568 = vmatpush1.bf16.msra.mxu0 0
      %569 = vmatprep.subr.bf16.mxu0 0
      %570 = vmatpush1.bf16.msra.mxu0 0
      %571 = vmatprep.subr.bf16.mxu0 0
      %572 = vmatpush1.bf16.msra.mxu0 0
      %573 = vmatprep.subr.bf16.mxu0 0
      %574 = vmatpush1.bf16.msra.mxu0 0
      %575 = vmatprep.subr.bf16.mxu0 0
      %576 = vmatpush1.bf16.msra.mxu0 0
      %577 = vmatprep.subr.bf16.mxu0 0
      %578 = vmatpush1.bf16.msra.mxu0 %v561
      %579 = vmatprep.subr.bf16.mxu0 0
      %580 = vmatpush2.bf16.msra.mxu0 0
      %581 = vmatprep.subr.bf16.mxu0 0
      %582 = vmatpush2.bf16.msra.mxu0 0
      %583 = vmatprep.subr.bf16.mxu0 0
      %584 = vmatpush2.bf16.msra.mxu0 0
      %585 = vmatprep.subr.bf16.mxu0 0
      %586 = vmatpush2.bf16.msra.mxu0 0
      %587 = vmatprep.subr.bf16.mxu0 0
      %588 = vmatpush2.bf16.msra.mxu0 0
      %589 = vmatprep.subr.bf16.mxu0 0
      %590 = vmatpush2.bf16.msra.mxu0 0
      %591 = vmatprep.subr.bf16.mxu0 0
      %592 = vmatpush2.bf16.msra.mxu0 0
      %593 = vmatprep.subr.bf16.mxu0 0
      %594 = vmatpush2.bf16.msra.mxu0 0
      %595 = vmatprep.mubr.bf16.mxu0 0
      %596 = vmatmul.mubr.bf16.gmra.mxu0 %v558
      %v597 = vpop.f32.mrf.mxu0
      %v598 = vadd.f32 0.0, %v597
      %v599 = vpop.f32.mrf.mxu0
      %v600 = vpop.f32.mrf.mxu0
      %v601 = vpop.f32.mrf.mxu0
      %602 = vdwg.mxu0
      %603 = vst.msk [vmem:[%s155] sm:$0xf] %vm209, %v267
      %605 = vrot.lane.b32.xlu0 %v378, 8
      %v606 = vpop.permute.xlu0 %605
      %vm608 = vcmask 126016
      %609 = vst.msk [vmem:[%s155] sm:$0xf] %vm608, %v606
      %611 = vrot.lane.b32.xlu0 %v488, 16
      %v612 = vpop.permute.xlu0 %611
      %vm614 = vcmask 191616
      %615 = vst.msk [vmem:[%s155] sm:$0xf] %vm614, %v612
      %617 = vrot.lane.b32.xlu0 %v598, 24
      %v618 = vpop.permute.xlu0 %617
      %vm620 = vcmask 257216
      %621 = vst.msk [vmem:[%s155] sm:$0xf] %vm620, %v618
      %p622 = scmp.lt.s32.totalorder %s13, 1
      %s623 = scalar_select %p622, %s13, 1
      %s624 = smul.addr %s623, 4
      %s625 = scalar_lea.vmem %s2, %s624
      // Predicated region
      $region29: #{tabpfn_forward.26} parent=27 // pred_check
        %p626 = pneg %p83
      $region30: #{tabpfn_forward.26} parent=27 // pred_check_branch
        %628 = sbr.rel (%p626) target = $region32
      $region31: #{tabpfn_forward.26} parent=27 // pred_region
        _
      $region32: #{tabpfn_forward.26} parent=27 // pred_fallthru
        _
    $region28: #{tabpfn_forward.26} parent=5 // pred_fallthru
      _
    %p629 = scmp.le.s32.totalorder 2, %s8
    // Predicated region
    $region33: #{tabpfn_forward.26} parent=5 // pred_check
      %p630 = pneg %p629
    $region34: #{tabpfn_forward.26} parent=5 // pred_check_branch
      %632 = sbr.rel (%p630) target = $region36
    $region35: #{tabpfn_forward.26} parent=5 // pred_region
      %s633 = ssub.s32 %s8, 2
      // Predicated region
      $region37: #{tabpfn_forward.26} parent=35 // pred_check
        %p634 = pneg %p89
      $region38: #{tabpfn_forward.26} parent=35 // pred_check_branch
        %636 = sbr.rel (%p634) target = $region40
      $region39: #{tabpfn_forward.26} parent=35 // pred_region
        %p637 = scmp.lt.s32.totalorder %s14, 1
        %s638 = scalar_select %p637, %s14, 1
        %s639 = smul.addr %s638, 4
        %s640 = scalar_lea.vmem %s2, %s639
      $region40: #{tabpfn_forward.26} parent=35 // pred_fallthru
        _
    $region36: #{tabpfn_forward.26} parent=5 // pred_fallthru
      _
  $region6: #{tabpfn_forward.26} parent=0 // loop_footer
    %s12 = sadd.s32 1, %s8
  $region7: #{tabpfn_forward.26} parent=0 // loop_footer_branch
    %7 = sbr.rel target = $region3
  $region8: #{tabpfn_forward.26} parent=0 // loop_exit
    _

// kernel: tabpfn_forward.27
$region0: #{tabpfn_forward.27}
  #allocation0 [shape = 'u32[]', space=smem, size = 0x4, offset = 0x4, fixed_abs, tag = 'smem constant byte address 0x4 - core index']
  #allocation1 [shape = 'u32[144,128]{1,0:T(1,128)}', space=vmem, size = 0x12000, scoped, tag = 'internal scratch']
  %s0 = inlined_call_operand.vmem [shape: f32[8,32], index: 0, kind: input, shape index: {}]
  %s1 = inlined_call_operand.vmem [shape: f32[32,32], index: 1, kind: input, shape index: {}]
  %s2 = inlined_call_operand.vmem [shape: f32[1,32], index: 2, kind: input, shape index: {}]
  %s3 = inlined_call_operand.vmem [shape: f32[1,32], index: 3, kind: input, shape index: {}]
  %s4 = inlined_call_operand.vmem [shape: f32[1,32], index: 4, kind: input, shape index: {}]
  %s5 = inlined_call_operand.vmem [shape: f32[32,32], index: 5, kind: input, shape index: {}]
  %s6 = inlined_call_operand.vmem [shape: f32[1,32], index: 6, kind: input, shape index: {}]
  %s7 = inlined_call_operand.vmem [shape: f32[32,16], index: 7, kind: input, shape index: {}]
  %s8 = inlined_call_operand.vmem [shape: f32[1,16], index: 8, kind: input, shape index: {}]
  %s9 = inlined_call_operand.vmem [shape: f32[16,5], index: 9, kind: input, shape index: {}]
  %s10 = inlined_call_operand.vmem [shape: f32[1,5], index: 10, kind: input, shape index: {}]
  %s11 = inlined_call_operand.hbm [shape: f32[8,5], index: 11, kind: output, shape index: {}]
  %s12 = sld [smem:[#allocation0]]
  $region54: #{tabpfn_forward.27} parent=0
    _
  %s14 = ssub.s32 1, %s12
  %s15 = scalar_select 0, %s14, %s12
  $region1: #{tabpfn_forward.27} parent=0
    #allocation2 [shape = 'u8[4096]{0}', space=vmem, size = 0x1000, scoped, tag = 'output window, operand 0, single buffered']
    #allocation3 [shape = 's32[1]{0}', space=sflag, size = 0x4, scoped, tag = 'scoped memory for tabpfn_forward.27']
    %16 = vsyncpa [#allocation3], 0
    // Predicated region
    $region2: #{tabpfn_forward.27} parent=1 // pred_check
      _
    $region3: #{tabpfn_forward.27} parent=1 // pred_check_branch
      %18 = sbr.rel (0) target = $region5
    $region4: #{tabpfn_forward.27} parent=1 // pred_region
      _
    $region5: #{tabpfn_forward.27} parent=1 // pred_fallthru
      _
    // Predicated region
    $region6: #{tabpfn_forward.27} parent=1 // pred_check
      _
    $region7: #{tabpfn_forward.27} parent=1 // pred_check_branch
      %20 = sbr.rel (0) target = $region9
    $region8: #{tabpfn_forward.27} parent=1 // pred_region
      _
    $region9: #{tabpfn_forward.27} parent=1 // pred_fallthru
      _
    // Predicated region
    $region10: #{tabpfn_forward.27} parent=1 // pred_check
      _
    $region11: #{tabpfn_forward.27} parent=1 // pred_check_branch
      %22 = sbr.rel (0) target = $region13
    $region12: #{tabpfn_forward.27} parent=1 // pred_region
      _
    $region13: #{tabpfn_forward.27} parent=1 // pred_fallthru
      _
    // Predicated region
    $region14: #{tabpfn_forward.27} parent=1 // pred_check
      _
    $region15: #{tabpfn_forward.27} parent=1 // pred_check_branch
      %24 = sbr.rel (0) target = $region17
    $region16: #{tabpfn_forward.27} parent=1 // pred_region
      _
    $region17: #{tabpfn_forward.27} parent=1 // pred_fallthru
      _
    // Predicated region
    $region18: #{tabpfn_forward.27} parent=1 // pred_check
      _
    $region19: #{tabpfn_forward.27} parent=1 // pred_check_branch
      %26 = sbr.rel (0) target = $region21
    $region20: #{tabpfn_forward.27} parent=1 // pred_region
      _
    $region21: #{tabpfn_forward.27} parent=1 // pred_fallthru
      _
    // Predicated region
    $region22: #{tabpfn_forward.27} parent=1 // pred_check
      _
    $region23: #{tabpfn_forward.27} parent=1 // pred_check_branch
      %28 = sbr.rel (0) target = $region25
    $region24: #{tabpfn_forward.27} parent=1 // pred_region
      _
    $region25: #{tabpfn_forward.27} parent=1 // pred_fallthru
      _
    // Predicated region
    $region26: #{tabpfn_forward.27} parent=1 // pred_check
      _
    $region27: #{tabpfn_forward.27} parent=1 // pred_check_branch
      %30 = sbr.rel (0) target = $region29
    $region28: #{tabpfn_forward.27} parent=1 // pred_region
      _
    $region29: #{tabpfn_forward.27} parent=1 // pred_fallthru
      _
    // Predicated region
    $region30: #{tabpfn_forward.27} parent=1 // pred_check
      _
    $region31: #{tabpfn_forward.27} parent=1 // pred_check_branch
      %32 = sbr.rel (0) target = $region33
    $region32: #{tabpfn_forward.27} parent=1 // pred_region
      _
    $region33: #{tabpfn_forward.27} parent=1 // pred_fallthru
      _
    // Predicated region
    $region34: #{tabpfn_forward.27} parent=1 // pred_check
      _
    $region35: #{tabpfn_forward.27} parent=1 // pred_check_branch
      %34 = sbr.rel (0) target = $region37
    $region36: #{tabpfn_forward.27} parent=1 // pred_region
      _
    $region37: #{tabpfn_forward.27} parent=1 // pred_fallthru
      _
    // Predicated region
    $region38: #{tabpfn_forward.27} parent=1 // pred_check
      _
    $region39: #{tabpfn_forward.27} parent=1 // pred_check_branch
      %36 = sbr.rel (0) target = $region41
    $region40: #{tabpfn_forward.27} parent=1 // pred_region
      _
    $region41: #{tabpfn_forward.27} parent=1 // pred_fallthru
      _
    // Predicated region
    $region42: #{tabpfn_forward.27} parent=1 // pred_check
      _
    $region43: #{tabpfn_forward.27} parent=1 // pred_check_branch
      %38 = sbr.rel (0) target = $region45
    $region44: #{tabpfn_forward.27} parent=1 // pred_region
      _
    $region45: #{tabpfn_forward.27} parent=1 // pred_fallthru
      _
    %v40 = vld [vmem:[%s0] sm:$0xff]
    %v41 = vld [vmem:[%s1] sm:$0xff]
    %v42 = vld [vmem:[%s1 + $0x8] sm:$0xff]
    %v43 = vld [vmem:[%s1 + $0x10] sm:$0xff]
    %v44 = vld [vmem:[%s1 + $0x18] sm:$0xff]
    %v45 = vpack.c.bf16 %v40, %v40
    %v46 = vpack.c.bf16 %v42, %v41
    %v47 = vpack.c.bf16 %v44, %v43
    %v48 = vld [vmem:[%s2] sm:$0x1]
    %v50 = vlaneseq
    %v51 = vshrl.u32 %v50, 7
    %v52 = vsub.s32 0, %v51
    %v53 = vrot.slane %v48, %v52
    %vm55 = vcmask 261120
    %v57 = vsel %vm55, %v45, 0
    %59 = vmatprep.subr.bf16.mxu0 0
    %60 = vmatpush1.bf16.msra.mxu0 0
    %61 = vmatprep.subr.bf16.mxu0 0
    %62 = vmatpush1.bf16.msra.mxu0 0
    %63 = vmatprep.subr.bf16.mxu0 0
    %64 = vmatpush1.bf16.msra.mxu0 0
    %65 = vmatprep.subr.bf16.mxu0 0
    %66 = vmatpush1.bf16.msra.mxu0 0
    %67 = vmatprep.subr.bf16.mxu0 0
    %68 = vmatpush1.bf16.msra.mxu0 0
    %69 = vmatprep.subr.bf16.mxu0 0
    %70 = vmatpush1.bf16.msra.mxu0 0
    %71 = vmatprep.subr.bf16.mxu0 0
    %72 = vmatpush1.bf16.msra.mxu0 %v47
    %73 = vmatprep.subr.bf16.mxu0 0
    %74 = vmatpush1.bf16.msra.mxu0 %v46
    %75 = vmatprep.subr.bf16.mxu0 0
    %76 = vmatpush2.bf16.msra.mxu0 0
    %77 = vmatprep.subr.bf16.mxu0 0
    %78 = vmatpush2.bf16.msra.mxu0 0
    %79 = vmatprep.subr.bf16.mxu0 0
    %80 = vmatpush2.bf16.msra.mxu0 0
    %81 = vmatprep.subr.bf16.mxu0 0
    %82 = vmatpush2.bf16.msra.mxu0 0
    %83 = vmatprep.subr.bf16.mxu0 0
    %84 = vmatpush2.bf16.msra.mxu0 0
    %85 = vmatprep.subr.bf16.mxu0 0
    %86 = vmatpush2.bf16.msra.mxu0 0
    %87 = vmatprep.subr.bf16.mxu0 0
    %88 = vmatpush2.bf16.msra.mxu0 0
    %89 = vmatprep.subr.bf16.mxu0 0
    %90 = vmatpush2.bf16.msra.mxu0 0
    %91 = vmatprep.mubr.bf16.mxu0 0
    %92 = vmatmul.mubr.bf16.gmra.mxu0 %v57
    %v93 = vpop.f32.mrf.mxu0
    %v94 = vadd.f32 %v53, %v93
    %v95 = vpop.f32.mrf.mxu0
    %v96 = vpop.f32.mrf.mxu0
    %v97 = vpop.f32.mrf.mxu0
    %98 = vdwg.mxu0
    %v99 = vld [vmem:[%s3] sm:$0x1]
    %v100 = vld [vmem:[%s4] sm:$0x1]
    %v101 = vsel %vm55, %v94, 0.0
    %102 = vadd.xlane.f32.xlu0 %v101
    %v103 = vpop.xlane.xlu0 %102
    %v104 = vrcp.pop 32.0
    %v105 = vmul.f32 %v103, %v104
    %v106 = vsub.f32 %v94, %v105
    %v107 = vmul.f32 %v106, %v106
    %v108 = vsel %vm55, %v107, 0.0
    %109 = vadd.xlane.f32.xlu0 %v108
    %v110 = vpop.xlane.xlu0 %109
    %v111 = vmul.f32 %v110, %v104
    %v112 = vadd.f32 %v111, 1e-05
    %v113 = vrsqrt.pop %v112
    %v114 = vmul.f32 %v106, %v113
    %v116 = vlaneseq
    %v117 = vshrl.u32 %v116, 7
    %v118 = vsub.s32 0, %v117
    %v119 = vrot.slane %v99, %v118
    %v121 = vmul.f32 %v114, %v119
    %v123 = vlaneseq
    %v124 = vshrl.u32 %v123, 7
    %v125 = vsub.s32 0, %v124
    %v126 = vrot.slane %v100, %v125
    %v128 = vadd.f32 %v121, %v126
    %v129 = vld [vmem:[%s5] sm:$0xff]
    %v130 = vld [vmem:[%s5 + $0x8] sm:$0xff]
    %v131 = vld [vmem:[%s5 + $0x10] sm:$0xff]
    %v132 = vld [vmem:[%s5 + $0x18] sm:$0xff]
    %v133 = vpack.c.bf16 %v128, %v128
    %v134 = vpack.c.bf16 %v130, %v129
    %v135 = vpack.c.bf16 %v132, %v131
    %v136 = vld [vmem:[%s6] sm:$0x1]
    %v138 = vlaneseq
    %v139 = vshrl.u32 %v138, 7
    %v140 = vsub.s32 0, %v139
    %v141 = vrot.slane %v136, %v140
    %v144 = vsel %vm55, %v133, 0
    %146 = vmatprep.subr.bf16.mxu0 0
    %147 = vmatpush1.bf16.msra.mxu0 0
    %148 = vmatprep.subr.bf16.mxu0 0
    %149 = vmatpush1.bf16.msra.mxu0 0
    %150 = vmatprep.subr.bf16.mxu0 0
    %151 = vmatpush1.bf16.msra.mxu0 0
    %152 = vmatprep.subr.bf16.mxu0 0
    %153 = vmatpush1.bf16.msra.mxu0 0
    %154 = vmatprep.subr.bf16.mxu0 0
    %155 = vmatpush1.bf16.msra.mxu0 0
    %156 = vmatprep.subr.bf16.mxu0 0
    %157 = vmatpush1.bf16.msra.mxu0 0
    %158 = vmatprep.subr.bf16.mxu0 0
    %159 = vmatpush1.bf16.msra.mxu0 %v135
    %160 = vmatprep.subr.bf16.mxu0 0
    %161 = vmatpush1.bf16.msra.mxu0 %v134
    %162 = vmatprep.subr.bf16.mxu0 0
    %163 = vmatpush2.bf16.msra.mxu0 0
    %164 = vmatprep.subr.bf16.mxu0 0
    %165 = vmatpush2.bf16.msra.mxu0 0
    %166 = vmatprep.subr.bf16.mxu0 0
    %167 = vmatpush2.bf16.msra.mxu0 0
    %168 = vmatprep.subr.bf16.mxu0 0
    %169 = vmatpush2.bf16.msra.mxu0 0
    %170 = vmatprep.subr.bf16.mxu0 0
    %171 = vmatpush2.bf16.msra.mxu0 0
    %172 = vmatprep.subr.bf16.mxu0 0
    %173 = vmatpush2.bf16.msra.mxu0 0
    %174 = vmatprep.subr.bf16.mxu0 0
    %175 = vmatpush2.bf16.msra.mxu0 0
    %176 = vmatprep.subr.bf16.mxu0 0
    %177 = vmatpush2.bf16.msra.mxu0 0
    %178 = vmatprep.mubr.bf16.mxu0 0
    %179 = vmatmul.mubr.bf16.gmra.mxu0 %v144
    %v180 = vpop.f32.mrf.mxu0
    %v181 = vadd.f32 %v141, %v180
    %v182 = vpop.f32.mrf.mxu0
    %v183 = vpop.f32.mrf.mxu0
    %v184 = vpop.f32.mrf.mxu0
    %185 = vdwg.mxu0
    %v186 = vmul.f32 %v181, 0.5
    %v187 = vmul.f32 %v181, 0.70710677
    %v188 = vand.u32 2147483647, %v187
    %v189 = vmul.f32 %v188, 0.3275911
    %v190 = vadd.f32 %v189, 1.0
    %v191 = vrcp.pop %v190
    %v192 = vmul.f32 1.0, %v191
    %v193 = vmul.f32 %v192, 1.0614054
    %v194 = vadd.f32 %v193, -1.4531521
    %v195 = vmul.f32 %v194, %v192
    %v196 = vadd.f32 %v195, 1.4214138
    %v197 = vmul.f32 %v196, %v192
    %v198 = vadd.f32 %v197, -0.28449672
    %v199 = vmul.f32 %v198, %v192
    %v200 = vadd.f32 %v199, 0.2548296
    %v201 = vmul.f32 %v200, %v192
    %v202 = vsub.f32 0.0, %v188
    %v203 = vmul.f32 %v202, %v188
    %v204 = vmul.f32 %v203, 1.442695
    %v205 = vpow.pop %v204
    %v206 = vmul.f32 %v201, %v205
    %v207 = vsub.f32 1.0, %v206
    %vm208 = vcmp.ge.f32.partialorder %v187, 0.0
    %v209 = vsub.f32 0.0, %v207
    %v210 = vsel %vm208, %v207, %v209
    %v211 = vadd.f32 %v210, 1.0
    %v212 = vmul.f32 %v186, %v211
    %v213 = vld [vmem:[%s7] sm:$0xff]
    %v214 = vld [vmem:[%s7 + $0x8] sm:$0xff]
    %v215 = vld [vmem:[%s7 + $0x10] sm:$0xff]
    %v216 = vld [vmem:[%s7 + $0x18] sm:$0xff]
    %v217 = vpack.c.bf16 %v212, %v212
    %v218 = vpack.c.bf16 %v214, %v213
    %v219 = vpack.c.bf16 %v216, %v215
    %v220 = vld [vmem:[%s8] sm:$0x1]
    %v222 = vlaneseq
    %v223 = vshrl.u32 %v222, 7
    %v224 = vsub.s32 0, %v223
    %v225 = vrot.slane %v220, %v224
    %v228 = vsel %vm55, %v217, 0
    %230 = vmatprep.subr.bf16.mxu0 0
    %231 = vmatpush1.bf16.msra.mxu0 0
    %232 = vmatprep.subr.bf16.mxu0 0
    %233 = vmatpush1.bf16.msra.mxu0 0
    %234 = vmatprep.subr.bf16.mxu0 0
    %235 = vmatpush1.bf16.msra.mxu0 0
    %236 = vmatprep.subr.bf16.mxu0 0
    %237 = vmatpush1.bf16.msra.mxu0 0
    %238 = vmatprep.subr.bf16.mxu0 0
    %239 = vmatpush1.bf16.msra.mxu0 0
    %240 = vmatprep.subr.bf16.mxu0 0
    %241 = vmatpush1.bf16.msra.mxu0 0
    %242 = vmatprep.subr.bf16.mxu0 0
    %243 = vmatpush1.bf16.msra.mxu0 %v219
    %244 = vmatprep.subr.bf16.mxu0 0
    %245 = vmatpush1.bf16.msra.mxu0 %v218
    %246 = vmatprep.subr.bf16.mxu0 0
    %247 = vmatpush2.bf16.msra.mxu0 0
    %248 = vmatprep.subr.bf16.mxu0 0
    %249 = vmatpush2.bf16.msra.mxu0 0
    %250 = vmatprep.subr.bf16.mxu0 0
    %251 = vmatpush2.bf16.msra.mxu0 0
    %252 = vmatprep.subr.bf16.mxu0 0
    %253 = vmatpush2.bf16.msra.mxu0 0
    %254 = vmatprep.subr.bf16.mxu0 0
    %255 = vmatpush2.bf16.msra.mxu0 0
    %256 = vmatprep.subr.bf16.mxu0 0
    %257 = vmatpush2.bf16.msra.mxu0 0
    %258 = vmatprep.subr.bf16.mxu0 0
    %259 = vmatpush2.bf16.msra.mxu0 0
    %260 = vmatprep.subr.bf16.mxu0 0
    %261 = vmatpush2.bf16.msra.mxu0 0
    %262 = vmatprep.mubr.bf16.mxu0 0
    %263 = vmatmul.mubr.bf16.gmra.mxu0 %v228
    %v264 = vpop.f32.mrf.mxu0
    %v265 = vadd.f32 %v225, %v264
    %v266 = vpop.f32.mrf.mxu0
    %v267 = vpop.f32.mrf.mxu0
    %v268 = vpop.f32.mrf.mxu0
    %269 = vdwg.mxu0
    %v270 = vmul.f32 %v265, 0.5
    %v271 = vmul.f32 %v265, 0.70710677
    %v272 = vand.u32 2147483647, %v271
    %v273 = vmul.f32 %v272, 0.3275911
    %v274 = vadd.f32 %v273, 1.0
    %v275 = vrcp.pop %v274
    %v276 = vmul.f32 1.0, %v275
    %v277 = vmul.f32 %v276, 1.0614054
    %v278 = vadd.f32 %v277, -1.4531521
    %v279 = vmul.f32 %v278, %v276
    %v280 = vadd.f32 %v279, 1.4214138
    %v281 = vmul.f32 %v280, %v276
    %v282 = vadd.f32 %v281, -0.28449672
    %v283 = vmul.f32 %v282, %v276
    %v284 = vadd.f32 %v283, 0.2548296
    %v285 = vmul.f32 %v284, %v276
    %v286 = vsub.f32 0.0, %v272
    %v287 = vmul.f32 %v286, %v272
    %v288 = vmul.f32 %v287, 1.442695
    %v289 = vpow.pop %v288
    %v290 = vmul.f32 %v285, %v289
    %v291 = vsub.f32 1.0, %v290
    %vm292 = vcmp.ge.f32.partialorder %v271, 0.0
    %v293 = vsub.f32 0.0, %v291
    %v294 = vsel %vm292, %v291, %v293
    %v295 = vadd.f32 %v294, 1.0
    %v296 = vmul.f32 %v270, %v295
    %v297 = vld [vmem:[%s9] sm:$0xff]
    %v298 = vld [vmem:[%s9 + $0x8] sm:$0xff]
    %v299 = vpack.c.bf16 %v296, %v296
    %v300 = vpack.c.bf16 %v298, %v297
    %v301 = vld [vmem:[%s10] sm:$0x1]
    %v303 = vlaneseq
    %v304 = vshrl.u32 %v303, 7
    %v305 = vsub.s32 0, %v304
    %v306 = vrot.slane %v301, %v305
    %vm308 = vcmask 130048
    %v310 = vsel %vm308, %v299, 0
    %312 = vmatprep.subr.bf16.mxu0 0
    %313 = vmatpush1.bf16.msra.mxu0 0
    %314 = vmatprep.subr.bf16.mxu0 0
    %315 = vmatpush1.bf16.msra.mxu0 0
    %316 = vmatprep.subr.bf16.mxu0 0
    %317 = vmatpush1.bf16.msra.mxu0 0
    %318 = vmatprep.subr.bf16.mxu0 0
    %319 = vmatpush1.bf16.msra.mxu0 0
    %320 = vmatprep.subr.bf16.mxu0 0
    %321 = vmatpush1.bf16.msra.mxu0 0
    %322 = vmatprep.subr.bf16.mxu0 0
    %323 = vmatpush1.bf16.msra.mxu0 0
    %324 = vmatprep.subr.bf16.mxu0 0
    %325 = vmatpush1.bf16.msra.mxu0 0
    %326 = vmatprep.subr.bf16.mxu0 0
    %327 = vmatpush1.bf16.msra.mxu0 %v300
    %328 = vmatprep.subr.bf16.mxu0 0
    %329 = vmatpush2.bf16.msra.mxu0 0
    %330 = vmatprep.subr.bf16.mxu0 0
    %331 = vmatpush2.bf16.msra.mxu0 0
    %332 = vmatprep.subr.bf16.mxu0 0
    %333 = vmatpush2.bf16.msra.mxu0 0
    %334 = vmatprep.subr.bf16.mxu0 0
    %335 = vmatpush2.bf16.msra.mxu0 0
    %336 = vmatprep.subr.bf16.mxu0 0
    %337 = vmatpush2.bf16.msra.mxu0 0
    %338 = vmatprep.subr.bf16.mxu0 0
    %339 = vmatpush2.bf16.msra.mxu0 0
    %340 = vmatprep.subr.bf16.mxu0 0
    %341 = vmatpush2.bf16.msra.mxu0 0
    %342 = vmatprep.subr.bf16.mxu0 0
    %343 = vmatpush2.bf16.msra.mxu0 0
    %344 = vmatprep.mubr.bf16.mxu0 0
    %345 = vmatmul.mubr.bf16.gmra.mxu0 %v310
    %v346 = vpop.f32.mrf.mxu0
    %v347 = vadd.f32 %v306, %v346
    %v348 = vpop.f32.mrf.mxu0
    %v349 = vpop.f32.mrf.mxu0
    %v350 = vpop.f32.mrf.mxu0
    %351 = vdwg.mxu0
    %vm352 = vcmask 39936
    %353 = vst.msk [vmem:[#allocation2] sm:$0xff] %vm352, %v347
    // Predicated region
    $region46: #{tabpfn_forward.27} parent=1 // pred_check
      _
    $region47: #{tabpfn_forward.27} parent=1 // pred_check_branch
      %355 = sbr.rel (0) target = $region49
    $region48: #{tabpfn_forward.27} parent=1 // pred_region
      %s357 = ssub.s32 128, 128
      %358 = vsyncadd [#allocation3], %s357
      %s360 = sshll.u32 [#allocation2], 4
      %s361 = int_to_ptr.vmem [resolvable:$true] %s360
      %363 = dma.vmem_to_hbm [thread:$0]  %s361, 128, %s11, [#allocation3]
    $region49: #{tabpfn_forward.27} parent=1 // pred_fallthru
      _
    // Predicated region
    $region50: #{tabpfn_forward.27} parent=1 // pred_check
      _
    $region51: #{tabpfn_forward.27} parent=1 // pred_check_branch
      %365 = sbr.rel (0) target = $region53
    $region52: #{tabpfn_forward.27} parent=1 // pred_region
      %366 = dma.done [#allocation3], 128
    $region53: #{tabpfn_forward.27} parent=1 // pred_fallthru
      _
    %367 = vsyncpa [#allocation3], 1

</llo_original>
